<compile_context>
chip_gen: v7x
topology: tpu7x:2x2x1
jax: 0.10.0
libtpu: 0.0.40
codegen_flags: <defaults>
</compile_context>

<pallas_src>
import jax
import jax.numpy as jnp
from jax.experimental import pallas as pl
from jax.experimental.pallas import tpu as pltpu

IN_DIM = 784
IN_PAD = 896          # 7 * 128 — lane-aligned K for the first matmul
HID = 256
OUT_DIM = 10
OUT_PAD = 128         # lane-dense output width


def _round_up(n, m):
    return ((n + m - 1) // m) * m


def mlp_kernel(x_ref, w1_ref, b1_ref, w2_ref, b2_ref, w3_ref, b3_ref,
               w4_ref, b4_ref, o_ref):
    # Fused hot path: 4 MXU matmuls (bf16 operands, f32 accumulate)
    # + f32 bias adds + ReLUs.
    h = jnp.dot(x_ref[...], w1_ref[...], preferred_element_type=jnp.float32)
    h = jnp.maximum(h + b1_ref[...], 0.0)

    h = jnp.dot(h.astype(jnp.bfloat16), w2_ref[...],
                preferred_element_type=jnp.float32)
    h = jnp.maximum(h + b2_ref[...], 0.0)

    h = jnp.dot(h.astype(jnp.bfloat16), w3_ref[...],
                preferred_element_type=jnp.float32)
    h = jnp.maximum(h + b3_ref[...], 0.0)

    out = jnp.dot(h.astype(jnp.bfloat16), w4_ref[...],
                  preferred_element_type=jnp.float32)
    o_ref[...] = (out + b4_ref[...]).astype(o_ref.dtype)


def mlp_forward(x, params, *, batch_tile=256):
    """x: (B, 784) f32.  params: w1..w4 as (in, out), b1..b4 as (1, out), f32."""
    B = x.shape[0]

    # MXU-height-friendly tile; shrink for tiny batches but stay 8-aligned.
    tile = min(batch_tile, _round_up(B, 8))
    Bp = _round_up(B, tile)

    # --- host-side padding / casting (all zero-padded, semantics unchanged) ---
    xp = jnp.zeros((Bp, IN_PAD), jnp.bfloat16)
    xp = xp.at[:B, :IN_DIM].set(x.astype(jnp.bfloat16))

    w1 = jnp.zeros((IN_PAD, HID), jnp.bfloat16)
    w1 = w1.at[:IN_DIM, :].set(params["w1"].astype(jnp.bfloat16))
    w2 = params["w2"].astype(jnp.bfloat16)
    w3 = params["w3"].astype(jnp.bfloat16)
    w4 = jnp.zeros((HID, OUT_PAD), jnp.bfloat16)
    w4 = w4.at[:, :OUT_DIM].set(params["w4"].astype(jnp.bfloat16))

    b1 = params["b1"].astype(jnp.float32)
    b2 = params["b2"].astype(jnp.float32)
    b3 = params["b3"].astype(jnp.float32)
    b4 = jnp.zeros((1, OUT_PAD), jnp.float32)
    b4 = b4.at[:, :OUT_DIM].set(params["b4"].astype(jnp.float32))

    grid = (Bp // tile,)

    def resident(a):
        # Full-array block with a constant index_map: DMA'd once, stays in
        # VMEM for every grid step (no per-step weight re-fetch).
        return pl.BlockSpec(a.shape, lambda i: (0, 0))

    out = pl.pallas_call(
        mlp_kernel,
        out_shape=jax.ShapeDtypeStruct((Bp, OUT_PAD), jnp.float32),
        grid_spec=pltpu.PrefetchScalarGridSpec(
            num_scalar_prefetch=0,
            grid=grid,
            in_specs=[
                pl.BlockSpec((tile, IN_PAD), lambda i: (i, 0)),  # x tile
                resident(w1), resident(b1),
                resident(w2), resident(b2),
                resident(w3), resident(b3),
                resident(w4), resident(b4),
            ],
            out_specs=pl.BlockSpec((tile, OUT_PAD), lambda i: (i, 0)),
        ),
        compiler_params=pltpu.CompilerParams(
            dimension_semantics=("parallel",),   # batch axis shards across TCs
            vmem_limit_bytes=32 * 1024 * 1024,   # headroom on v5e default 16MiB
        ),
    )(xp, w1, b1, w2, b2, w3, b3, w4, b4)

    return out[:B, :OUT_DIM]


def init_params(key):
    """Deterministic params, PyTorch Linear-style U(-1/sqrt(fan_in), +)."""
    dims = [(IN_DIM, HID), (HID, HID), (HID, HID), (HID, OUT_DIM)]
    params = {}
    keys = jax.random.split(key, 2 * len(dims))
    for idx, (fan_in, fan_out) in enumerate(dims):
        bound = 1.0 / jnp.sqrt(float(fan_in))
        w = jax.random.uniform(keys[2 * idx], (fan_in, fan_out),
                               dtype=jnp.float32, minval=-bound, maxval=bound)
        b = jax.random.uniform(keys[2 * idx + 1], (1, fan_out),
                               dtype=jnp.float32, minval=-bound, maxval=bound)
        params[f"w{idx + 1}"] = w
        params[f"b{idx + 1}"] = b
    return params


def reference_forward(x, params):
    h = jnp.maximum(x @ params["w1"] + params["b1"], 0.0)
    h = jnp.maximum(h @ params["w2"] + params["b2"], 0.0)
    h = jnp.maximum(h @ params["w3"] + params["b3"], 0.0)
    return h @ params["w4"] + params["b4"]


if __name__ == "__main__":
    key = jax.random.PRNGKey(0)
    pkey, xkey = jax.random.split(key)
    params = init_params(pkey)

    # Odd batch to exercise the pad-and-slice path and a 2-step grid.
    B = 333
    x = jax.random.normal(xkey, (B, IN_DIM), dtype=jnp.float32)

    out = mlp_forward(x, params)
    out = jax.block_until_ready(out)

    ref = reference_forward(x, params)
    assert out.shape == (B, OUT_DIM), out.shape
    # bf16 operands with f32 accumulation -> relaxed tolerance vs f32 reference.
    assert jnp.allclose(out, ref, atol=3e-2, rtol=3e-2), \
        float(jnp.max(jnp.abs(out - ref)))

    print("KERNEL_OK")
</pallas_src>

<mosaic_0001>
module attributes {stable_mosaic.version = 11 : i64} {
  func.func @mlp_kernel(%arg0: i32, %arg1: memref<256x896xbf16, #tpu.memory_space<vmem>>, %arg2: memref<896x256xbf16, #tpu.memory_space<vmem>>, %arg3: memref<1x256xf32, #tpu.memory_space<vmem>>, %arg4: memref<256x256xbf16, #tpu.memory_space<vmem>>, %arg5: memref<1x256xf32, #tpu.memory_space<vmem>>, %arg6: memref<256x256xbf16, #tpu.memory_space<vmem>>, %arg7: memref<1x256xf32, #tpu.memory_space<vmem>>, %arg8: memref<256x128xbf16, #tpu.memory_space<vmem>>, %arg9: memref<1x128xf32, #tpu.memory_space<vmem>>, %arg10: memref<256x128xf32, #tpu.memory_space<vmem>>) attributes {dimension_semantics = [#tpu.dimension_semantics<parallel>], iteration_bounds = array<i64: 2>, scalar_prefetch = 0 : i64, scratch_operands = 0 : i64, tpu.core_type = #tpu.core_type<tc>, window_params = [{transform_indices = @transform_0, window_bounds = array<i64: 256, 896>}, {pipeline_mode = #tpu.pipeline_mode<synchronous>, transform_indices = @transform_1, window_bounds = array<i64: 896, 256>}, {pipeline_mode = #tpu.pipeline_mode<synchronous>, transform_indices = @transform_2, window_bounds = array<i64: 1, 256>}, {pipeline_mode = #tpu.pipeline_mode<synchronous>, transform_indices = @transform_3, window_bounds = array<i64: 256, 256>}, {pipeline_mode = #tpu.pipeline_mode<synchronous>, transform_indices = @transform_4, window_bounds = array<i64: 1, 256>}, {pipeline_mode = #tpu.pipeline_mode<synchronous>, transform_indices = @transform_5, window_bounds = array<i64: 256, 256>}, {pipeline_mode = #tpu.pipeline_mode<synchronous>, transform_indices = @transform_6, window_bounds = array<i64: 1, 256>}, {pipeline_mode = #tpu.pipeline_mode<synchronous>, transform_indices = @transform_7, window_bounds = array<i64: 256, 128>}, {pipeline_mode = #tpu.pipeline_mode<synchronous>, transform_indices = @transform_8, window_bounds = array<i64: 1, 128>}, {transform_indices = @transform_9, window_bounds = array<i64: 256, 128>}]} {
    %c0 = arith.constant 0 : index
    %c0_0 = arith.constant 0 : index
    %0 = vector.load %arg1[%c0, %c0_0] : memref<256x896xbf16, #tpu.memory_space<vmem>>, vector<256x896xbf16>
    %c0_1 = arith.constant 0 : index
    %c0_2 = arith.constant 0 : index
    %1 = vector.load %arg2[%c0_1, %c0_2] : memref<896x256xbf16, #tpu.memory_space<vmem>>, vector<896x256xbf16>
    %cst = arith.constant dense<0.000000e+00> : vector<256x256xf32>
    %2 = tpu.matmul %0, %1, %cst {dimension_numbers = #tpu.dot_dimension_numbers<[1], [0], [0], [1], [0, 0, 1, 1], [], []>} : vector<256x896xbf16>, vector<896x256xbf16>, vector<256x256xf32> -> vector<256x256xf32>
    %c0_3 = arith.constant 0 : index
    %c0_4 = arith.constant 0 : index
    %3 = vector.load %arg3[%c0_3, %c0_4] : memref<1x256xf32, #tpu.memory_space<vmem>>, vector<1x256xf32>
    %4 = vector.broadcast %3 : vector<1x256xf32> to vector<256x256xf32>
    %5 = arith.addf %2, %4 : vector<256x256xf32>
    %cst_5 = arith.constant 0.000000e+00 : f32
    %6 = vector.broadcast %cst_5 : f32 to vector<256x256xf32>
    %7 = arith.maximumf %5, %6 : vector<256x256xf32>
    %8 = arith.truncf %7 : vector<256x256xf32> to vector<256x256xbf16>
    %c0_6 = arith.constant 0 : index
    %c0_7 = arith.constant 0 : index
    %9 = vector.load %arg4[%c0_6, %c0_7] : memref<256x256xbf16, #tpu.memory_space<vmem>>, vector<256x256xbf16>
    %cst_8 = arith.constant dense<0.000000e+00> : vector<256x256xf32>
    %10 = tpu.matmul %8, %9, %cst_8 {dimension_numbers = #tpu.dot_dimension_numbers<[1], [0], [0], [1], [0, 0, 1, 1], [], []>} : vector<256x256xbf16>, vector<256x256xbf16>, vector<256x256xf32> -> vector<256x256xf32>
    %c0_9 = arith.constant 0 : index
    %c0_10 = arith.constant 0 : index
    %11 = vector.load %arg5[%c0_9, %c0_10] : memref<1x256xf32, #tpu.memory_space<vmem>>, vector<1x256xf32>
    %12 = vector.broadcast %11 : vector<1x256xf32> to vector<256x256xf32>
    %13 = arith.addf %10, %12 : vector<256x256xf32>
    %cst_11 = arith.constant 0.000000e+00 : f32
    %14 = vector.broadcast %cst_11 : f32 to vector<256x256xf32>
    %15 = arith.maximumf %13, %14 : vector<256x256xf32>
    %16 = arith.truncf %15 : vector<256x256xf32> to vector<256x256xbf16>
    %c0_12 = arith.constant 0 : index
    %c0_13 = arith.constant 0 : index
    %17 = vector.load %arg6[%c0_12, %c0_13] : memref<256x256xbf16, #tpu.memory_space<vmem>>, vector<256x256xbf16>
    %cst_14 = arith.constant dense<0.000000e+00> : vector<256x256xf32>
    %18 = tpu.matmul %16, %17, %cst_14 {dimension_numbers = #tpu.dot_dimension_numbers<[1], [0], [0], [1], [0, 0, 1, 1], [], []>} : vector<256x256xbf16>, vector<256x256xbf16>, vector<256x256xf32> -> vector<256x256xf32>
    %c0_15 = arith.constant 0 : index
    %c0_16 = arith.constant 0 : index
    %19 = vector.load %arg7[%c0_15, %c0_16] : memref<1x256xf32, #tpu.memory_space<vmem>>, vector<1x256xf32>
    %20 = vector.broadcast %19 : vector<1x256xf32> to vector<256x256xf32>
    %21 = arith.addf %18, %20 : vector<256x256xf32>
    %cst_17 = arith.constant 0.000000e+00 : f32
    %22 = vector.broadcast %cst_17 : f32 to vector<256x256xf32>
    %23 = arith.maximumf %21, %22 : vector<256x256xf32>
    %24 = arith.truncf %23 : vector<256x256xf32> to vector<256x256xbf16>
    %c0_18 = arith.constant 0 : index
    %c0_19 = arith.constant 0 : index
    %25 = vector.load %arg8[%c0_18, %c0_19] : memref<256x128xbf16, #tpu.memory_space<vmem>>, vector<256x128xbf16>
    %cst_20 = arith.constant dense<0.000000e+00> : vector<256x128xf32>
    %26 = tpu.matmul %24, %25, %cst_20 {dimension_numbers = #tpu.dot_dimension_numbers<[1], [0], [0], [1], [0, 0, 1, 1], [], []>} : vector<256x256xbf16>, vector<256x128xbf16>, vector<256x128xf32> -> vector<256x128xf32>
    %c0_21 = arith.constant 0 : index
    %c0_22 = arith.constant 0 : index
    %27 = vector.load %arg9[%c0_21, %c0_22] : memref<1x128xf32, #tpu.memory_space<vmem>>, vector<1x128xf32>
    %28 = vector.broadcast %27 : vector<1x128xf32> to vector<256x128xf32>
    %29 = arith.addf %26, %28 : vector<256x128xf32>
    %c0_23 = arith.constant 0 : index
    %c0_24 = arith.constant 0 : index
    %30 = vector.load %arg10[%c0_23, %c0_24] : memref<256x128xf32, #tpu.memory_space<vmem>>, vector<256x128xf32>
    tpu.vector_store %arg10[%c0_23, %c0_24], %29 {strides = array<i32>} : memref<256x128xf32, #tpu.memory_space<vmem>>, vector<256x128xf32>,
    return
  }
  func.func @transform_0(%arg0: i32) -> (i32, i32) {
    %c0_i32 = arith.constant 0 : i32
    %c0_i32_0 = arith.constant 0 : i32
    return %arg0, %c0_i32 : i32, i32
  }
  func.func @transform_1(%arg0: i32) -> (i32, i32) {
    %c0_i32 = arith.constant 0 : i32
    %c0_i32_0 = arith.constant 0 : i32
    %c0_i32_1 = arith.constant 0 : i32
    return %c0_i32, %c0_i32_0 : i32, i32
  }
  func.func @transform_2(%arg0: i32) -> (i32, i32) {
    %c0_i32 = arith.constant 0 : i32
    %c0_i32_0 = arith.constant 0 : i32
    %c0_i32_1 = arith.constant 0 : i32
    return %c0_i32, %c0_i32_0 : i32, i32
  }
  func.func @transform_3(%arg0: i32) -> (i32, i32) {
    %c0_i32 = arith.constant 0 : i32
    %c0_i32_0 = arith.constant 0 : i32
    %c0_i32_1 = arith.constant 0 : i32
    return %c0_i32, %c0_i32_0 : i32, i32
  }
  func.func @transform_4(%arg0: i32) -> (i32, i32) {
    %c0_i32 = arith.constant 0 : i32
    %c0_i32_0 = arith.constant 0 : i32
    %c0_i32_1 = arith.constant 0 : i32
    return %c0_i32, %c0_i32_0 : i32, i32
  }
  func.func @transform_5(%arg0: i32) -> (i32, i32) {
    %c0_i32 = arith.constant 0 : i32
    %c0_i32_0 = arith.constant 0 : i32
    %c0_i32_1 = arith.constant 0 : i32
    return %c0_i32, %c0_i32_0 : i32, i32
  }
  func.func @transform_6(%arg0: i32) -> (i32, i32) {
    %c0_i32 = arith.constant 0 : i32
    %c0_i32_0 = arith.constant 0 : i32
    %c0_i32_1 = arith.constant 0 : i32
    return %c0_i32, %c0_i32_0 : i32, i32
  }
  func.func @transform_7(%arg0: i32) -> (i32, i32) {
    %c0_i32 = arith.constant 0 : i32
    %c0_i32_0 = arith.constant 0 : i32
    %c0_i32_1 = arith.constant 0 : i32
    return %c0_i32, %c0_i32_0 : i32, i32
  }
  func.func @transform_8(%arg0: i32) -> (i32, i32) {
    %c0_i32 = arith.constant 0 : i32
    %c0_i32_0 = arith.constant 0 : i32
    %c0_i32_1 = arith.constant 0 : i32
    return %c0_i32, %c0_i32_0 : i32, i32
  }
  func.func @transform_9(%arg0: i32) -> (i32, i32) {
    %c0_i32 = arith.constant 0 : i32
    %c0_i32_0 = arith.constant 0 : i32
    return %arg0, %c0_i32 : i32, i32
  }
}

</mosaic_0001>

<llo_original>
// kernel: tpu_custom_call.1
$region0: #{tpu_custom_call.1}
  #allocation0 [shape = 'u32[]', space=smem, size = 0x4, offset = 0x4, fixed_abs, tag = 'smem constant byte address 0x4 - core index']
  #allocation1 [shape = 'u32[144,128]{1,0:T(1,128)}', space=vmem, size = 0x12000, scoped, tag = 'internal scratch']
  %s0 = inlined_call_operand.hbm [shape: bf16[512,896], index: 0, kind: input, shape index: {}]
  %s1 = inlined_call_operand.hbm [shape: bf16[896,256], index: 1, kind: input, shape index: {}]
  %s2 = inlined_call_operand.vmem [shape: f32[1,256], index: 2, kind: input, shape index: {}]
  %s3 = inlined_call_operand.hbm [shape: bf16[256,256], index: 3, kind: input, shape index: {}]
  %s4 = inlined_call_operand.vmem [shape: f32[1,256], index: 4, kind: input, shape index: {}]
  %s5 = inlined_call_operand.hbm [shape: bf16[256,256], index: 5, kind: input, shape index: {}]
  %s6 = inlined_call_operand.vmem [shape: f32[1,256], index: 6, kind: input, shape index: {}]
  %s7 = inlined_call_operand.hbm [shape: bf16[256,128], index: 7, kind: input, shape index: {}]
  %s8 = inlined_call_operand.vmem [shape: f32[1,128], index: 8, kind: input, shape index: {}]
  %s9 = inlined_call_operand.hbm [shape: f32[512,128], index: 9, kind: output, shape index: {}]
  %s10 = sld [smem:[#allocation0]]
  $region89: #{tpu_custom_call.1} parent=0
    _
  %s12 = ssub.s32 1, %s10
  %s13 = scalar_select 0, %s12, %s10
  $region1: #{tpu_custom_call.1} parent=0
    #allocation2 [shape = 'u8[917504]{0}', space=vmem, size = 0xe0000, scoped, tag = 'input window, operand 0']
    #allocation3 [shape = 's32[2]{0}', space=sflag, size = 0x8, scoped, tag = 'scoped memory for tpu_custom_call.1']
    #allocation4 [shape = 's32[2]{0}', space=sflag, size = 0x8, scoped, tag = 'scoped memory for tpu_custom_call.1']
    #allocation5 [shape = 'u8[458752]{0}', space=vmem, size = 0x70000, scoped, tag = 'input window, operand 1, single buffered']
    #allocation6 [shape = 's32[1]{0}', space=sflag, size = 0x4, scoped, tag = 'scoped memory for tpu_custom_call.1']
    #allocation7 [shape = 'u8[131072]{0}', space=vmem, size = 0x20000, scoped, tag = 'input window, operand 3, single buffered']
    #allocation8 [shape = 'u8[131072]{0}', space=vmem, size = 0x20000, scoped, tag = 'input window, operand 5, single buffered']
    #allocation9 [shape = 's32[1]{0}', space=sflag, size = 0x4, scoped, tag = 'scoped memory for tpu_custom_call.1']
    #allocation10 [shape = 'u8[65536]{0}', space=vmem, size = 0x10000, scoped, tag = 'input window, operand 7, single buffered']
    #allocation11 [shape = 'u8[262144]{0}', space=vmem, size = 0x40000, scoped, tag = 'output window, operand 0']
    %14 = vsyncpa [#allocation3], 0
    %s15 = scalar_lea.sflag [#allocation3], 1
    %16 = vsyncpa %s15, 0
    %17 = vsyncpa [#allocation6], 0
    %18 = vsyncpa [#allocation9], 0
    %19 = vsyncpa [#allocation4], 0
    %s20 = scalar_lea.sflag [#allocation4], 1
    %21 = vsyncpa %s20, 0
    loop: start=0, step=1, limit=4
    $region2: #{tpu_custom_call.1} parent=1 // loop_pre_header
      _
    $region3: #{tpu_custom_call.1} parent=1 // loop_header
      %s23 = sphi 0, %s27
      %p24 = scmp.ge.s32.totalorder %s23, 4
      %s33 = sphi 0, %s35
      %s36 = sphi 0, %s33
      %s37 = sphi 0, %s36
      %s53 = sphi 0, %s37
      %s57 = sphi 0, %s57
      %s59 = sphi 0, %s57
      %s60 = sphi 0, %s59
      %s74 = sphi 0, %s60
      %s78 = sphi 0, %s78
      %s80 = sphi 0, %s78
      %s81 = sphi 0, %s80
      %s95 = sphi 0, %s81
      %s99 = sphi 0, %s99
      %s101 = sphi 0, %s99
      %s102 = sphi 0, %s101
      %s116 = sphi 0, %s102
      %s120 = sphi 0, %s120
      %s122 = sphi 0, %s120
      %s123 = sphi 0, %s122
      %s137 = sphi 0, %s123
      %s141 = sphi 0, %s141
      %s143 = sphi 0, %s141
      %s144 = sphi 0, %s143
      %s158 = sphi 0, %s144
      %s162 = sphi 0, %s162
      %s164 = sphi 0, %s162
      %s165 = sphi 0, %s164
      %s179 = sphi 0, %s165
      %s183 = sphi 0, %s183
      %s185 = sphi 0, %s183
      %s186 = sphi 0, %s185
      %s200 = sphi 0, %s186
      %s204 = sphi 0, %s204
      %s206 = sphi 0, %s204
      %s207 = sphi 0, %s206
      %s221 = sphi 0, %s207
      %s227 = sphi 0, %s229
      %s230 = sphi 0, %s227
      %s231 = sphi 0, %s230
      %s247 = sphi 0, %s231
    $region4: #{tpu_custom_call.1} parent=1 // loop_header_branch
      %26 = sbr.rel (%p24) target = $region8
    $region5: #{tpu_custom_call.1} parent=1 // loop_body
      %s28 = ssub.s32 %s23, 1
      %s29 = ssub.s32 %s23, 2
      %s30 = sadd.s32 %s23, 1
      %s31 = ssub.s32 %s23, %s30
      %p32 = scmp.eq.s32.totalorder %s31, 0
      %s34 = sadd.s32 %s33, 1
      %s35 = scalar_select %p32, %s33, %s34
      %p38 = pneg %p32
      %p39 = scmp.eq.s32.totalorder %s23, 1
      %p40 = por %p38, %p39
      %p41 = scmp.ne.s32.totalorder %s33, %s36
      %p42 = scmp.eq.s32.totalorder %s23, 0
      %p43 = por %p41, %p42
      %p44 = scmp.ne.s32.totalorder %s33, %s36
      %p45 = scmp.eq.s32.totalorder %s28, 1
      %p46 = por %p44, %p45
      %p47 = scmp.ne.s32.totalorder %s36, %s37
      %p48 = scmp.eq.s32.totalorder %s28, 0
      %p49 = por %p47, %p48
      %p50 = scmp.ne.s32.totalorder %s36, %s37
      %p51 = scmp.eq.s32.totalorder %s29, 1
      %p52 = por %p50, %p51
      %p54 = scmp.ne.s32.totalorder %s37, %s53
      %p55 = scmp.eq.s32.totalorder %s29, 0
      %p56 = por %p54, %p55
      %s58 = sadd.s32 %s57, 1
      %p61 = scmp.eq.s32.totalorder %s23, 1
      %p62 = scmp.ne.s32.totalorder %s57, %s59
      %p63 = scmp.eq.s32.totalorder %s23, 0
      %p64 = por %p62, %p63
      %p65 = scmp.ne.s32.totalorder %s57, %s59
      %p66 = scmp.eq.s32.totalorder %s28, 1
      %p67 = por %p65, %p66
      %p68 = scmp.ne.s32.totalorder %s59, %s60
      %p69 = scmp.eq.s32.totalorder %s28, 0
      %p70 = por %p68, %p69
      %p71 = scmp.ne.s32.totalorder %s59, %s60
      %p72 = scmp.eq.s32.totalorder %s29, 1
      %p73 = por %p71, %p72
      %p75 = scmp.ne.s32.totalorder %s60, %s74
      %p76 = scmp.eq.s32.totalorder %s29, 0
      %p77 = por %p75, %p76
      %s79 = sadd.s32 %s78, 1
      %p82 = scmp.eq.s32.totalorder %s23, 1
      %p83 = scmp.ne.s32.totalorder %s78, %s80
      %p84 = scmp.eq.s32.totalorder %s23, 0
      %p85 = por %p83, %p84
      %p86 = scmp.ne.s32.totalorder %s78, %s80
      %p87 = scmp.eq.s32.totalorder %s28, 1
      %p88 = por %p86, %p87
      %p89 = scmp.ne.s32.totalorder %s80, %s81
      %p90 = scmp.eq.s32.totalorder %s28, 0
      %p91 = por %p89, %p90
      %p92 = scmp.ne.s32.totalorder %s80, %s81
      %p93 = scmp.eq.s32.totalorder %s29, 1
      %p94 = por %p92, %p93
      %p96 = scmp.ne.s32.totalorder %s81, %s95
      %p97 = scmp.eq.s32.totalorder %s29, 0
      %p98 = por %p96, %p97
      %s100 = sadd.s32 %s99, 1
      %p103 = scmp.eq.s32.totalorder %s23, 1
      %p104 = scmp.ne.s32.totalorder %s99, %s101
      %p105 = scmp.eq.s32.totalorder %s23, 0
      %p106 = por %p104, %p105
      %p107 = scmp.ne.s32.totalorder %s99, %s101
      %p108 = scmp.eq.s32.totalorder %s28, 1
      %p109 = por %p107, %p108
      %p110 = scmp.ne.s32.totalorder %s101, %s102
      %p111 = scmp.eq.s32.totalorder %s28, 0
      %p112 = por %p110, %p111
      %p113 = scmp.ne.s32.totalorder %s101, %s102
      %p114 = scmp.eq.s32.totalorder %s29, 1
      %p115 = por %p113, %p114
      %p117 = scmp.ne.s32.totalorder %s102, %s116
      %p118 = scmp.eq.s32.totalorder %s29, 0
      %p119 = por %p117, %p118
      %s121 = sadd.s32 %s120, 1
      %p124 = scmp.eq.s32.totalorder %s23, 1
      %p125 = scmp.ne.s32.totalorder %s120, %s122
      %p126 = scmp.eq.s32.totalorder %s23, 0
      %p127 = por %p125, %p126
      %p128 = scmp.ne.s32.totalorder %s120, %s122
      %p129 = scmp.eq.s32.totalorder %s28, 1
      %p130 = por %p128, %p129
      %p131 = scmp.ne.s32.totalorder %s122, %s123
      %p132 = scmp.eq.s32.totalorder %s28, 0
      %p133 = por %p131, %p132
      %p134 = scmp.ne.s32.totalorder %s122, %s123
      %p135 = scmp.eq.s32.totalorder %s29, 1
      %p136 = por %p134, %p135
      %p138 = scmp.ne.s32.totalorder %s123, %s137
      %p139 = scmp.eq.s32.totalorder %s29, 0
      %p140 = por %p138, %p139
      %s142 = sadd.s32 %s141, 1
      %p145 = scmp.eq.s32.totalorder %s23, 1
      %p146 = scmp.ne.s32.totalorder %s141, %s143
      %p147 = scmp.eq.s32.totalorder %s23, 0
      %p148 = por %p146, %p147
      %p149 = scmp.ne.s32.totalorder %s141, %s143
      %p150 = scmp.eq.s32.totalorder %s28, 1
      %p151 = por %p149, %p150
      %p152 = scmp.ne.s32.totalorder %s143, %s144
      %p153 = scmp.eq.s32.totalorder %s28, 0
      %p154 = por %p152, %p153
      %p155 = scmp.ne.s32.totalorder %s143, %s144
      %p156 = scmp.eq.s32.totalorder %s29, 1
      %p157 = por %p155, %p156
      %p159 = scmp.ne.s32.totalorder %s144, %s158
      %p160 = scmp.eq.s32.totalorder %s29, 0
      %p161 = por %p159, %p160
      %s163 = sadd.s32 %s162, 1
      %p166 = scmp.eq.s32.totalorder %s23, 1
      %p167 = scmp.ne.s32.totalorder %s162, %s164
      %p168 = scmp.eq.s32.totalorder %s23, 0
      %p169 = por %p167, %p168
      %p170 = scmp.ne.s32.totalorder %s162, %s164
      %p171 = scmp.eq.s32.totalorder %s28, 1
      %p172 = por %p170, %p171
      %p173 = scmp.ne.s32.totalorder %s164, %s165
      %p174 = scmp.eq.s32.totalorder %s28, 0
      %p175 = por %p173, %p174
      %p176 = scmp.ne.s32.totalorder %s164, %s165
      %p177 = scmp.eq.s32.totalorder %s29, 1
      %p178 = por %p176, %p177
      %p180 = scmp.ne.s32.totalorder %s165, %s179
      %p181 = scmp.eq.s32.totalorder %s29, 0
      %p182 = por %p180, %p181
      %s184 = sadd.s32 %s183, 1
      %p187 = scmp.eq.s32.totalorder %s23, 1
      %p188 = scmp.ne.s32.totalorder %s183, %s185
      %p189 = scmp.eq.s32.totalorder %s23, 0
      %p190 = por %p188, %p189
      %p191 = scmp.ne.s32.totalorder %s183, %s185
      %p192 = scmp.eq.s32.totalorder %s28, 1
      %p193 = por %p191, %p192
      %p194 = scmp.ne.s32.totalorder %s185, %s186
      %p195 = scmp.eq.s32.totalorder %s28, 0
      %p196 = por %p194, %p195
      %p197 = scmp.ne.s32.totalorder %s185, %s186
      %p198 = scmp.eq.s32.totalorder %s29, 1
      %p199 = por %p197, %p198
      %p201 = scmp.ne.s32.totalorder %s186, %s200
      %p202 = scmp.eq.s32.totalorder %s29, 0
      %p203 = por %p201, %p202
      %s205 = sadd.s32 %s204, 1
      %p208 = scmp.eq.s32.totalorder %s23, 1
      %p209 = scmp.ne.s32.totalorder %s204, %s206
      %p210 = scmp.eq.s32.totalorder %s23, 0
      %p211 = por %p209, %p210
      %p212 = scmp.ne.s32.totalorder %s204, %s206
      %p213 = scmp.eq.s32.totalorder %s28, 1
      %p214 = por %p212, %p213
      %p215 = scmp.ne.s32.totalorder %s206, %s207
      %p216 = scmp.eq.s32.totalorder %s28, 0
      %p217 = por %p215, %p216
      %p218 = scmp.ne.s32.totalorder %s206, %s207
      %p219 = scmp.eq.s32.totalorder %s29, 1
      %p220 = por %p218, %p219
      %p222 = scmp.ne.s32.totalorder %s207, %s221
      %p223 = scmp.eq.s32.totalorder %s29, 0
      %p224 = por %p222, %p223
      %s225 = ssub.s32 %s23, %s30
      %p226 = scmp.eq.s32.totalorder %s225, 0
      %s228 = sadd.s32 %s227, 1
      %s229 = scalar_select %p226, %s227, %s228
      %p232 = pneg %p226
      %p233 = scmp.eq.s32.totalorder %s23, 1
      %p234 = por %p232, %p233
      %p235 = scmp.ne.s32.totalorder %s227, %s230
      %p236 = scmp.eq.s32.totalorder %s23, 0
      %p237 = por %p235, %p236
      %p238 = scmp.ne.s32.totalorder %s227, %s230
      %p239 = scmp.eq.s32.totalorder %s28, 1
      %p240 = por %p238, %p239
      %p241 = scmp.ne.s32.totalorder %s230, %s231
      %p242 = scmp.eq.s32.totalorder %s28, 0
      %p243 = por %p241, %p242
      %p244 = scmp.ne.s32.totalorder %s230, %s231
      %p245 = scmp.eq.s32.totalorder %s29, 1
      %p246 = por %p244, %p245
      %p248 = scmp.ne.s32.totalorder %s231, %s247
      %p249 = scmp.eq.s32.totalorder %s29, 0
      %p250 = por %p248, %p249
      %p251 = scmp.le.s32.totalorder 1, %s23
      %p252 = scmp.lt.s32.totalorder %s23, 3
      %p253 = pnand %p251, %p252
      %p254 = pneg %p253
      // Predicated region
      $region9: #{tpu_custom_call.1} parent=5 // pred_check
        _
      $region10: #{tpu_custom_call.1} parent=5 // pred_check_branch
        %256 = sbr.rel (%p253) target = $region12
      $region11: #{tpu_custom_call.1} parent=5 // pred_region
        %s257 = ssub.s32 %s23, 1
        // Predicated region
        $region13: #{tpu_custom_call.1} parent=11 // pred_check
          %p258 = pneg %p70
        $region14: #{tpu_custom_call.1} parent=11 // pred_check_branch
          %260 = sbr.rel (%p258) target = $region16
        $region15: #{tpu_custom_call.1} parent=11 // pred_region
          %s262 = ssub.s32 14336, 14336
          %263 = vsyncadd [#allocation6], %s262
          %s264 = sshll.u32 [#allocation5], 4
          %s265 = int_to_ptr.vmem [resolvable:$true] %s264
          %270 = dma.hbm_to_vmem [thread:$0]  %s1, 14336, %s265, [#allocation6], 128, 128, 8
        $region16: #{tpu_custom_call.1} parent=11 // pred_fallthru
          _
        // Predicated region
        $region17: #{tpu_custom_call.1} parent=11 // pred_check
          %p271 = pneg %p91
        $region18: #{tpu_custom_call.1} parent=11 // pred_check_branch
          %273 = sbr.rel (%p271) target = $region20
        $region19: #{tpu_custom_call.1} parent=11 // pred_region
          _
        $region20: #{tpu_custom_call.1} parent=11 // pred_fallthru
          _
        // Predicated region
        $region21: #{tpu_custom_call.1} parent=11 // pred_check
          %p274 = pneg %p112
        $region22: #{tpu_custom_call.1} parent=11 // pred_check_branch
          %276 = sbr.rel (%p274) target = $region24
        $region23: #{tpu_custom_call.1} parent=11 // pred_region
          %s278 = ssub.s32 4096, 4096
          %279 = vsyncadd [#allocation6], %s278
          %s280 = sshll.u32 [#allocation7], 4
          %s281 = int_to_ptr.vmem [resolvable:$true] %s280
          %286 = dma.hbm_to_vmem [thread:$0]  %s3, 4096, %s281, [#allocation6], 128, 128, 8
        $region24: #{tpu_custom_call.1} parent=11 // pred_fallthru
          _
        // Predicated region
        $region25: #{tpu_custom_call.1} parent=11 // pred_check
          %p287 = pneg %p133
        $region26: #{tpu_custom_call.1} parent=11 // pred_check_branch
          %289 = sbr.rel (%p287) target = $region28
        $region27: #{tpu_custom_call.1} parent=11 // pred_region
          _
        $region28: #{tpu_custom_call.1} parent=11 // pred_fallthru
          _
        // Predicated region
        $region29: #{tpu_custom_call.1} parent=11 // pred_check
          %p290 = pneg %p154
        $region30: #{tpu_custom_call.1} parent=11 // pred_check_branch
          %292 = sbr.rel (%p290) target = $region32
        $region31: #{tpu_custom_call.1} parent=11 // pred_region
          %s294 = ssub.s32 4096, 4096
          %295 = vsyncadd [#allocation9], %s294
          %s296 = sshll.u32 [#allocation8], 4
          %s297 = int_to_ptr.vmem [resolvable:$true] %s296
          %302 = dma.hbm_to_vmem [thread:$0]  %s5, 4096, %s297, [#allocation9], 128, 128, 8
        $region32: #{tpu_custom_call.1} parent=11 // pred_fallthru
          _
        // Predicated region
        $region33: #{tpu_custom_call.1} parent=11 // pred_check
          %p303 = pneg %p175
        $region34: #{tpu_custom_call.1} parent=11 // pred_check_branch
          %305 = sbr.rel (%p303) target = $region36
        $region35: #{tpu_custom_call.1} parent=11 // pred_region
          _
        $region36: #{tpu_custom_call.1} parent=11 // pred_fallthru
          _
        // Predicated region
        $region37: #{tpu_custom_call.1} parent=11 // pred_check
          %p306 = pneg %p196
        $region38: #{tpu_custom_call.1} parent=11 // pred_check_branch
          %308 = sbr.rel (%p306) target = $region40
        $region39: #{tpu_custom_call.1} parent=11 // pred_region
          %s310 = ssub.s32 2048, 2048
          %311 = vsyncadd [#allocation9], %s310
          %s312 = sshll.u32 [#allocation10], 4
          %s313 = int_to_ptr.vmem [resolvable:$true] %s312
          %318 = dma.hbm_to_vmem [thread:$0]  %s7, 2048, %s313, [#allocation9], 64, 64, 4
        $region40: #{tpu_custom_call.1} parent=11 // pred_fallthru
          _
        // Predicated region
        $region41: #{tpu_custom_call.1} parent=11 // pred_check
          %p319 = pneg %p217
        $region42: #{tpu_custom_call.1} parent=11 // pred_check_branch
          %321 = sbr.rel (%p319) target = $region44
        $region43: #{tpu_custom_call.1} parent=11 // pred_region
          _
        $region44: #{tpu_custom_call.1} parent=11 // pred_fallthru
          _
      $region12: #{tpu_custom_call.1} parent=5 // pred_fallthru
        _
      %p322 = scmp.lt.s32.totalorder %s23, 2
      // Predicated region
      $region45: #{tpu_custom_call.1} parent=5 // pred_check
        %p323 = pneg %p322
      $region46: #{tpu_custom_call.1} parent=5 // pred_check_branch
        %325 = sbr.rel (%p323) target = $region48
      $region47: #{tpu_custom_call.1} parent=5 // pred_region
        // Predicated region
        $region49: #{tpu_custom_call.1} parent=47 // pred_check
          %p326 = pneg %p43
        $region50: #{tpu_custom_call.1} parent=47 // pred_check_branch
          %328 = sbr.rel (%p326) target = $region52
        $region51: #{tpu_custom_call.1} parent=47 // pred_region
          %s329 = sand.u32 %s33, 1
          %s330 = scalar_lea.sflag [#allocation3], %s329
          %s331 = sand.u32 %s33, 1
          %s332 = smul.addr %s331, 896
          %s333 = scalar_lea.vmem [#allocation2], %s332
          %s334 = smul.u32 32, %s23
          %s336 = ssub.s32 14336, 14336
          %337 = vsyncadd %s330, %s336
          %s338 = smul.addr %s334, 7
          %s339 = smul.addr %s338, 64
          %s340 = scalar_lea.hbm %s0, %s339
          %s341 = sshll.u32 %s333, 4
          %s342 = int_to_ptr.vmem [resolvable:$true] %s341
          %347 = dma.hbm_to_vmem [thread:$0]  %s340, 14336, %s342, %s330, 448, 448, 28
        $region52: #{tpu_custom_call.1} parent=47 // pred_fallthru
          _
      $region48: #{tpu_custom_call.1} parent=5 // pred_fallthru
        _
      %p348 = scmp.le.s32.totalorder 1, %s23
      %p349 = scmp.lt.s32.totalorder %s23, 3
      %p350 = pnand %p348, %p349
      %p351 = pneg %p350
      // Predicated region
      $region53: #{tpu_custom_call.1} parent=5 // pred_check
        _
      $region54: #{tpu_custom_call.1} parent=5 // pred_check_branch
        %353 = sbr.rel (%p350) target = $region56
      $region55: #{tpu_custom_call.1} parent=5 // pred_region
        %s354 = ssub.s32 %s23, 1
        %s355 = sand.u32 %s36, 1
        %s356 = scalar_lea.sflag [#allocation3], %s355
        %s357 = sand.u32 %s36, 1
        %s358 = smul.addr %s357, 896
        %s359 = scalar_lea.vmem [#allocation2], %s358
        // Predicated region
        $region57: #{tpu_custom_call.1} parent=55 // pred_check
          %p360 = pneg %p49
        $region58: #{tpu_custom_call.1} parent=55 // pred_check_branch
          %362 = sbr.rel (%p360) target = $region60
        $region59: #{tpu_custom_call.1} parent=55 // pred_region
          %363 = dma.done %s356, 14336
        $region60: #{tpu_custom_call.1} parent=55 // pred_fallthru
          _
        // Predicated region
        $region61: #{tpu_custom_call.1} parent=55 // pred_check
          %p364 = pneg %p70
        $region62: #{tpu_custom_call.1} parent=55 // pred_check_branch
          %366 = sbr.rel (%p364) target = $region64
        $region63: #{tpu_custom_call.1} parent=55 // pred_region
          %367 = dma.done [#allocation6], 14336
        $region64: #{tpu_custom_call.1} parent=55 // pred_fallthru
          _
        // Predicated region
        $region65: #{tpu_custom_call.1} parent=55 // pred_check
          %p368 = pneg %p112
        $region66: #{tpu_custom_call.1} parent=55 // pred_check_branch
          %370 = sbr.rel (%p368) target = $region68
        $region67: #{tpu_custom_call.1} parent=55 // pred_region
          %371 = dma.done [#allocation6], 4096
        $region68: #{tpu_custom_call.1} parent=55 // pred_fallthru
          _
        // Predicated region
        $region69: #{tpu_custom_call.1} parent=55 // pred_check
          %p372 = pneg %p154
        $region70: #{tpu_custom_call.1} parent=55 // pred_check_branch
          %374 = sbr.rel (%p372) target = $region72
        $region71: #{tpu_custom_call.1} parent=55 // pred_region
          %375 = dma.done [#allocation9], 4096
        $region72: #{tpu_custom_call.1} parent=55 // pred_fallthru
          _
        // Predicated region
        $region73: #{tpu_custom_call.1} parent=55 // pred_check
          %p376 = pneg %p196
        $region74: #{tpu_custom_call.1} parent=55 // pred_check_branch
          %378 = sbr.rel (%p376) target = $region76
        $region75: #{tpu_custom_call.1} parent=55 // pred_region
          %379 = dma.done [#allocation9], 2048
        $region76: #{tpu_custom_call.1} parent=55 // pred_fallthru
          _
        %s380 = sand.u32 %s36, 1
        %s381 = scalar_lea.sflag [#allocation3], %s380
        %s382 = sand.u32 %s36, 1
        %s383 = smul.addr %s382, 896
        %s384 = scalar_lea.vmem [#allocation2], %s383
        %p385 = pneg %p49
        %p386 = pneg %p46
        %p387 = pneg %p70
        %p388 = pneg %p67
        %p389 = pneg %p91
        %p390 = pneg %p88
        %p391 = pneg %p112
        %p392 = pneg %p109
        %p393 = pneg %p133
        %p394 = pneg %p130
        %p395 = pneg %p154
        %p396 = pneg %p151
        %p397 = pneg %p175
        %p398 = pneg %p172
        %p399 = pneg %p196
        %p400 = pneg %p193
        %p401 = pneg %p217
        %p402 = pneg %p214
        %p403 = pneg %p243
        %p404 = pneg %p240
        %s405 = sand.u32 %s230, 1
        %s406 = scalar_lea.sflag [#allocation4], %s405
        %s407 = sand.u32 %s230, 1
        %s408 = smul.addr %s407, 256
        %s409 = scalar_lea.vmem [#allocation11], %s408
        %s410 = smul.u32 32, %s28
        %s411 = smul.u32 32, %s28
        %v413 = vld [vmem:[%s359] sm:$0xff]
        %v414 = vld [vmem:[%s359 + $0x8] sm:$0xff]
        %v415 = vld [vmem:[%s359 + $0x10] sm:$0xff]
        %v416 = vld [vmem:[%s359 + $0x18] sm:$0xf]
        %v417 = vld [vmem:[%s359 + $0x1c] sm:$0xff]
        %v418 = vld [vmem:[%s359 + $0x24] sm:$0xff]
        %v419 = vld [vmem:[%s359 + $0x2c] sm:$0xff]
        %v420 = vld [vmem:[%s359 + $0x34] sm:$0xf]
        %v421 = vld [vmem:[%s359 + $0x38] sm:$0xff]
        %v422 = vld [vmem:[%s359 + $0x40] sm:$0xff]
        %v423 = vld [vmem:[%s359 + $0x48] sm:$0xff]
        %v424 = vld [vmem:[%s359 + $0x50] sm:$0xf]
        %v425 = vld [vmem:[%s359 + $0x54] sm:$0xff]
        %v426 = vld [vmem:[%s359 + $0x5c] sm:$0xff]
        %v427 = vld [vmem:[%s359 + $0x64] sm:$0xff]
        %v428 = vld [vmem:[%s359 + $0x6c] sm:$0xf]
        %v429 = vld [vmem:[%s359 + $0x70] sm:$0xff]
        %v430 = vld [vmem:[%s359 + $0x78] sm:$0xff]
        %v431 = vld [vmem:[%s359 + $0x80] sm:$0xff]
        %v432 = vld [vmem:[%s359 + $0x88] sm:$0xf]
        %v433 = vld [vmem:[%s359 + $0x8c] sm:$0xff]
        %v434 = vld [vmem:[%s359 + $0x94] sm:$0xff]
        %v435 = vld [vmem:[%s359 + $0x9c] sm:$0xff]
        %v436 = vld [vmem:[%s359 + $0xa4] sm:$0xf]
        %v437 = vld [vmem:[%s359 + $0xa8] sm:$0xff]
        %v438 = vld [vmem:[%s359 + $0xb0] sm:$0xff]
        %v439 = vld [vmem:[%s359 + $0xb8] sm:$0xff]
        %v440 = vld [vmem:[%s359 + $0xc0] sm:$0xf]
        %v441 = vld [vmem:[%s359 + $0xc4] sm:$0xff]
        %v442 = vld [vmem:[%s359 + $0xcc] sm:$0xff]
        %v443 = vld [vmem:[%s359 + $0xd4] sm:$0xff]
        %v444 = vld [vmem:[%s359 + $0xdc] sm:$0xf]
        %v445 = vld [vmem:[%s359 + $0xe0] sm:$0xff]
        %v446 = vld [vmem:[%s359 + $0xe8] sm:$0xff]
        %v447 = vld [vmem:[%s359 + $0xf0] sm:$0xff]
        %v448 = vld [vmem:[%s359 + $0xf8] sm:$0xf]
        %v449 = vld [vmem:[%s359 + $0xfc] sm:$0xff]
        %v450 = vld [vmem:[%s359 + $0x104] sm:$0xff]
        %v451 = vld [vmem:[%s359 + $0x10c] sm:$0xff]
        %v452 = vld [vmem:[%s359 + $0x114] sm:$0xf]
        %v453 = vld [vmem:[%s359 + $0x118] sm:$0xff]
        %v454 = vld [vmem:[%s359 + $0x120] sm:$0xff]
        %v455 = vld [vmem:[%s359 + $0x128] sm:$0xff]
        %v456 = vld [vmem:[%s359 + $0x130] sm:$0xf]
        %v457 = vld [vmem:[%s359 + $0x134] sm:$0xff]
        %v458 = vld [vmem:[%s359 + $0x13c] sm:$0xff]
        %v459 = vld [vmem:[%s359 + $0x144] sm:$0xff]
        %v460 = vld [vmem:[%s359 + $0x14c] sm:$0xf]
        %v461 = vld [vmem:[%s359 + $0x150] sm:$0xff]
        %v462 = vld [vmem:[%s359 + $0x158] sm:$0xff]
        %v463 = vld [vmem:[%s359 + $0x160] sm:$0xff]
        %v464 = vld [vmem:[%s359 + $0x168] sm:$0xf]
        %v465 = vld [vmem:[%s359 + $0x16c] sm:$0xff]
        %v466 = vld [vmem:[%s359 + $0x174] sm:$0xff]
        %v467 = vld [vmem:[%s359 + $0x17c] sm:$0xff]
        %v468 = vld [vmem:[%s359 + $0x184] sm:$0xf]
        %v469 = vld [vmem:[%s359 + $0x188] sm:$0xff]
        %v470 = vld [vmem:[%s359 + $0x190] sm:$0xff]
        %v471 = vld [vmem:[%s359 + $0x198] sm:$0xff]
        %v472 = vld [vmem:[%s359 + $0x1a0] sm:$0xf]
        %v473 = vld [vmem:[%s359 + $0x1a4] sm:$0xff]
        %v474 = vld [vmem:[%s359 + $0x1ac] sm:$0xff]
        %v475 = vld [vmem:[%s359 + $0x1b4] sm:$0xff]
        %v476 = vld [vmem:[%s359 + $0x1bc] sm:$0xf]
        %v477 = vld [vmem:[%s359 + $0x1c0] sm:$0xff]
        %v478 = vld [vmem:[%s359 + $0x1c8] sm:$0xff]
        %v479 = vld [vmem:[%s359 + $0x1d0] sm:$0xff]
        %v480 = vld [vmem:[%s359 + $0x1d8] sm:$0xf]
        %v481 = vld [vmem:[%s359 + $0x1dc] sm:$0xff]
        %v482 = vld [vmem:[%s359 + $0x1e4] sm:$0xff]
        %v483 = vld [vmem:[%s359 + $0x1ec] sm:$0xff]
        %v484 = vld [vmem:[%s359 + $0x1f4] sm:$0xf]
        %v485 = vld [vmem:[%s359 + $0x1f8] sm:$0xff]
        %v486 = vld [vmem:[%s359 + $0x200] sm:$0xff]
        %v487 = vld [vmem:[%s359 + $0x208] sm:$0xff]
        %v488 = vld [vmem:[%s359 + $0x210] sm:$0xf]
        %v489 = vld [vmem:[%s359 + $0x214] sm:$0xff]
        %v490 = vld [vmem:[%s359 + $0x21c] sm:$0xff]
        %v491 = vld [vmem:[%s359 + $0x224] sm:$0xff]
        %v492 = vld [vmem:[%s359 + $0x22c] sm:$0xf]
        %v493 = vld [vmem:[%s359 + $0x230] sm:$0xff]
        %v494 = vld [vmem:[%s359 + $0x238] sm:$0xff]
        %v495 = vld [vmem:[%s359 + $0x240] sm:$0xff]
        %v496 = vld [vmem:[%s359 + $0x248] sm:$0xf]
        %v497 = vld [vmem:[%s359 + $0x24c] sm:$0xff]
        %v498 = vld [vmem:[%s359 + $0x254] sm:$0xff]
        %v499 = vld [vmem:[%s359 + $0x25c] sm:$0xff]
        %v500 = vld [vmem:[%s359 + $0x264] sm:$0xf]
        %v501 = vld [vmem:[%s359 + $0x268] sm:$0xff]
        %v502 = vld [vmem:[%s359 + $0x270] sm:$0xff]
        %v503 = vld [vmem:[%s359 + $0x278] sm:$0xff]
        %v504 = vld [vmem:[%s359 + $0x280] sm:$0xf]
        %v505 = vld [vmem:[%s359 + $0x284] sm:$0xff]
        %v506 = vld [vmem:[%s359 + $0x28c] sm:$0xff]
        %v507 = vld [vmem:[%s359 + $0x294] sm:$0xff]
        %v508 = vld [vmem:[%s359 + $0x29c] sm:$0xf]
        %v509 = vld [vmem:[%s359 + $0x2a0] sm:$0xff]
        %v510 = vld [vmem:[%s359 + $0x2a8] sm:$0xff]
        %v511 = vld [vmem:[%s359 + $0x2b0] sm:$0xff]
        %v512 = vld [vmem:[%s359 + $0x2b8] sm:$0xf]
        %v513 = vld [vmem:[%s359 + $0x2bc] sm:$0xff]
        %v514 = vld [vmem:[%s359 + $0x2c4] sm:$0xff]
        %v515 = vld [vmem:[%s359 + $0x2cc] sm:$0xff]
        %v516 = vld [vmem:[%s359 + $0x2d4] sm:$0xf]
        %v517 = vld [vmem:[%s359 + $0x2d8] sm:$0xff]
        %v518 = vld [vmem:[%s359 + $0x2e0] sm:$0xff]
        %v519 = vld [vmem:[%s359 + $0x2e8] sm:$0xff]
        %v520 = vld [vmem:[%s359 + $0x2f0] sm:$0xf]
        %v521 = vld [vmem:[%s359 + $0x2f4] sm:$0xff]
        %v522 = vld [vmem:[%s359 + $0x2fc] sm:$0xff]
        %v523 = vld [vmem:[%s359 + $0x304] sm:$0xff]
        %v524 = vld [vmem:[%s359 + $0x30c] sm:$0xf]
        %v525 = vld [vmem:[%s359 + $0x310] sm:$0xff]
        %v526 = vld [vmem:[%s359 + $0x318] sm:$0xff]
        %v527 = vld [vmem:[%s359 + $0x320] sm:$0xff]
        %v528 = vld [vmem:[%s359 + $0x328] sm:$0xf]
        %v529 = vld [vmem:[%s359 + $0x32c] sm:$0xff]
        %v530 = vld [vmem:[%s359 + $0x334] sm:$0xff]
        %v531 = vld [vmem:[%s359 + $0x33c] sm:$0xff]
        %v532 = vld [vmem:[%s359 + $0x344] sm:$0xf]
        %v533 = vld [vmem:[%s359 + $0x348] sm:$0xff]
        %v534 = vld [vmem:[%s359 + $0x350] sm:$0xff]
        %v535 = vld [vmem:[%s359 + $0x358] sm:$0xff]
        %v536 = vld [vmem:[%s359 + $0x360] sm:$0xf]
        %v537 = vld [vmem:[%s359 + $0x364] sm:$0xff]
        %v538 = vld [vmem:[%s359 + $0x36c] sm:$0xff]
        %v539 = vld [vmem:[%s359 + $0x374] sm:$0xff]
        %v540 = vld [vmem:[%s359 + $0x37c] sm:$0xf]
        %v541 = vld [vmem:[#allocation5] sm:$0xff]
        %v542 = vld [vmem:[#allocation5 + $0x8] sm:$0xff]
        %v543 = vld [vmem:[#allocation5 + $0x10] sm:$0xff]
        %v544 = vld [vmem:[#allocation5 + $0x18] sm:$0xff]
        %v545 = vld [vmem:[#allocation5 + $0x20] sm:$0xff]
        %v546 = vld [vmem:[#allocation5 + $0x28] sm:$0xff]
        %v547 = vld [vmem:[#allocation5 + $0x30] sm:$0xff]
        %v548 = vld [vmem:[#allocation5 + $0x38] sm:$0xff]
        %v549 = vld [vmem:[#allocation5 + $0x40] sm:$0xff]
        %v550 = vld [vmem:[#allocation5 + $0x48] sm:$0xff]
        %v551 = vld [vmem:[#allocation5 + $0x50] sm:$0xff]
        %v552 = vld [vmem:[#allocation5 + $0x58] sm:$0xff]
        %v553 = vld [vmem:[#allocation5 + $0x60] sm:$0xff]
        %v554 = vld [vmem:[#allocation5 + $0x68] sm:$0xff]
        %v555 = vld [vmem:[#allocation5 + $0x70] sm:$0xff]
        %v556 = vld [vmem:[#allocation5 + $0x78] sm:$0xff]
        %v557 = vld [vmem:[#allocation5 + $0x80] sm:$0xff]
        %v558 = vld [vmem:[#allocation5 + $0x88] sm:$0xff]
        %v559 = vld [vmem:[#allocation5 + $0x90] sm:$0xff]
        %v560 = vld [vmem:[#allocation5 + $0x98] sm:$0xff]
        %v561 = vld [vmem:[#allocation5 + $0xa0] sm:$0xff]
        %v562 = vld [vmem:[#allocation5 + $0xa8] sm:$0xff]
        %v563 = vld [vmem:[#allocation5 + $0xb0] sm:$0xff]
        %v564 = vld [vmem:[#allocation5 + $0xb8] sm:$0xff]
        %v565 = vld [vmem:[#allocation5 + $0xc0] sm:$0xff]
        %v566 = vld [vmem:[#allocation5 + $0xc8] sm:$0xff]
        %v567 = vld [vmem:[#allocation5 + $0xd0] sm:$0xff]
        %v568 = vld [vmem:[#allocation5 + $0xd8] sm:$0xff]
        %v569 = vld [vmem:[#allocation5 + $0xe0] sm:$0xff]
        %v570 = vld [vmem:[#allocation5 + $0xe8] sm:$0xff]
        %v571 = vld [vmem:[#allocation5 + $0xf0] sm:$0xff]
        %v572 = vld [vmem:[#allocation5 + $0xf8] sm:$0xff]
        %v573 = vld [vmem:[#allocation5 + $0x100] sm:$0xff]
        %v574 = vld [vmem:[#allocation5 + $0x108] sm:$0xff]
        %v575 = vld [vmem:[#allocation5 + $0x110] sm:$0xff]
        %v576 = vld [vmem:[#allocation5 + $0x118] sm:$0xff]
        %v577 = vld [vmem:[#allocation5 + $0x120] sm:$0xff]
        %v578 = vld [vmem:[#allocation5 + $0x128] sm:$0xff]
        %v579 = vld [vmem:[#allocation5 + $0x130] sm:$0xff]
        %v580 = vld [vmem:[#allocation5 + $0x138] sm:$0xff]
        %v581 = vld [vmem:[#allocation5 + $0x140] sm:$0xff]
        %v582 = vld [vmem:[#allocation5 + $0x148] sm:$0xff]
        %v583 = vld [vmem:[#allocation5 + $0x150] sm:$0xff]
        %v584 = vld [vmem:[#allocation5 + $0x158] sm:$0xff]
        %v585 = vld [vmem:[#allocation5 + $0x160] sm:$0xff]
        %v586 = vld [vmem:[#allocation5 + $0x168] sm:$0xff]
        %v587 = vld [vmem:[#allocation5 + $0x170] sm:$0xff]
        %v588 = vld [vmem:[#allocation5 + $0x178] sm:$0xff]
        %v589 = vld [vmem:[#allocation5 + $0x180] sm:$0xff]
        %v590 = vld [vmem:[#allocation5 + $0x188] sm:$0xff]
        %v591 = vld [vmem:[#allocation5 + $0x190] sm:$0xff]
        %v592 = vld [vmem:[#allocation5 + $0x198] sm:$0xff]
        %v593 = vld [vmem:[#allocation5 + $0x1a0] sm:$0xff]
        %v594 = vld [vmem:[#allocation5 + $0x1a8] sm:$0xff]
        %v595 = vld [vmem:[#allocation5 + $0x1b0] sm:$0xff]
        %v596 = vld [vmem:[#allocation5 + $0x1b8] sm:$0xff]
        %v597 = vld [vmem:[#allocation5 + $0x1c0] sm:$0xff]
        %v598 = vld [vmem:[#allocation5 + $0x1c8] sm:$0xff]
        %v599 = vld [vmem:[#allocation5 + $0x1d0] sm:$0xff]
        %v600 = vld [vmem:[#allocation5 + $0x1d8] sm:$0xff]
        %v601 = vld [vmem:[#allocation5 + $0x1e0] sm:$0xff]
        %v602 = vld [vmem:[#allocation5 + $0x1e8] sm:$0xff]
        %v603 = vld [vmem:[#allocation5 + $0x1f0] sm:$0xff]
        %v604 = vld [vmem:[#allocation5 + $0x1f8] sm:$0xff]
        %v605 = vld [vmem:[#allocation5 + $0x200] sm:$0xff]
        %v606 = vld [vmem:[#allocation5 + $0x208] sm:$0xff]
        %v607 = vld [vmem:[#allocation5 + $0x210] sm:$0xff]
        %v608 = vld [vmem:[#allocation5 + $0x218] sm:$0xff]
        %v609 = vld [vmem:[#allocation5 + $0x220] sm:$0xff]
        %v610 = vld [vmem:[#allocation5 + $0x228] sm:$0xff]
        %v611 = vld [vmem:[#allocation5 + $0x230] sm:$0xff]
        %v612 = vld [vmem:[#allocation5 + $0x238] sm:$0xff]
        %v613 = vld [vmem:[#allocation5 + $0x240] sm:$0xff]
        %v614 = vld [vmem:[#allocation5 + $0x248] sm:$0xff]
        %v615 = vld [vmem:[#allocation5 + $0x250] sm:$0xff]
        %v616 = vld [vmem:[#allocation5 + $0x258] sm:$0xff]
        %v617 = vld [vmem:[#allocation5 + $0x260] sm:$0xff]
        %v618 = vld [vmem:[#allocation5 + $0x268] sm:$0xff]
        %v619 = vld [vmem:[#allocation5 + $0x270] sm:$0xff]
        %v620 = vld [vmem:[#allocation5 + $0x278] sm:$0xff]
        %v621 = vld [vmem:[#allocation5 + $0x280] sm:$0xff]
        %v622 = vld [vmem:[#allocation5 + $0x288] sm:$0xff]
        %v623 = vld [vmem:[#allocation5 + $0x290] sm:$0xff]
        %v624 = vld [vmem:[#allocation5 + $0x298] sm:$0xff]
        %v625 = vld [vmem:[#allocation5 + $0x2a0] sm:$0xff]
        %v626 = vld [vmem:[#allocation5 + $0x2a8] sm:$0xff]
        %v627 = vld [vmem:[#allocation5 + $0x2b0] sm:$0xff]
        %v628 = vld [vmem:[#allocation5 + $0x2b8] sm:$0xff]
        %v629 = vld [vmem:[#allocation5 + $0x2c0] sm:$0xff]
        %v630 = vld [vmem:[#allocation5 + $0x2c8] sm:$0xff]
        %v631 = vld [vmem:[#allocation5 + $0x2d0] sm:$0xff]
        %v632 = vld [vmem:[#allocation5 + $0x2d8] sm:$0xff]
        %v633 = vld [vmem:[#allocation5 + $0x2e0] sm:$0xff]
        %v634 = vld [vmem:[#allocation5 + $0x2e8] sm:$0xff]
        %v635 = vld [vmem:[#allocation5 + $0x2f0] sm:$0xff]
        %v636 = vld [vmem:[#allocation5 + $0x2f8] sm:$0xff]
        %v637 = vld [vmem:[#allocation5 + $0x300] sm:$0xff]
        %v638 = vld [vmem:[#allocation5 + $0x308] sm:$0xff]
        %v639 = vld [vmem:[#allocation5 + $0x310] sm:$0xff]
        %v640 = vld [vmem:[#allocation5 + $0x318] sm:$0xff]
        %v641 = vld [vmem:[#allocation5 + $0x320] sm:$0xff]
        %v642 = vld [vmem:[#allocation5 + $0x328] sm:$0xff]
        %v643 = vld [vmem:[#allocation5 + $0x330] sm:$0xff]
        %v644 = vld [vmem:[#allocation5 + $0x338] sm:$0xff]
        %v645 = vld [vmem:[#allocation5 + $0x340] sm:$0xff]
        %v646 = vld [vmem:[#allocation5 + $0x348] sm:$0xff]
        %v647 = vld [vmem:[#allocation5 + $0x350] sm:$0xff]
        %v648 = vld [vmem:[#allocation5 + $0x358] sm:$0xff]
        %v649 = vld [vmem:[#allocation5 + $0x360] sm:$0xff]
        %v650 = vld [vmem:[#allocation5 + $0x368] sm:$0xff]
        %v651 = vld [vmem:[#allocation5 + $0x370] sm:$0xff]
        %v652 = vld [vmem:[#allocation5 + $0x378] sm:$0xff]
        %v653 = vld [vmem:[%s2] sm:$0x3]
        %v655 = vlaneseq
        %v656 = vshrl.u32 %v655, 7
        %v657 = vsub.s32 0, %v656
        %v658 = vrot.slane %v653, %v657
        %v659 = vlaneseq
        %v660 = vshrl.u32 %v659, 7
        %v661 = vsub.s32 1, %v660
        %v662 = vrot.slane %v653, %v661
        %v793 = vunpack.c.l.b16 %v413
        %v794 = vunpack.c.h.b16 %v413
        %v795 = vunpack.c.l.b16 %v414
        %v796 = vunpack.c.h.b16 %v414
        %v797 = vunpack.c.l.b16 %v415
        %v798 = vunpack.c.h.b16 %v415
        %v799 = vunpack.c.l.b16 %v416
        %v800 = vunpack.c.l.b16 %v417
        %v801 = vunpack.c.h.b16 %v417
        %v802 = vunpack.c.l.b16 %v418
        %v803 = vunpack.c.h.b16 %v418
        %v804 = vunpack.c.l.b16 %v419
        %v805 = vunpack.c.h.b16 %v419
        %v806 = vunpack.c.l.b16 %v420
        %v807 = vunpack.c.l.b16 %v421
        %v808 = vunpack.c.h.b16 %v421
        %v809 = vunpack.c.l.b16 %v422
        %v810 = vunpack.c.h.b16 %v422
        %v811 = vunpack.c.l.b16 %v423
        %v812 = vunpack.c.h.b16 %v423
        %v813 = vunpack.c.l.b16 %v424
        %v814 = vunpack.c.l.b16 %v425
        %v815 = vunpack.c.h.b16 %v425
        %v816 = vunpack.c.l.b16 %v426
        %v817 = vunpack.c.h.b16 %v426
        %v818 = vunpack.c.l.b16 %v427
        %v819 = vunpack.c.h.b16 %v427
        %v820 = vunpack.c.l.b16 %v428
        %v821 = vunpack.c.l.b16 %v429
        %v822 = vunpack.c.h.b16 %v429
        %v823 = vunpack.c.l.b16 %v430
        %v824 = vunpack.c.h.b16 %v430
        %v825 = vunpack.c.l.b16 %v431
        %v826 = vunpack.c.h.b16 %v431
        %v827 = vunpack.c.l.b16 %v432
        %v828 = vunpack.c.l.b16 %v433
        %v829 = vunpack.c.h.b16 %v433
        %v830 = vunpack.c.l.b16 %v434
        %v831 = vunpack.c.h.b16 %v434
        %v832 = vunpack.c.l.b16 %v435
        %v833 = vunpack.c.h.b16 %v435
        %v834 = vunpack.c.l.b16 %v436
        %v835 = vunpack.c.l.b16 %v437
        %v836 = vunpack.c.h.b16 %v437
        %v837 = vunpack.c.l.b16 %v438
        %v838 = vunpack.c.h.b16 %v438
        %v839 = vunpack.c.l.b16 %v439
        %v840 = vunpack.c.h.b16 %v439
        %v841 = vunpack.c.l.b16 %v440
        %v842 = vunpack.c.l.b16 %v441
        %v843 = vunpack.c.h.b16 %v441
        %v844 = vunpack.c.l.b16 %v442
        %v845 = vunpack.c.h.b16 %v442
        %v846 = vunpack.c.l.b16 %v443
        %v847 = vunpack.c.h.b16 %v443
        %v848 = vunpack.c.l.b16 %v444
        %v849 = vunpack.c.l.b16 %v445
        %v850 = vunpack.c.h.b16 %v445
        %v851 = vunpack.c.l.b16 %v446
        %v852 = vunpack.c.h.b16 %v446
        %v853 = vunpack.c.l.b16 %v447
        %v854 = vunpack.c.h.b16 %v447
        %v855 = vunpack.c.l.b16 %v448
        %v856 = vunpack.c.l.b16 %v449
        %v857 = vunpack.c.h.b16 %v449
        %v858 = vunpack.c.l.b16 %v450
        %v859 = vunpack.c.h.b16 %v450
        %v860 = vunpack.c.l.b16 %v451
        %v861 = vunpack.c.h.b16 %v451
        %v862 = vunpack.c.l.b16 %v452
        %v863 = vunpack.c.l.b16 %v453
        %v864 = vunpack.c.h.b16 %v453
        %v865 = vunpack.c.l.b16 %v454
        %v866 = vunpack.c.h.b16 %v454
        %v867 = vunpack.c.l.b16 %v455
        %v868 = vunpack.c.h.b16 %v455
        %v869 = vunpack.c.l.b16 %v456
        %v870 = vunpack.c.l.b16 %v457
        %v871 = vunpack.c.h.b16 %v457
        %v872 = vunpack.c.l.b16 %v458
        %v873 = vunpack.c.h.b16 %v458
        %v874 = vunpack.c.l.b16 %v459
        %v875 = vunpack.c.h.b16 %v459
        %v876 = vunpack.c.l.b16 %v460
        %v877 = vunpack.c.l.b16 %v461
        %v878 = vunpack.c.h.b16 %v461
        %v879 = vunpack.c.l.b16 %v462
        %v880 = vunpack.c.h.b16 %v462
        %v881 = vunpack.c.l.b16 %v463
        %v882 = vunpack.c.h.b16 %v463
        %v883 = vunpack.c.l.b16 %v464
        %v884 = vunpack.c.l.b16 %v465
        %v885 = vunpack.c.h.b16 %v465
        %v886 = vunpack.c.l.b16 %v466
        %v887 = vunpack.c.h.b16 %v466
        %v888 = vunpack.c.l.b16 %v467
        %v889 = vunpack.c.h.b16 %v467
        %v890 = vunpack.c.l.b16 %v468
        %v891 = vunpack.c.l.b16 %v469
        %v892 = vunpack.c.h.b16 %v469
        %v893 = vunpack.c.l.b16 %v470
        %v894 = vunpack.c.h.b16 %v470
        %v895 = vunpack.c.l.b16 %v471
        %v896 = vunpack.c.h.b16 %v471
        %v897 = vunpack.c.l.b16 %v472
        %v898 = vunpack.c.l.b16 %v473
        %v899 = vunpack.c.h.b16 %v473
        %v900 = vunpack.c.l.b16 %v474
        %v901 = vunpack.c.h.b16 %v474
        %v902 = vunpack.c.l.b16 %v475
        %v903 = vunpack.c.h.b16 %v475
        %v904 = vunpack.c.l.b16 %v476
        %v905 = vunpack.c.l.b16 %v477
        %v906 = vunpack.c.h.b16 %v477
        %v907 = vunpack.c.l.b16 %v478
        %v908 = vunpack.c.h.b16 %v478
        %v909 = vunpack.c.l.b16 %v479
        %v910 = vunpack.c.h.b16 %v479
        %v911 = vunpack.c.l.b16 %v480
        %v912 = vunpack.c.l.b16 %v481
        %v913 = vunpack.c.h.b16 %v481
        %v914 = vunpack.c.l.b16 %v482
        %v915 = vunpack.c.h.b16 %v482
        %v916 = vunpack.c.l.b16 %v483
        %v917 = vunpack.c.h.b16 %v483
        %v918 = vunpack.c.l.b16 %v484
        %v919 = vunpack.c.l.b16 %v485
        %v920 = vunpack.c.h.b16 %v485
        %v921 = vunpack.c.l.b16 %v486
        %v922 = vunpack.c.h.b16 %v486
        %v923 = vunpack.c.l.b16 %v487
        %v924 = vunpack.c.h.b16 %v487
        %v925 = vunpack.c.l.b16 %v488
        %v926 = vunpack.c.l.b16 %v489
        %v927 = vunpack.c.h.b16 %v489
        %v928 = vunpack.c.l.b16 %v490
        %v929 = vunpack.c.h.b16 %v490
        %v930 = vunpack.c.l.b16 %v491
        %v931 = vunpack.c.h.b16 %v491
        %v932 = vunpack.c.l.b16 %v492
        %v933 = vunpack.c.l.b16 %v493
        %v934 = vunpack.c.h.b16 %v493
        %v935 = vunpack.c.l.b16 %v494
        %v936 = vunpack.c.h.b16 %v494
        %v937 = vunpack.c.l.b16 %v495
        %v938 = vunpack.c.h.b16 %v495
        %v939 = vunpack.c.l.b16 %v496
        %v940 = vunpack.c.l.b16 %v497
        %v941 = vunpack.c.h.b16 %v497
        %v942 = vunpack.c.l.b16 %v498
        %v943 = vunpack.c.h.b16 %v498
        %v944 = vunpack.c.l.b16 %v499
        %v945 = vunpack.c.h.b16 %v499
        %v946 = vunpack.c.l.b16 %v500
        %v947 = vunpack.c.l.b16 %v501
        %v948 = vunpack.c.h.b16 %v501
        %v949 = vunpack.c.l.b16 %v502
        %v950 = vunpack.c.h.b16 %v502
        %v951 = vunpack.c.l.b16 %v503
        %v952 = vunpack.c.h.b16 %v503
        %v953 = vunpack.c.l.b16 %v504
        %v954 = vunpack.c.l.b16 %v505
        %v955 = vunpack.c.h.b16 %v505
        %v956 = vunpack.c.l.b16 %v506
        %v957 = vunpack.c.h.b16 %v506
        %v958 = vunpack.c.l.b16 %v507
        %v959 = vunpack.c.h.b16 %v507
        %v960 = vunpack.c.l.b16 %v508
        %v961 = vunpack.c.l.b16 %v509
        %v962 = vunpack.c.h.b16 %v509
        %v963 = vunpack.c.l.b16 %v510
        %v964 = vunpack.c.h.b16 %v510
        %v965 = vunpack.c.l.b16 %v511
        %v966 = vunpack.c.h.b16 %v511
        %v967 = vunpack.c.l.b16 %v512
        %v968 = vunpack.c.l.b16 %v513
        %v969 = vunpack.c.h.b16 %v513
        %v970 = vunpack.c.l.b16 %v514
        %v971 = vunpack.c.h.b16 %v514
        %v972 = vunpack.c.l.b16 %v515
        %v973 = vunpack.c.h.b16 %v515
        %v974 = vunpack.c.l.b16 %v516
        %v975 = vunpack.c.l.b16 %v517
        %v976 = vunpack.c.h.b16 %v517
        %v977 = vunpack.c.l.b16 %v518
        %v978 = vunpack.c.h.b16 %v518
        %v979 = vunpack.c.l.b16 %v519
        %v980 = vunpack.c.h.b16 %v519
        %v981 = vunpack.c.l.b16 %v520
        %v982 = vunpack.c.l.b16 %v521
        %v983 = vunpack.c.h.b16 %v521
        %v984 = vunpack.c.l.b16 %v522
        %v985 = vunpack.c.h.b16 %v522
        %v986 = vunpack.c.l.b16 %v523
        %v987 = vunpack.c.h.b16 %v523
        %v988 = vunpack.c.l.b16 %v524
        %v989 = vunpack.c.l.b16 %v525
        %v990 = vunpack.c.h.b16 %v525
        %v991 = vunpack.c.l.b16 %v526
        %v992 = vunpack.c.h.b16 %v526
        %v993 = vunpack.c.l.b16 %v527
        %v994 = vunpack.c.h.b16 %v527
        %v995 = vunpack.c.l.b16 %v528
        %v996 = vunpack.c.l.b16 %v529
        %v997 = vunpack.c.h.b16 %v529
        %v998 = vunpack.c.l.b16 %v530
        %v999 = vunpack.c.h.b16 %v530
        %v1000 = vunpack.c.l.b16 %v531
        %v1001 = vunpack.c.h.b16 %v531
        %v1002 = vunpack.c.l.b16 %v532
        %v1003 = vunpack.c.l.b16 %v533
        %v1004 = vunpack.c.h.b16 %v533
        %v1005 = vunpack.c.l.b16 %v534
        %v1006 = vunpack.c.h.b16 %v534
        %v1007 = vunpack.c.l.b16 %v535
        %v1008 = vunpack.c.h.b16 %v535
        %v1009 = vunpack.c.l.b16 %v536
        %v1010 = vunpack.c.l.b16 %v537
        %v1011 = vunpack.c.h.b16 %v537
        %v1012 = vunpack.c.l.b16 %v538
        %v1013 = vunpack.c.h.b16 %v538
        %v1014 = vunpack.c.l.b16 %v539
        %v1015 = vunpack.c.h.b16 %v539
        %v1016 = vunpack.c.l.b16 %v540
        %v1017 = vpack.c.b16 %v800, %v793
        %v1018 = vpack.c.b16 %v801, %v794
        %v1019 = vpack.c.b16 %v802, %v795
        %v1020 = vpack.c.b16 %v803, %v796
        %v1021 = vpack.c.b16 %v804, %v797
        %v1022 = vpack.c.b16 %v805, %v798
        %v1023 = vpack.c.b16 %v806, %v799
        %v1024 = vpack.c.b16 %v814, %v807
        %v1025 = vpack.c.b16 %v815, %v808
        %v1026 = vpack.c.b16 %v816, %v809
        %v1027 = vpack.c.b16 %v817, %v810
        %v1028 = vpack.c.b16 %v818, %v811
        %v1029 = vpack.c.b16 %v819, %v812
        %v1030 = vpack.c.b16 %v820, %v813
        %v1031 = vpack.c.b16 %v828, %v821
        %v1032 = vpack.c.b16 %v829, %v822
        %v1033 = vpack.c.b16 %v830, %v823
        %v1034 = vpack.c.b16 %v831, %v824
        %v1035 = vpack.c.b16 %v832, %v825
        %v1036 = vpack.c.b16 %v833, %v826
        %v1037 = vpack.c.b16 %v834, %v827
        %v1038 = vpack.c.b16 %v842, %v835
        %v1039 = vpack.c.b16 %v843, %v836
        %v1040 = vpack.c.b16 %v844, %v837
        %v1041 = vpack.c.b16 %v845, %v838
        %v1042 = vpack.c.b16 %v846, %v839
        %v1043 = vpack.c.b16 %v847, %v840
        %v1044 = vpack.c.b16 %v848, %v841
        %v1045 = vpack.c.b16 %v856, %v849
        %v1046 = vpack.c.b16 %v857, %v850
        %v1047 = vpack.c.b16 %v858, %v851
        %v1048 = vpack.c.b16 %v859, %v852
        %v1049 = vpack.c.b16 %v860, %v853
        %v1050 = vpack.c.b16 %v861, %v854
        %v1051 = vpack.c.b16 %v862, %v855
        %v1052 = vpack.c.b16 %v870, %v863
        %v1053 = vpack.c.b16 %v871, %v864
        %v1054 = vpack.c.b16 %v872, %v865
        %v1055 = vpack.c.b16 %v873, %v866
        %v1056 = vpack.c.b16 %v874, %v867
        %v1057 = vpack.c.b16 %v875, %v868
        %v1058 = vpack.c.b16 %v876, %v869
        %v1059 = vpack.c.b16 %v884, %v877
        %v1060 = vpack.c.b16 %v885, %v878
        %v1061 = vpack.c.b16 %v886, %v879
        %v1062 = vpack.c.b16 %v887, %v880
        %v1063 = vpack.c.b16 %v888, %v881
        %v1064 = vpack.c.b16 %v889, %v882
        %v1065 = vpack.c.b16 %v890, %v883
        %v1066 = vpack.c.b16 %v898, %v891
        %v1067 = vpack.c.b16 %v899, %v892
        %v1068 = vpack.c.b16 %v900, %v893
        %v1069 = vpack.c.b16 %v901, %v894
        %v1070 = vpack.c.b16 %v902, %v895
        %v1071 = vpack.c.b16 %v903, %v896
        %v1072 = vpack.c.b16 %v904, %v897
        %v1073 = vpack.c.b16 %v912, %v905
        %v1074 = vpack.c.b16 %v913, %v906
        %v1075 = vpack.c.b16 %v914, %v907
        %v1076 = vpack.c.b16 %v915, %v908
        %v1077 = vpack.c.b16 %v916, %v909
        %v1078 = vpack.c.b16 %v917, %v910
        %v1079 = vpack.c.b16 %v918, %v911
        %v1080 = vpack.c.b16 %v926, %v919
        %v1081 = vpack.c.b16 %v927, %v920
        %v1082 = vpack.c.b16 %v928, %v921
        %v1083 = vpack.c.b16 %v929, %v922
        %v1084 = vpack.c.b16 %v930, %v923
        %v1085 = vpack.c.b16 %v931, %v924
        %v1086 = vpack.c.b16 %v932, %v925
        %v1087 = vpack.c.b16 %v940, %v933
        %v1088 = vpack.c.b16 %v941, %v934
        %v1089 = vpack.c.b16 %v942, %v935
        %v1090 = vpack.c.b16 %v943, %v936
        %v1091 = vpack.c.b16 %v944, %v937
        %v1092 = vpack.c.b16 %v945, %v938
        %v1093 = vpack.c.b16 %v946, %v939
        %v1094 = vpack.c.b16 %v954, %v947
        %v1095 = vpack.c.b16 %v955, %v948
        %v1096 = vpack.c.b16 %v956, %v949
        %v1097 = vpack.c.b16 %v957, %v950
        %v1098 = vpack.c.b16 %v958, %v951
        %v1099 = vpack.c.b16 %v959, %v952
        %v1100 = vpack.c.b16 %v960, %v953
        %v1101 = vpack.c.b16 %v968, %v961
        %v1102 = vpack.c.b16 %v969, %v962
        %v1103 = vpack.c.b16 %v970, %v963
        %v1104 = vpack.c.b16 %v971, %v964
        %v1105 = vpack.c.b16 %v972, %v965
        %v1106 = vpack.c.b16 %v973, %v966
        %v1107 = vpack.c.b16 %v974, %v967
        %v1108 = vpack.c.b16 %v982, %v975
        %v1109 = vpack.c.b16 %v983, %v976
        %v1110 = vpack.c.b16 %v984, %v977
        %v1111 = vpack.c.b16 %v985, %v978
        %v1112 = vpack.c.b16 %v986, %v979
        %v1113 = vpack.c.b16 %v987, %v980
        %v1114 = vpack.c.b16 %v988, %v981
        %v1115 = vpack.c.b16 %v996, %v989
        %v1116 = vpack.c.b16 %v997, %v990
        %v1117 = vpack.c.b16 %v998, %v991
        %v1118 = vpack.c.b16 %v999, %v992
        %v1119 = vpack.c.b16 %v1000, %v993
        %v1120 = vpack.c.b16 %v1001, %v994
        %v1121 = vpack.c.b16 %v1002, %v995
        %v1122 = vpack.c.b16 %v1010, %v1003
        %v1123 = vpack.c.b16 %v1011, %v1004
        %v1124 = vpack.c.b16 %v1012, %v1005
        %v1125 = vpack.c.b16 %v1013, %v1006
        %v1126 = vpack.c.b16 %v1014, %v1007
        %v1127 = vpack.c.b16 %v1015, %v1008
        %v1128 = vpack.c.b16 %v1016, %v1009
        %v1353 = vunpack.c.l.b16 %v541
        %v1354 = vunpack.c.h.b16 %v541
        %v1355 = vunpack.c.l.b16 %v542
        %v1356 = vunpack.c.h.b16 %v542
        %v1357 = vunpack.c.l.b16 %v543
        %v1358 = vunpack.c.h.b16 %v543
        %v1359 = vunpack.c.l.b16 %v544
        %v1360 = vunpack.c.h.b16 %v544
        %v1361 = vunpack.c.l.b16 %v545
        %v1362 = vunpack.c.h.b16 %v545
        %v1363 = vunpack.c.l.b16 %v546
        %v1364 = vunpack.c.h.b16 %v546
        %v1365 = vunpack.c.l.b16 %v547
        %v1366 = vunpack.c.h.b16 %v547
        %v1367 = vunpack.c.l.b16 %v548
        %v1368 = vunpack.c.h.b16 %v548
        %v1369 = vunpack.c.l.b16 %v549
        %v1370 = vunpack.c.h.b16 %v549
        %v1371 = vunpack.c.l.b16 %v550
        %v1372 = vunpack.c.h.b16 %v550
        %v1373 = vunpack.c.l.b16 %v551
        %v1374 = vunpack.c.h.b16 %v551
        %v1375 = vunpack.c.l.b16 %v552
        %v1376 = vunpack.c.h.b16 %v552
        %v1377 = vunpack.c.l.b16 %v553
        %v1378 = vunpack.c.h.b16 %v553
        %v1379 = vunpack.c.l.b16 %v554
        %v1380 = vunpack.c.h.b16 %v554
        %v1381 = vunpack.c.l.b16 %v555
        %v1382 = vunpack.c.h.b16 %v555
        %v1383 = vunpack.c.l.b16 %v556
        %v1384 = vunpack.c.h.b16 %v556
        %v1385 = vunpack.c.l.b16 %v557
        %v1386 = vunpack.c.h.b16 %v557
        %v1387 = vunpack.c.l.b16 %v558
        %v1388 = vunpack.c.h.b16 %v558
        %v1389 = vunpack.c.l.b16 %v559
        %v1390 = vunpack.c.h.b16 %v559
        %v1391 = vunpack.c.l.b16 %v560
        %v1392 = vunpack.c.h.b16 %v560
        %v1393 = vunpack.c.l.b16 %v561
        %v1394 = vunpack.c.h.b16 %v561
        %v1395 = vunpack.c.l.b16 %v562
        %v1396 = vunpack.c.h.b16 %v562
        %v1397 = vunpack.c.l.b16 %v563
        %v1398 = vunpack.c.h.b16 %v563
        %v1399 = vunpack.c.l.b16 %v564
        %v1400 = vunpack.c.h.b16 %v564
        %v1401 = vunpack.c.l.b16 %v565
        %v1402 = vunpack.c.h.b16 %v565
        %v1403 = vunpack.c.l.b16 %v566
        %v1404 = vunpack.c.h.b16 %v566
        %v1405 = vunpack.c.l.b16 %v567
        %v1406 = vunpack.c.h.b16 %v567
        %v1407 = vunpack.c.l.b16 %v568
        %v1408 = vunpack.c.h.b16 %v568
        %v1409 = vunpack.c.l.b16 %v569
        %v1410 = vunpack.c.h.b16 %v569
        %v1411 = vunpack.c.l.b16 %v570
        %v1412 = vunpack.c.h.b16 %v570
        %v1413 = vunpack.c.l.b16 %v571
        %v1414 = vunpack.c.h.b16 %v571
        %v1415 = vunpack.c.l.b16 %v572
        %v1416 = vunpack.c.h.b16 %v572
        %v1417 = vunpack.c.l.b16 %v573
        %v1418 = vunpack.c.h.b16 %v573
        %v1419 = vunpack.c.l.b16 %v574
        %v1420 = vunpack.c.h.b16 %v574
        %v1421 = vunpack.c.l.b16 %v575
        %v1422 = vunpack.c.h.b16 %v575
        %v1423 = vunpack.c.l.b16 %v576
        %v1424 = vunpack.c.h.b16 %v576
        %v1425 = vunpack.c.l.b16 %v577
        %v1426 = vunpack.c.h.b16 %v577
        %v1427 = vunpack.c.l.b16 %v578
        %v1428 = vunpack.c.h.b16 %v578
        %v1429 = vunpack.c.l.b16 %v579
        %v1430 = vunpack.c.h.b16 %v579
        %v1431 = vunpack.c.l.b16 %v580
        %v1432 = vunpack.c.h.b16 %v580
        %v1433 = vunpack.c.l.b16 %v581
        %v1434 = vunpack.c.h.b16 %v581
        %v1435 = vunpack.c.l.b16 %v582
        %v1436 = vunpack.c.h.b16 %v582
        %v1437 = vunpack.c.l.b16 %v583
        %v1438 = vunpack.c.h.b16 %v583
        %v1439 = vunpack.c.l.b16 %v584
        %v1440 = vunpack.c.h.b16 %v584
        %v1441 = vunpack.c.l.b16 %v585
        %v1442 = vunpack.c.h.b16 %v585
        %v1443 = vunpack.c.l.b16 %v586
        %v1444 = vunpack.c.h.b16 %v586
        %v1445 = vunpack.c.l.b16 %v587
        %v1446 = vunpack.c.h.b16 %v587
        %v1447 = vunpack.c.l.b16 %v588
        %v1448 = vunpack.c.h.b16 %v588
        %v1449 = vunpack.c.l.b16 %v589
        %v1450 = vunpack.c.h.b16 %v589
        %v1451 = vunpack.c.l.b16 %v590
        %v1452 = vunpack.c.h.b16 %v590
        %v1453 = vunpack.c.l.b16 %v591
        %v1454 = vunpack.c.h.b16 %v591
        %v1455 = vunpack.c.l.b16 %v592
        %v1456 = vunpack.c.h.b16 %v592
        %v1457 = vunpack.c.l.b16 %v593
        %v1458 = vunpack.c.h.b16 %v593
        %v1459 = vunpack.c.l.b16 %v594
        %v1460 = vunpack.c.h.b16 %v594
        %v1461 = vunpack.c.l.b16 %v595
        %v1462 = vunpack.c.h.b16 %v595
        %v1463 = vunpack.c.l.b16 %v596
        %v1464 = vunpack.c.h.b16 %v596
        %v1465 = vunpack.c.l.b16 %v597
        %v1466 = vunpack.c.h.b16 %v597
        %v1467 = vunpack.c.l.b16 %v598
        %v1468 = vunpack.c.h.b16 %v598
        %v1469 = vunpack.c.l.b16 %v599
        %v1470 = vunpack.c.h.b16 %v599
        %v1471 = vunpack.c.l.b16 %v600
        %v1472 = vunpack.c.h.b16 %v600
        %v1473 = vunpack.c.l.b16 %v601
        %v1474 = vunpack.c.h.b16 %v601
        %v1475 = vunpack.c.l.b16 %v602
        %v1476 = vunpack.c.h.b16 %v602
        %v1477 = vunpack.c.l.b16 %v603
        %v1478 = vunpack.c.h.b16 %v603
        %v1479 = vunpack.c.l.b16 %v604
        %v1480 = vunpack.c.h.b16 %v604
        %v1481 = vunpack.c.l.b16 %v605
        %v1482 = vunpack.c.h.b16 %v605
        %v1483 = vunpack.c.l.b16 %v606
        %v1484 = vunpack.c.h.b16 %v606
        %v1485 = vunpack.c.l.b16 %v607
        %v1486 = vunpack.c.h.b16 %v607
        %v1487 = vunpack.c.l.b16 %v608
        %v1488 = vunpack.c.h.b16 %v608
        %v1489 = vunpack.c.l.b16 %v609
        %v1490 = vunpack.c.h.b16 %v609
        %v1491 = vunpack.c.l.b16 %v610
        %v1492 = vunpack.c.h.b16 %v610
        %v1493 = vunpack.c.l.b16 %v611
        %v1494 = vunpack.c.h.b16 %v611
        %v1495 = vunpack.c.l.b16 %v612
        %v1496 = vunpack.c.h.b16 %v612
        %v1497 = vunpack.c.l.b16 %v613
        %v1498 = vunpack.c.h.b16 %v613
        %v1499 = vunpack.c.l.b16 %v614
        %v1500 = vunpack.c.h.b16 %v614
        %v1501 = vunpack.c.l.b16 %v615
        %v1502 = vunpack.c.h.b16 %v615
        %v1503 = vunpack.c.l.b16 %v616
        %v1504 = vunpack.c.h.b16 %v616
        %v1505 = vunpack.c.l.b16 %v617
        %v1506 = vunpack.c.h.b16 %v617
        %v1507 = vunpack.c.l.b16 %v618
        %v1508 = vunpack.c.h.b16 %v618
        %v1509 = vunpack.c.l.b16 %v619
        %v1510 = vunpack.c.h.b16 %v619
        %v1511 = vunpack.c.l.b16 %v620
        %v1512 = vunpack.c.h.b16 %v620
        %v1513 = vunpack.c.l.b16 %v621
        %v1514 = vunpack.c.h.b16 %v621
        %v1515 = vunpack.c.l.b16 %v622
        %v1516 = vunpack.c.h.b16 %v622
        %v1517 = vunpack.c.l.b16 %v623
        %v1518 = vunpack.c.h.b16 %v623
        %v1519 = vunpack.c.l.b16 %v624
        %v1520 = vunpack.c.h.b16 %v624
        %v1521 = vunpack.c.l.b16 %v625
        %v1522 = vunpack.c.h.b16 %v625
        %v1523 = vunpack.c.l.b16 %v626
        %v1524 = vunpack.c.h.b16 %v626
        %v1525 = vunpack.c.l.b16 %v627
        %v1526 = vunpack.c.h.b16 %v627
        %v1527 = vunpack.c.l.b16 %v628
        %v1528 = vunpack.c.h.b16 %v628
        %v1529 = vunpack.c.l.b16 %v629
        %v1530 = vunpack.c.h.b16 %v629
        %v1531 = vunpack.c.l.b16 %v630
        %v1532 = vunpack.c.h.b16 %v630
        %v1533 = vunpack.c.l.b16 %v631
        %v1534 = vunpack.c.h.b16 %v631
        %v1535 = vunpack.c.l.b16 %v632
        %v1536 = vunpack.c.h.b16 %v632
        %v1537 = vunpack.c.l.b16 %v633
        %v1538 = vunpack.c.h.b16 %v633
        %v1539 = vunpack.c.l.b16 %v634
        %v1540 = vunpack.c.h.b16 %v634
        %v1541 = vunpack.c.l.b16 %v635
        %v1542 = vunpack.c.h.b16 %v635
        %v1543 = vunpack.c.l.b16 %v636
        %v1544 = vunpack.c.h.b16 %v636
        %v1545 = vunpack.c.l.b16 %v637
        %v1546 = vunpack.c.h.b16 %v637
        %v1547 = vunpack.c.l.b16 %v638
        %v1548 = vunpack.c.h.b16 %v638
        %v1549 = vunpack.c.l.b16 %v639
        %v1550 = vunpack.c.h.b16 %v639
        %v1551 = vunpack.c.l.b16 %v640
        %v1552 = vunpack.c.h.b16 %v640
        %v1553 = vunpack.c.l.b16 %v641
        %v1554 = vunpack.c.h.b16 %v641
        %v1555 = vunpack.c.l.b16 %v642
        %v1556 = vunpack.c.h.b16 %v642
        %v1557 = vunpack.c.l.b16 %v643
        %v1558 = vunpack.c.h.b16 %v643
        %v1559 = vunpack.c.l.b16 %v644
        %v1560 = vunpack.c.h.b16 %v644
        %v1561 = vunpack.c.l.b16 %v645
        %v1562 = vunpack.c.h.b16 %v645
        %v1563 = vunpack.c.l.b16 %v646
        %v1564 = vunpack.c.h.b16 %v646
        %v1565 = vunpack.c.l.b16 %v647
        %v1566 = vunpack.c.h.b16 %v647
        %v1567 = vunpack.c.l.b16 %v648
        %v1568 = vunpack.c.h.b16 %v648
        %v1569 = vunpack.c.l.b16 %v649
        %v1570 = vunpack.c.h.b16 %v649
        %v1571 = vunpack.c.l.b16 %v650
        %v1572 = vunpack.c.h.b16 %v650
        %v1573 = vunpack.c.l.b16 %v651
        %v1574 = vunpack.c.h.b16 %v651
        %v1575 = vunpack.c.l.b16 %v652
        %v1576 = vunpack.c.h.b16 %v652
        %v1577 = vpack.c.b16 %v1355, %v1353
        %v1578 = vpack.c.b16 %v1356, %v1354
        %v1579 = vpack.c.b16 %v1359, %v1357
        %v1580 = vpack.c.b16 %v1360, %v1358
        %v1581 = vpack.c.b16 %v1363, %v1361
        %v1582 = vpack.c.b16 %v1364, %v1362
        %v1583 = vpack.c.b16 %v1367, %v1365
        %v1584 = vpack.c.b16 %v1368, %v1366
        %v1585 = vpack.c.b16 %v1371, %v1369
        %v1586 = vpack.c.b16 %v1372, %v1370
        %v1587 = vpack.c.b16 %v1375, %v1373
        %v1588 = vpack.c.b16 %v1376, %v1374
        %v1589 = vpack.c.b16 %v1379, %v1377
        %v1590 = vpack.c.b16 %v1380, %v1378
        %v1591 = vpack.c.b16 %v1383, %v1381
        %v1592 = vpack.c.b16 %v1384, %v1382
        %v1593 = vpack.c.b16 %v1387, %v1385
        %v1594 = vpack.c.b16 %v1388, %v1386
        %v1595 = vpack.c.b16 %v1391, %v1389
        %v1596 = vpack.c.b16 %v1392, %v1390
        %v1597 = vpack.c.b16 %v1395, %v1393
        %v1598 = vpack.c.b16 %v1396, %v1394
        %v1599 = vpack.c.b16 %v1399, %v1397
        %v1600 = vpack.c.b16 %v1400, %v1398
        %v1601 = vpack.c.b16 %v1403, %v1401
        %v1602 = vpack.c.b16 %v1404, %v1402
        %v1603 = vpack.c.b16 %v1407, %v1405
        %v1604 = vpack.c.b16 %v1408, %v1406
        %v1605 = vpack.c.b16 %v1411, %v1409
        %v1606 = vpack.c.b16 %v1412, %v1410
        %v1607 = vpack.c.b16 %v1415, %v1413
        %v1608 = vpack.c.b16 %v1416, %v1414
        %v1609 = vpack.c.b16 %v1419, %v1417
        %v1610 = vpack.c.b16 %v1420, %v1418
        %v1611 = vpack.c.b16 %v1423, %v1421
        %v1612 = vpack.c.b16 %v1424, %v1422
        %v1613 = vpack.c.b16 %v1427, %v1425
        %v1614 = vpack.c.b16 %v1428, %v1426
        %v1615 = vpack.c.b16 %v1431, %v1429
        %v1616 = vpack.c.b16 %v1432, %v1430
        %v1617 = vpack.c.b16 %v1435, %v1433
        %v1618 = vpack.c.b16 %v1436, %v1434
        %v1619 = vpack.c.b16 %v1439, %v1437
        %v1620 = vpack.c.b16 %v1440, %v1438
        %v1621 = vpack.c.b16 %v1443, %v1441
        %v1622 = vpack.c.b16 %v1444, %v1442
        %v1623 = vpack.c.b16 %v1447, %v1445
        %v1624 = vpack.c.b16 %v1448, %v1446
        %v1625 = vpack.c.b16 %v1451, %v1449
        %v1626 = vpack.c.b16 %v1452, %v1450
        %v1627 = vpack.c.b16 %v1455, %v1453
        %v1628 = vpack.c.b16 %v1456, %v1454
        %v1629 = vpack.c.b16 %v1459, %v1457
        %v1630 = vpack.c.b16 %v1460, %v1458
        %v1631 = vpack.c.b16 %v1463, %v1461
        %v1632 = vpack.c.b16 %v1464, %v1462
        %v1633 = vpack.c.b16 %v1467, %v1465
        %v1634 = vpack.c.b16 %v1468, %v1466
        %v1635 = vpack.c.b16 %v1471, %v1469
        %v1636 = vpack.c.b16 %v1472, %v1470
        %v1637 = vpack.c.b16 %v1475, %v1473
        %v1638 = vpack.c.b16 %v1476, %v1474
        %v1639 = vpack.c.b16 %v1479, %v1477
        %v1640 = vpack.c.b16 %v1480, %v1478
        %v1641 = vpack.c.b16 %v1483, %v1481
        %v1642 = vpack.c.b16 %v1484, %v1482
        %v1643 = vpack.c.b16 %v1487, %v1485
        %v1644 = vpack.c.b16 %v1488, %v1486
        %v1645 = vpack.c.b16 %v1491, %v1489
        %v1646 = vpack.c.b16 %v1492, %v1490
        %v1647 = vpack.c.b16 %v1495, %v1493
        %v1648 = vpack.c.b16 %v1496, %v1494
        %v1649 = vpack.c.b16 %v1499, %v1497
        %v1650 = vpack.c.b16 %v1500, %v1498
        %v1651 = vpack.c.b16 %v1503, %v1501
        %v1652 = vpack.c.b16 %v1504, %v1502
        %v1653 = vpack.c.b16 %v1507, %v1505
        %v1654 = vpack.c.b16 %v1508, %v1506
        %v1655 = vpack.c.b16 %v1511, %v1509
        %v1656 = vpack.c.b16 %v1512, %v1510
        %v1657 = vpack.c.b16 %v1515, %v1513
        %v1658 = vpack.c.b16 %v1516, %v1514
        %v1659 = vpack.c.b16 %v1519, %v1517
        %v1660 = vpack.c.b16 %v1520, %v1518
        %v1661 = vpack.c.b16 %v1523, %v1521
        %v1662 = vpack.c.b16 %v1524, %v1522
        %v1663 = vpack.c.b16 %v1527, %v1525
        %v1664 = vpack.c.b16 %v1528, %v1526
        %v1665 = vpack.c.b16 %v1531, %v1529
        %v1666 = vpack.c.b16 %v1532, %v1530
        %v1667 = vpack.c.b16 %v1535, %v1533
        %v1668 = vpack.c.b16 %v1536, %v1534
        %v1669 = vpack.c.b16 %v1539, %v1537
        %v1670 = vpack.c.b16 %v1540, %v1538
        %v1671 = vpack.c.b16 %v1543, %v1541
        %v1672 = vpack.c.b16 %v1544, %v1542
        %v1673 = vpack.c.b16 %v1547, %v1545
        %v1674 = vpack.c.b16 %v1548, %v1546
        %v1675 = vpack.c.b16 %v1551, %v1549
        %v1676 = vpack.c.b16 %v1552, %v1550
        %v1677 = vpack.c.b16 %v1555, %v1553
        %v1678 = vpack.c.b16 %v1556, %v1554
        %v1679 = vpack.c.b16 %v1559, %v1557
        %v1680 = vpack.c.b16 %v1560, %v1558
        %v1681 = vpack.c.b16 %v1563, %v1561
        %v1682 = vpack.c.b16 %v1564, %v1562
        %v1683 = vpack.c.b16 %v1567, %v1565
        %v1684 = vpack.c.b16 %v1568, %v1566
        %v1685 = vpack.c.b16 %v1571, %v1569
        %v1686 = vpack.c.b16 %v1572, %v1570
        %v1687 = vpack.c.b16 %v1575, %v1573
        %v1688 = vpack.c.b16 %v1576, %v1574
        %1801 = vmatprep.subr.bf16.mxu0 %v1578
        %1802 = vmatpush1.bf16.msra.mxu0 %v1577
        %1803 = vmatprep.subr.bf16.mxu0 %v1580
        %1804 = vmatpush1.bf16.msra.mxu0 %v1579
        %1805 = vmatprep.subr.bf16.mxu0 %v1582
        %1806 = vmatpush1.bf16.msra.mxu0 %v1581
        %1807 = vmatprep.subr.bf16.mxu0 %v1584
        %1808 = vmatpush1.bf16.msra.mxu0 %v1583
        %1809 = vmatprep.subr.bf16.mxu0 %v1586
        %1810 = vmatpush1.bf16.msra.mxu0 %v1585
        %1811 = vmatprep.subr.bf16.mxu0 %v1588
        %1812 = vmatpush1.bf16.msra.mxu0 %v1587
        %1813 = vmatprep.subr.bf16.mxu0 %v1590
        %1814 = vmatpush1.bf16.msra.mxu0 %v1589
        %1815 = vmatprep.subr.bf16.mxu0 %v1592
        %1816 = vmatpush1.bf16.msra.mxu0 %v1591
        %1817 = vmatprep.subr.bf16.mxu0 %v1594
        %1818 = vmatpush1.bf16.msra.mxu0 %v1593
        %1819 = vmatprep.subr.bf16.mxu0 %v1596
        %1820 = vmatpush1.bf16.msra.mxu0 %v1595
        %1821 = vmatprep.subr.bf16.mxu0 %v1598
        %1822 = vmatpush1.bf16.msra.mxu0 %v1597
        %1823 = vmatprep.subr.bf16.mxu0 %v1600
        %1824 = vmatpush1.bf16.msra.mxu0 %v1599
        %1825 = vmatprep.subr.bf16.mxu0 %v1602
        %1826 = vmatpush1.bf16.msra.mxu0 %v1601
        %1827 = vmatprep.subr.bf16.mxu0 %v1604
        %1828 = vmatpush1.bf16.msra.mxu0 %v1603
        %1829 = vmatprep.subr.bf16.mxu0 %v1606
        %1830 = vmatpush1.bf16.msra.mxu0 %v1605
        %1831 = vmatprep.subr.bf16.mxu0 %v1608
        %1832 = vmatpush1.bf16.msra.mxu0 %v1607
        %1833 = vmatprep.mubr.bf16.mxu0 %v1018
        %1834 = vmatmul.mubr.bf16.gmra.mrb[0].mxu0 %v1017
        %v1835 = vpop.f32.mrb[0].mxu0
        %v1836 = vadd.f32 %v658, %v1835
        %v1837 = vpop.f32.mrb[0].mxu0
        %v1838 = vadd.f32 %v662, %v1837
        %v1839 = vpop.f32.mrb[0].mxu0
        %v1840 = vadd.f32 %v658, %v1839
        %v1841 = vpop.f32.mrb[0].mxu0
        %v1842 = vadd.f32 %v662, %v1841
        %1843 = vmatprep.mubr.bf16.mxu0 %v1025
        %1844 = vmatmul.mubr.bf16.gmra.mrb[0].mxu0 %v1024
        %v1845 = vpop.f32.mrb[0].mxu0
        %v1846 = vadd.f32 %v658, %v1845
        %v1847 = vpop.f32.mrb[0].mxu0
        %v1848 = vadd.f32 %v662, %v1847
        %v1849 = vpop.f32.mrb[0].mxu0
        %v1850 = vadd.f32 %v658, %v1849
        %v1851 = vpop.f32.mrb[0].mxu0
        %v1852 = vadd.f32 %v662, %v1851
        %1853 = vmatprep.mubr.bf16.mxu0 %v1032
        %1854 = vmatmul.mubr.bf16.gmra.mrb[0].mxu0 %v1031
        %v1855 = vpop.f32.mrb[0].mxu0
        %v1856 = vadd.f32 %v658, %v1855
        %v1857 = vpop.f32.mrb[0].mxu0
        %v1858 = vadd.f32 %v662, %v1857
        %v1859 = vpop.f32.mrb[0].mxu0
        %v1860 = vadd.f32 %v658, %v1859
        %v1861 = vpop.f32.mrb[0].mxu0
        %v1862 = vadd.f32 %v662, %v1861
        %1863 = vmatprep.mubr.bf16.mxu0 %v1039
        %1864 = vmatmul.mubr.bf16.gmra.mrb[0].mxu0 %v1038
        %v1865 = vpop.f32.mrb[0].mxu0
        %v1866 = vadd.f32 %v658, %v1865
        %v1867 = vpop.f32.mrb[0].mxu0
        %v1868 = vadd.f32 %v662, %v1867
        %v1869 = vpop.f32.mrb[0].mxu0
        %v1870 = vadd.f32 %v658, %v1869
        %v1871 = vpop.f32.mrb[0].mxu0
        %v1872 = vadd.f32 %v662, %v1871
        %1873 = vmatprep.mubr.bf16.mxu0 %v1046
        %1874 = vmatmul.mubr.bf16.gmra.mrb[0].mxu0 %v1045
        %v1875 = vpop.f32.mrb[0].mxu0
        %v1876 = vadd.f32 %v658, %v1875
        %v1877 = vpop.f32.mrb[0].mxu0
        %v1878 = vadd.f32 %v662, %v1877
        %v1879 = vpop.f32.mrb[0].mxu0
        %v1880 = vadd.f32 %v658, %v1879
        %v1881 = vpop.f32.mrb[0].mxu0
        %v1882 = vadd.f32 %v662, %v1881
        %1883 = vmatprep.mubr.bf16.mxu0 %v1053
        %1884 = vmatmul.mubr.bf16.gmra.mrb[0].mxu0 %v1052
        %v1885 = vpop.f32.mrb[0].mxu0
        %v1886 = vadd.f32 %v658, %v1885
        %v1887 = vpop.f32.mrb[0].mxu0
        %v1888 = vadd.f32 %v662, %v1887
        %v1889 = vpop.f32.mrb[0].mxu0
        %v1890 = vadd.f32 %v658, %v1889
        %v1891 = vpop.f32.mrb[0].mxu0
        %v1892 = vadd.f32 %v662, %v1891
        %1893 = vmatprep.mubr.bf16.mxu0 %v1060
        %1894 = vmatmul.mubr.bf16.gmra.mrb[0].mxu0 %v1059
        %v1895 = vpop.f32.mrb[0].mxu0
        %v1896 = vadd.f32 %v658, %v1895
        %v1897 = vpop.f32.mrb[0].mxu0
        %v1898 = vadd.f32 %v662, %v1897
        %v1899 = vpop.f32.mrb[0].mxu0
        %v1900 = vadd.f32 %v658, %v1899
        %v1901 = vpop.f32.mrb[0].mxu0
        %v1902 = vadd.f32 %v662, %v1901
        %1903 = vmatprep.mubr.bf16.mxu0 %v1067
        %1904 = vmatmul.mubr.bf16.gmra.mrb[0].mxu0 %v1066
        %v1905 = vpop.f32.mrb[0].mxu0
        %v1906 = vadd.f32 %v658, %v1905
        %v1907 = vpop.f32.mrb[0].mxu0
        %v1908 = vadd.f32 %v662, %v1907
        %v1909 = vpop.f32.mrb[0].mxu0
        %v1910 = vadd.f32 %v658, %v1909
        %v1911 = vpop.f32.mrb[0].mxu0
        %v1912 = vadd.f32 %v662, %v1911
        %1913 = vmatprep.mubr.bf16.mxu0 %v1074
        %1914 = vmatmul.mubr.bf16.gmra.mrb[0].mxu0 %v1073
        %v1915 = vpop.f32.mrb[0].mxu0
        %v1916 = vadd.f32 %v658, %v1915
        %v1917 = vpop.f32.mrb[0].mxu0
        %v1918 = vadd.f32 %v662, %v1917
        %v1919 = vpop.f32.mrb[0].mxu0
        %v1920 = vadd.f32 %v658, %v1919
        %v1921 = vpop.f32.mrb[0].mxu0
        %v1922 = vadd.f32 %v662, %v1921
        %1923 = vmatprep.mubr.bf16.mxu0 %v1081
        %1924 = vmatmul.mubr.bf16.gmra.mrb[0].mxu0 %v1080
        %v1925 = vpop.f32.mrb[0].mxu0
        %v1926 = vadd.f32 %v658, %v1925
        %v1927 = vpop.f32.mrb[0].mxu0
        %v1928 = vadd.f32 %v662, %v1927
        %v1929 = vpop.f32.mrb[0].mxu0
        %v1930 = vadd.f32 %v658, %v1929
        %v1931 = vpop.f32.mrb[0].mxu0
        %v1932 = vadd.f32 %v662, %v1931
        %1933 = vmatprep.mubr.bf16.mxu0 %v1088
        %1934 = vmatmul.mubr.bf16.gmra.mrb[0].mxu0 %v1087
        %v1935 = vpop.f32.mrb[0].mxu0
        %v1936 = vadd.f32 %v658, %v1935
        %v1937 = vpop.f32.mrb[0].mxu0
        %v1938 = vadd.f32 %v662, %v1937
        %v1939 = vpop.f32.mrb[0].mxu0
        %v1940 = vadd.f32 %v658, %v1939
        %v1941 = vpop.f32.mrb[0].mxu0
        %v1942 = vadd.f32 %v662, %v1941
        %1943 = vmatprep.mubr.bf16.mxu0 %v1095
        %1944 = vmatmul.mubr.bf16.gmra.mrb[0].mxu0 %v1094
        %v1945 = vpop.f32.mrb[0].mxu0
        %v1946 = vadd.f32 %v658, %v1945
        %v1947 = vpop.f32.mrb[0].mxu0
        %v1948 = vadd.f32 %v662, %v1947
        %v1949 = vpop.f32.mrb[0].mxu0
        %v1950 = vadd.f32 %v658, %v1949
        %v1951 = vpop.f32.mrb[0].mxu0
        %v1952 = vadd.f32 %v662, %v1951
        %1953 = vmatprep.mubr.bf16.mxu0 %v1102
        %1954 = vmatmul.mubr.bf16.gmra.mrb[0].mxu0 %v1101
        %v1955 = vpop.f32.mrb[0].mxu0
        %v1956 = vadd.f32 %v658, %v1955
        %v1957 = vpop.f32.mrb[0].mxu0
        %v1958 = vadd.f32 %v662, %v1957
        %v1959 = vpop.f32.mrb[0].mxu0
        %v1960 = vadd.f32 %v658, %v1959
        %v1961 = vpop.f32.mrb[0].mxu0
        %v1962 = vadd.f32 %v662, %v1961
        %1963 = vmatprep.mubr.bf16.mxu0 %v1109
        %1964 = vmatmul.mubr.bf16.gmra.mrb[0].mxu0 %v1108
        %v1965 = vpop.f32.mrb[0].mxu0
        %v1966 = vadd.f32 %v658, %v1965
        %v1967 = vpop.f32.mrb[0].mxu0
        %v1968 = vadd.f32 %v662, %v1967
        %v1969 = vpop.f32.mrb[0].mxu0
        %v1970 = vadd.f32 %v658, %v1969
        %v1971 = vpop.f32.mrb[0].mxu0
        %v1972 = vadd.f32 %v662, %v1971
        %1973 = vmatprep.mubr.bf16.mxu0 %v1116
        %1974 = vmatmul.mubr.bf16.gmra.mrb[0].mxu0 %v1115
        %v1975 = vpop.f32.mrb[0].mxu0
        %v1976 = vadd.f32 %v658, %v1975
        %v1977 = vpop.f32.mrb[0].mxu0
        %v1978 = vadd.f32 %v662, %v1977
        %v1979 = vpop.f32.mrb[0].mxu0
        %v1980 = vadd.f32 %v658, %v1979
        %v1981 = vpop.f32.mrb[0].mxu0
        %v1982 = vadd.f32 %v662, %v1981
        %1983 = vmatprep.mubr.bf16.mxu0 %v1123
        %1984 = vmatmul.mubr.bf16.gmra.mrb[0].mxu0 %v1122
        %v1985 = vpop.f32.mrb[0].mxu0
        %v1986 = vadd.f32 %v658, %v1985
        %v1987 = vpop.f32.mrb[0].mxu0
        %v1988 = vadd.f32 %v662, %v1987
        %v1989 = vpop.f32.mrb[0].mxu0
        %v1990 = vadd.f32 %v658, %v1989
        %v1991 = vpop.f32.mrb[0].mxu0
        %v1992 = vadd.f32 %v662, %v1991
        %1993 = vdwg.mxu0
        %1994 = vmatprep.subr.bf16.mxu0 %v1610
        %1995 = vmatpush1.bf16.msra.mxu0 %v1609
        %1996 = vmatprep.subr.bf16.mxu0 %v1612
        %1997 = vmatpush1.bf16.msra.mxu0 %v1611
        %1998 = vmatprep.subr.bf16.mxu0 %v1614
        %1999 = vmatpush1.bf16.msra.mxu0 %v1613
        %2000 = vmatprep.subr.bf16.mxu0 %v1616
        %2001 = vmatpush1.bf16.msra.mxu0 %v1615
        %2002 = vmatprep.subr.bf16.mxu0 %v1618
        %2003 = vmatpush1.bf16.msra.mxu0 %v1617
        %2004 = vmatprep.subr.bf16.mxu0 %v1620
        %2005 = vmatpush1.bf16.msra.mxu0 %v1619
        %2006 = vmatprep.subr.bf16.mxu0 %v1622
        %2007 = vmatpush1.bf16.msra.mxu0 %v1621
        %2008 = vmatprep.subr.bf16.mxu0 %v1624
        %2009 = vmatpush1.bf16.msra.mxu0 %v1623
        %2010 = vmatprep.subr.bf16.mxu0 %v1626
        %2011 = vmatpush1.bf16.msra.mxu0 %v1625
        %2012 = vmatprep.subr.bf16.mxu0 %v1628
        %2013 = vmatpush1.bf16.msra.mxu0 %v1627
        %2014 = vmatprep.subr.bf16.mxu0 %v1630
        %2015 = vmatpush1.bf16.msra.mxu0 %v1629
        %2016 = vmatprep.subr.bf16.mxu0 %v1632
        %2017 = vmatpush1.bf16.msra.mxu0 %v1631
        %2018 = vmatprep.subr.bf16.mxu0 %v1634
        %2019 = vmatpush1.bf16.msra.mxu0 %v1633
        %2020 = vmatprep.subr.bf16.mxu0 %v1636
        %2021 = vmatpush1.bf16.msra.mxu0 %v1635
        %2022 = vmatprep.subr.bf16.mxu0 %v1638
        %2023 = vmatpush1.bf16.msra.mxu0 %v1637
        %2024 = vmatprep.subr.bf16.mxu0 %v1640
        %2025 = vmatpush1.bf16.msra.mxu0 %v1639
        %2026 = vmatprep.mubr.bf16.mxu0 %v1020
        %2027 = vmatmul.mubr.bf16.gmra.mrb[0].mxu0 %v1019
        %v2028 = vpop.f32.mrb[0].mxu0
        %v2029 = vadd.f32 %v1836, %v2028
        %v2030 = vpop.f32.mrb[0].mxu0
        %v2031 = vadd.f32 %v1838, %v2030
        %v2032 = vpop.f32.mrb[0].mxu0
        %v2033 = vadd.f32 %v1840, %v2032
        %v2034 = vpop.f32.mrb[0].mxu0
        %v2035 = vadd.f32 %v1842, %v2034
        %2036 = vmatprep.mubr.bf16.mxu0 %v1027
        %2037 = vmatmul.mubr.bf16.gmra.mrb[0].mxu0 %v1026
        %v2038 = vpop.f32.mrb[0].mxu0
        %v2039 = vadd.f32 %v1846, %v2038
        %v2040 = vpop.f32.mrb[0].mxu0
        %v2041 = vadd.f32 %v1848, %v2040
        %v2042 = vpop.f32.mrb[0].mxu0
        %v2043 = vadd.f32 %v1850, %v2042
        %v2044 = vpop.f32.mrb[0].mxu0
        %v2045 = vadd.f32 %v1852, %v2044
        %2046 = vmatprep.mubr.bf16.mxu0 %v1034
        %2047 = vmatmul.mubr.bf16.gmra.mrb[0].mxu0 %v1033
        %v2048 = vpop.f32.mrb[0].mxu0
        %v2049 = vadd.f32 %v1856, %v2048
        %v2050 = vpop.f32.mrb[0].mxu0
        %v2051 = vadd.f32 %v1858, %v2050
        %v2052 = vpop.f32.mrb[0].mxu0
        %v2053 = vadd.f32 %v1860, %v2052
        %v2054 = vpop.f32.mrb[0].mxu0
        %v2055 = vadd.f32 %v1862, %v2054
        %2056 = vmatprep.mubr.bf16.mxu0 %v1041
        %2057 = vmatmul.mubr.bf16.gmra.mrb[0].mxu0 %v1040
        %v2058 = vpop.f32.mrb[0].mxu0
        %v2059 = vadd.f32 %v1866, %v2058
        %v2060 = vpop.f32.mrb[0].mxu0
        %v2061 = vadd.f32 %v1868, %v2060
        %v2062 = vpop.f32.mrb[0].mxu0
        %v2063 = vadd.f32 %v1870, %v2062
        %v2064 = vpop.f32.mrb[0].mxu0
        %v2065 = vadd.f32 %v1872, %v2064
        %2066 = vmatprep.mubr.bf16.mxu0 %v1048
        %2067 = vmatmul.mubr.bf16.gmra.mrb[0].mxu0 %v1047
        %v2068 = vpop.f32.mrb[0].mxu0
        %v2069 = vadd.f32 %v1876, %v2068
        %v2070 = vpop.f32.mrb[0].mxu0
        %v2071 = vadd.f32 %v1878, %v2070
        %v2072 = vpop.f32.mrb[0].mxu0
        %v2073 = vadd.f32 %v1880, %v2072
        %v2074 = vpop.f32.mrb[0].mxu0
        %v2075 = vadd.f32 %v1882, %v2074
        %2076 = vmatprep.mubr.bf16.mxu0 %v1055
        %2077 = vmatmul.mubr.bf16.gmra.mrb[0].mxu0 %v1054
        %v2078 = vpop.f32.mrb[0].mxu0
        %v2079 = vadd.f32 %v1886, %v2078
        %v2080 = vpop.f32.mrb[0].mxu0
        %v2081 = vadd.f32 %v1888, %v2080
        %v2082 = vpop.f32.mrb[0].mxu0
        %v2083 = vadd.f32 %v1890, %v2082
        %v2084 = vpop.f32.mrb[0].mxu0
        %v2085 = vadd.f32 %v1892, %v2084
        %2086 = vmatprep.mubr.bf16.mxu0 %v1062
        %2087 = vmatmul.mubr.bf16.gmra.mrb[0].mxu0 %v1061
        %v2088 = vpop.f32.mrb[0].mxu0
        %v2089 = vadd.f32 %v1896, %v2088
        %v2090 = vpop.f32.mrb[0].mxu0
        %v2091 = vadd.f32 %v1898, %v2090
        %v2092 = vpop.f32.mrb[0].mxu0
        %v2093 = vadd.f32 %v1900, %v2092
        %v2094 = vpop.f32.mrb[0].mxu0
        %v2095 = vadd.f32 %v1902, %v2094
        %2096 = vmatprep.mubr.bf16.mxu0 %v1069
        %2097 = vmatmul.mubr.bf16.gmra.mrb[0].mxu0 %v1068
        %v2098 = vpop.f32.mrb[0].mxu0
        %v2099 = vadd.f32 %v1906, %v2098
        %v2100 = vpop.f32.mrb[0].mxu0
        %v2101 = vadd.f32 %v1908, %v2100
        %v2102 = vpop.f32.mrb[0].mxu0
        %v2103 = vadd.f32 %v1910, %v2102
        %v2104 = vpop.f32.mrb[0].mxu0
        %v2105 = vadd.f32 %v1912, %v2104
        %2106 = vmatprep.mubr.bf16.mxu0 %v1076
        %2107 = vmatmul.mubr.bf16.gmra.mrb[0].mxu0 %v1075
        %v2108 = vpop.f32.mrb[0].mxu0
        %v2109 = vadd.f32 %v1916, %v2108
        %v2110 = vpop.f32.mrb[0].mxu0
        %v2111 = vadd.f32 %v1918, %v2110
        %v2112 = vpop.f32.mrb[0].mxu0
        %v2113 = vadd.f32 %v1920, %v2112
        %v2114 = vpop.f32.mrb[0].mxu0
        %v2115 = vadd.f32 %v1922, %v2114
        %2116 = vmatprep.mubr.bf16.mxu0 %v1083
        %2117 = vmatmul.mubr.bf16.gmra.mrb[0].mxu0 %v1082
        %v2118 = vpop.f32.mrb[0].mxu0
        %v2119 = vadd.f32 %v1926, %v2118
        %v2120 = vpop.f32.mrb[0].mxu0
        %v2121 = vadd.f32 %v1928, %v2120
        %v2122 = vpop.f32.mrb[0].mxu0
        %v2123 = vadd.f32 %v1930, %v2122
        %v2124 = vpop.f32.mrb[0].mxu0
        %v2125 = vadd.f32 %v1932, %v2124
        %2126 = vmatprep.mubr.bf16.mxu0 %v1090
        %2127 = vmatmul.mubr.bf16.gmra.mrb[0].mxu0 %v1089
        %v2128 = vpop.f32.mrb[0].mxu0
        %v2129 = vadd.f32 %v1936, %v2128
        %v2130 = vpop.f32.mrb[0].mxu0
        %v2131 = vadd.f32 %v1938, %v2130
        %v2132 = vpop.f32.mrb[0].mxu0
        %v2133 = vadd.f32 %v1940, %v2132
        %v2134 = vpop.f32.mrb[0].mxu0
        %v2135 = vadd.f32 %v1942, %v2134
        %2136 = vmatprep.mubr.bf16.mxu0 %v1097
        %2137 = vmatmul.mubr.bf16.gmra.mrb[0].mxu0 %v1096
        %v2138 = vpop.f32.mrb[0].mxu0
        %v2139 = vadd.f32 %v1946, %v2138
        %v2140 = vpop.f32.mrb[0].mxu0
        %v2141 = vadd.f32 %v1948, %v2140
        %v2142 = vpop.f32.mrb[0].mxu0
        %v2143 = vadd.f32 %v1950, %v2142
        %v2144 = vpop.f32.mrb[0].mxu0
        %v2145 = vadd.f32 %v1952, %v2144
        %2146 = vmatprep.mubr.bf16.mxu0 %v1104
        %2147 = vmatmul.mubr.bf16.gmra.mrb[0].mxu0 %v1103
        %v2148 = vpop.f32.mrb[0].mxu0
        %v2149 = vadd.f32 %v1956, %v2148
        %v2150 = vpop.f32.mrb[0].mxu0
        %v2151 = vadd.f32 %v1958, %v2150
        %v2152 = vpop.f32.mrb[0].mxu0
        %v2153 = vadd.f32 %v1960, %v2152
        %v2154 = vpop.f32.mrb[0].mxu0
        %v2155 = vadd.f32 %v1962, %v2154
        %2156 = vmatprep.mubr.bf16.mxu0 %v1111
        %2157 = vmatmul.mubr.bf16.gmra.mrb[0].mxu0 %v1110
        %v2158 = vpop.f32.mrb[0].mxu0
        %v2159 = vadd.f32 %v1966, %v2158
        %v2160 = vpop.f32.mrb[0].mxu0
        %v2161 = vadd.f32 %v1968, %v2160
        %v2162 = vpop.f32.mrb[0].mxu0
        %v2163 = vadd.f32 %v1970, %v2162
        %v2164 = vpop.f32.mrb[0].mxu0
        %v2165 = vadd.f32 %v1972, %v2164
        %2166 = vmatprep.mubr.bf16.mxu0 %v1118
        %2167 = vmatmul.mubr.bf16.gmra.mrb[0].mxu0 %v1117
        %v2168 = vpop.f32.mrb[0].mxu0
        %v2169 = vadd.f32 %v1976, %v2168
        %v2170 = vpop.f32.mrb[0].mxu0
        %v2171 = vadd.f32 %v1978, %v2170
        %v2172 = vpop.f32.mrb[0].mxu0
        %v2173 = vadd.f32 %v1980, %v2172
        %v2174 = vpop.f32.mrb[0].mxu0
        %v2175 = vadd.f32 %v1982, %v2174
        %2176 = vmatprep.mubr.bf16.mxu0 %v1125
        %2177 = vmatmul.mubr.bf16.gmra.mrb[0].mxu0 %v1124
        %v2178 = vpop.f32.mrb[0].mxu0
        %v2179 = vadd.f32 %v1986, %v2178
        %v2180 = vpop.f32.mrb[0].mxu0
        %v2181 = vadd.f32 %v1988, %v2180
        %v2182 = vpop.f32.mrb[0].mxu0
        %v2183 = vadd.f32 %v1990, %v2182
        %v2184 = vpop.f32.mrb[0].mxu0
        %v2185 = vadd.f32 %v1992, %v2184
        %2186 = vdwg.mxu0
        %2187 = vmatprep.subr.bf16.mxu0 %v1642
        %2188 = vmatpush1.bf16.msra.mxu0 %v1641
        %2189 = vmatprep.subr.bf16.mxu0 %v1644
        %2190 = vmatpush1.bf16.msra.mxu0 %v1643
        %2191 = vmatprep.subr.bf16.mxu0 %v1646
        %2192 = vmatpush1.bf16.msra.mxu0 %v1645
        %2193 = vmatprep.subr.bf16.mxu0 %v1648
        %2194 = vmatpush1.bf16.msra.mxu0 %v1647
        %2195 = vmatprep.subr.bf16.mxu0 %v1650
        %2196 = vmatpush1.bf16.msra.mxu0 %v1649
        %2197 = vmatprep.subr.bf16.mxu0 %v1652
        %2198 = vmatpush1.bf16.msra.mxu0 %v1651
        %2199 = vmatprep.subr.bf16.mxu0 %v1654
        %2200 = vmatpush1.bf16.msra.mxu0 %v1653
        %2201 = vmatprep.subr.bf16.mxu0 %v1656
        %2202 = vmatpush1.bf16.msra.mxu0 %v1655
        %2203 = vmatprep.subr.bf16.mxu0 %v1658
        %2204 = vmatpush1.bf16.msra.mxu0 %v1657
        %2205 = vmatprep.subr.bf16.mxu0 %v1660
        %2206 = vmatpush1.bf16.msra.mxu0 %v1659
        %2207 = vmatprep.subr.bf16.mxu0 %v1662
        %2208 = vmatpush1.bf16.msra.mxu0 %v1661
        %2209 = vmatprep.subr.bf16.mxu0 %v1664
        %2210 = vmatpush1.bf16.msra.mxu0 %v1663
        %2211 = vmatprep.subr.bf16.mxu0 %v1666
        %2212 = vmatpush1.bf16.msra.mxu0 %v1665
        %2213 = vmatprep.subr.bf16.mxu0 %v1668
        %2214 = vmatpush1.bf16.msra.mxu0 %v1667
        %2215 = vmatprep.subr.bf16.mxu0 %v1670
        %2216 = vmatpush1.bf16.msra.mxu0 %v1669
        %2217 = vmatprep.subr.bf16.mxu0 %v1672
        %2218 = vmatpush1.bf16.msra.mxu0 %v1671
        %2219 = vmatprep.mubr.bf16.mxu0 %v1022
        %2220 = vmatmul.mubr.bf16.gmra.mrb[0].mxu0 %v1021
        %v2221 = vpop.f32.mrb[0].mxu0
        %v2222 = vadd.f32 %v2029, %v2221
        %v2223 = vpop.f32.mrb[0].mxu0
        %v2224 = vadd.f32 %v2031, %v2223
        %v2225 = vpop.f32.mrb[0].mxu0
        %v2226 = vadd.f32 %v2033, %v2225
        %v2227 = vpop.f32.mrb[0].mxu0
        %v2228 = vadd.f32 %v2035, %v2227
        %2229 = vmatprep.mubr.bf16.mxu0 %v1029
        %2230 = vmatmul.mubr.bf16.gmra.mrb[0].mxu0 %v1028
        %v2231 = vpop.f32.mrb[0].mxu0
        %v2232 = vadd.f32 %v2039, %v2231
        %v2233 = vpop.f32.mrb[0].mxu0
        %v2234 = vadd.f32 %v2041, %v2233
        %v2235 = vpop.f32.mrb[0].mxu0
        %v2236 = vadd.f32 %v2043, %v2235
        %v2237 = vpop.f32.mrb[0].mxu0
        %v2238 = vadd.f32 %v2045, %v2237
        %2239 = vmatprep.mubr.bf16.mxu0 %v1036
        %2240 = vmatmul.mubr.bf16.gmra.mrb[0].mxu0 %v1035
        %v2241 = vpop.f32.mrb[0].mxu0
        %v2242 = vadd.f32 %v2049, %v2241
        %v2243 = vpop.f32.mrb[0].mxu0
        %v2244 = vadd.f32 %v2051, %v2243
        %v2245 = vpop.f32.mrb[0].mxu0
        %v2246 = vadd.f32 %v2053, %v2245
        %v2247 = vpop.f32.mrb[0].mxu0
        %v2248 = vadd.f32 %v2055, %v2247
        %2249 = vmatprep.mubr.bf16.mxu0 %v1043
        %2250 = vmatmul.mubr.bf16.gmra.mrb[0].mxu0 %v1042
        %v2251 = vpop.f32.mrb[0].mxu0
        %v2252 = vadd.f32 %v2059, %v2251
        %v2253 = vpop.f32.mrb[0].mxu0
        %v2254 = vadd.f32 %v2061, %v2253
        %v2255 = vpop.f32.mrb[0].mxu0
        %v2256 = vadd.f32 %v2063, %v2255
        %v2257 = vpop.f32.mrb[0].mxu0
        %v2258 = vadd.f32 %v2065, %v2257
        %2259 = vmatprep.mubr.bf16.mxu0 %v1050
        %2260 = vmatmul.mubr.bf16.gmra.mrb[0].mxu0 %v1049
        %v2261 = vpop.f32.mrb[0].mxu0
        %v2262 = vadd.f32 %v2069, %v2261
        %v2263 = vpop.f32.mrb[0].mxu0
        %v2264 = vadd.f32 %v2071, %v2263
        %v2265 = vpop.f32.mrb[0].mxu0
        %v2266 = vadd.f32 %v2073, %v2265
        %v2267 = vpop.f32.mrb[0].mxu0
        %v2268 = vadd.f32 %v2075, %v2267
        %2269 = vmatprep.mubr.bf16.mxu0 %v1057
        %2270 = vmatmul.mubr.bf16.gmra.mrb[0].mxu0 %v1056
        %v2271 = vpop.f32.mrb[0].mxu0
        %v2272 = vadd.f32 %v2079, %v2271
        %v2273 = vpop.f32.mrb[0].mxu0
        %v2274 = vadd.f32 %v2081, %v2273
        %v2275 = vpop.f32.mrb[0].mxu0
        %v2276 = vadd.f32 %v2083, %v2275
        %v2277 = vpop.f32.mrb[0].mxu0
        %v2278 = vadd.f32 %v2085, %v2277
        %2279 = vmatprep.mubr.bf16.mxu0 %v1064
        %2280 = vmatmul.mubr.bf16.gmra.mrb[0].mxu0 %v1063
        %v2281 = vpop.f32.mrb[0].mxu0
        %v2282 = vadd.f32 %v2089, %v2281
        %v2283 = vpop.f32.mrb[0].mxu0
        %v2284 = vadd.f32 %v2091, %v2283
        %v2285 = vpop.f32.mrb[0].mxu0
        %v2286 = vadd.f32 %v2093, %v2285
        %v2287 = vpop.f32.mrb[0].mxu0
        %v2288 = vadd.f32 %v2095, %v2287
        %2289 = vmatprep.mubr.bf16.mxu0 %v1071
        %2290 = vmatmul.mubr.bf16.gmra.mrb[0].mxu0 %v1070
        %v2291 = vpop.f32.mrb[0].mxu0
        %v2292 = vadd.f32 %v2099, %v2291
        %v2293 = vpop.f32.mrb[0].mxu0
        %v2294 = vadd.f32 %v2101, %v2293
        %v2295 = vpop.f32.mrb[0].mxu0
        %v2296 = vadd.f32 %v2103, %v2295
        %v2297 = vpop.f32.mrb[0].mxu0
        %v2298 = vadd.f32 %v2105, %v2297
        %2299 = vmatprep.mubr.bf16.mxu0 %v1078
        %2300 = vmatmul.mubr.bf16.gmra.mrb[0].mxu0 %v1077
        %v2301 = vpop.f32.mrb[0].mxu0
        %v2302 = vadd.f32 %v2109, %v2301
        %v2303 = vpop.f32.mrb[0].mxu0
        %v2304 = vadd.f32 %v2111, %v2303
        %v2305 = vpop.f32.mrb[0].mxu0
        %v2306 = vadd.f32 %v2113, %v2305
        %v2307 = vpop.f32.mrb[0].mxu0
        %v2308 = vadd.f32 %v2115, %v2307
        %2309 = vmatprep.mubr.bf16.mxu0 %v1085
        %2310 = vmatmul.mubr.bf16.gmra.mrb[0].mxu0 %v1084
        %v2311 = vpop.f32.mrb[0].mxu0
        %v2312 = vadd.f32 %v2119, %v2311
        %v2313 = vpop.f32.mrb[0].mxu0
        %v2314 = vadd.f32 %v2121, %v2313
        %v2315 = vpop.f32.mrb[0].mxu0
        %v2316 = vadd.f32 %v2123, %v2315
        %v2317 = vpop.f32.mrb[0].mxu0
        %v2318 = vadd.f32 %v2125, %v2317
        %2319 = vmatprep.mubr.bf16.mxu0 %v1092
        %2320 = vmatmul.mubr.bf16.gmra.mrb[0].mxu0 %v1091
        %v2321 = vpop.f32.mrb[0].mxu0
        %v2322 = vadd.f32 %v2129, %v2321
        %v2323 = vpop.f32.mrb[0].mxu0
        %v2324 = vadd.f32 %v2131, %v2323
        %v2325 = vpop.f32.mrb[0].mxu0
        %v2326 = vadd.f32 %v2133, %v2325
        %v2327 = vpop.f32.mrb[0].mxu0
        %v2328 = vadd.f32 %v2135, %v2327
        %2329 = vmatprep.mubr.bf16.mxu0 %v1099
        %2330 = vmatmul.mubr.bf16.gmra.mrb[0].mxu0 %v1098
        %v2331 = vpop.f32.mrb[0].mxu0
        %v2332 = vadd.f32 %v2139, %v2331
        %v2333 = vpop.f32.mrb[0].mxu0
        %v2334 = vadd.f32 %v2141, %v2333
        %v2335 = vpop.f32.mrb[0].mxu0
        %v2336 = vadd.f32 %v2143, %v2335
        %v2337 = vpop.f32.mrb[0].mxu0
        %v2338 = vadd.f32 %v2145, %v2337
        %2339 = vmatprep.mubr.bf16.mxu0 %v1106
        %2340 = vmatmul.mubr.bf16.gmra.mrb[0].mxu0 %v1105
        %v2341 = vpop.f32.mrb[0].mxu0
        %v2342 = vadd.f32 %v2149, %v2341
        %v2343 = vpop.f32.mrb[0].mxu0
        %v2344 = vadd.f32 %v2151, %v2343
        %v2345 = vpop.f32.mrb[0].mxu0
        %v2346 = vadd.f32 %v2153, %v2345
        %v2347 = vpop.f32.mrb[0].mxu0
        %v2348 = vadd.f32 %v2155, %v2347
        %2349 = vmatprep.mubr.bf16.mxu0 %v1113
        %2350 = vmatmul.mubr.bf16.gmra.mrb[0].mxu0 %v1112
        %v2351 = vpop.f32.mrb[0].mxu0
        %v2352 = vadd.f32 %v2159, %v2351
        %v2353 = vpop.f32.mrb[0].mxu0
        %v2354 = vadd.f32 %v2161, %v2353
        %v2355 = vpop.f32.mrb[0].mxu0
        %v2356 = vadd.f32 %v2163, %v2355
        %v2357 = vpop.f32.mrb[0].mxu0
        %v2358 = vadd.f32 %v2165, %v2357
        %2359 = vmatprep.mubr.bf16.mxu0 %v1120
        %2360 = vmatmul.mubr.bf16.gmra.mrb[0].mxu0 %v1119
        %v2361 = vpop.f32.mrb[0].mxu0
        %v2362 = vadd.f32 %v2169, %v2361
        %v2363 = vpop.f32.mrb[0].mxu0
        %v2364 = vadd.f32 %v2171, %v2363
        %v2365 = vpop.f32.mrb[0].mxu0
        %v2366 = vadd.f32 %v2173, %v2365
        %v2367 = vpop.f32.mrb[0].mxu0
        %v2368 = vadd.f32 %v2175, %v2367
        %2369 = vmatprep.mubr.bf16.mxu0 %v1127
        %2370 = vmatmul.mubr.bf16.gmra.mrb[0].mxu0 %v1126
        %v2371 = vpop.f32.mrb[0].mxu0
        %v2372 = vadd.f32 %v2179, %v2371
        %v2373 = vpop.f32.mrb[0].mxu0
        %v2374 = vadd.f32 %v2181, %v2373
        %v2375 = vpop.f32.mrb[0].mxu0
        %v2376 = vadd.f32 %v2183, %v2375
        %v2377 = vpop.f32.mrb[0].mxu0
        %v2378 = vadd.f32 %v2185, %v2377
        %2379 = vdwg.mxu0
        %2380 = vmatprep.subr.bf16.mxu0 %v1674
        %2381 = vmatpush1.bf16.msra.mxu0 %v1673
        %2382 = vmatprep.subr.bf16.mxu0 %v1676
        %2383 = vmatpush1.bf16.msra.mxu0 %v1675
        %2384 = vmatprep.subr.bf16.mxu0 %v1678
        %2385 = vmatpush1.bf16.msra.mxu0 %v1677
        %2386 = vmatprep.subr.bf16.mxu0 %v1680
        %2387 = vmatpush1.bf16.msra.mxu0 %v1679
        %2388 = vmatprep.subr.bf16.mxu0 %v1682
        %2389 = vmatpush1.bf16.msra.mxu0 %v1681
        %2390 = vmatprep.subr.bf16.mxu0 %v1684
        %2391 = vmatpush1.bf16.msra.mxu0 %v1683
        %2392 = vmatprep.subr.bf16.mxu0 %v1686
        %2393 = vmatpush1.bf16.msra.mxu0 %v1685
        %2394 = vmatprep.subr.bf16.mxu0 %v1688
        %2395 = vmatpush1.bf16.msra.mxu0 %v1687
        %2396 = vmatprep.subr.bf16.mxu0 0
        %2397 = vmatpush1.bf16.msra.mxu0 0
        %2398 = vmatprep.subr.bf16.mxu0 0
        %2399 = vmatpush1.bf16.msra.mxu0 0
        %2400 = vmatprep.subr.bf16.mxu0 0
        %2401 = vmatpush1.bf16.msra.mxu0 0
        %2402 = vmatprep.subr.bf16.mxu0 0
        %2403 = vmatpush1.bf16.msra.mxu0 0
        %2404 = vmatprep.subr.bf16.mxu0 0
        %2405 = vmatpush1.bf16.msra.mxu0 0
        %2406 = vmatprep.subr.bf16.mxu0 0
        %2407 = vmatpush1.bf16.msra.mxu0 0
        %2408 = vmatprep.subr.bf16.mxu0 0
        %2409 = vmatpush1.bf16.msra.mxu0 0
        %2410 = vmatprep.subr.bf16.mxu0 0
        %2411 = vmatpush1.bf16.msra.mxu0 0
        %2412 = vmatprep.mubr.bf16.mxu0 0
        %2413 = vmatmul.mubr.bf16.gmra.mrb[0].mxu0 %v1023
        %v2414 = vpop.f32.mrb[0].mxu0
        %v2415 = vadd.f32 %v2222, %v2414
        %v2416 = vpop.f32.mrb[0].mxu0
        %v2417 = vadd.f32 %v2224, %v2416
        %v2418 = vpop.f32.mrb[0].mxu0
        %v2419 = vadd.f32 %v2226, %v2418
        %v2420 = vpop.f32.mrb[0].mxu0
        %v2421 = vadd.f32 %v2228, %v2420
        %2422 = vmatprep.mubr.bf16.mxu0 0
        %2423 = vmatmul.mubr.bf16.gmra.mrb[0].mxu0 %v1030
        %v2424 = vpop.f32.mrb[0].mxu0
        %v2425 = vadd.f32 %v2232, %v2424
        %v2426 = vpop.f32.mrb[0].mxu0
        %v2427 = vadd.f32 %v2234, %v2426
        %v2428 = vpop.f32.mrb[0].mxu0
        %v2429 = vadd.f32 %v2236, %v2428
        %v2430 = vpop.f32.mrb[0].mxu0
        %v2431 = vadd.f32 %v2238, %v2430
        %2432 = vmatprep.mubr.bf16.mxu0 0
        %2433 = vmatmul.mubr.bf16.gmra.mrb[0].mxu0 %v1037
        %v2434 = vpop.f32.mrb[0].mxu0
        %v2435 = vadd.f32 %v2242, %v2434
        %v2436 = vpop.f32.mrb[0].mxu0
        %v2437 = vadd.f32 %v2244, %v2436
        %v2438 = vpop.f32.mrb[0].mxu0
        %v2439 = vadd.f32 %v2246, %v2438
        %v2440 = vpop.f32.mrb[0].mxu0
        %v2441 = vadd.f32 %v2248, %v2440
        %2442 = vmatprep.mubr.bf16.mxu0 0
        %2443 = vmatmul.mubr.bf16.gmra.mrb[0].mxu0 %v1044
        %v2444 = vpop.f32.mrb[0].mxu0
        %v2445 = vadd.f32 %v2252, %v2444
        %v2446 = vpop.f32.mrb[0].mxu0
        %v2447 = vadd.f32 %v2254, %v2446
        %v2448 = vpop.f32.mrb[0].mxu0
        %v2449 = vadd.f32 %v2256, %v2448
        %v2450 = vpop.f32.mrb[0].mxu0
        %v2451 = vadd.f32 %v2258, %v2450
        %2452 = vmatprep.mubr.bf16.mxu0 0
        %2453 = vmatmul.mubr.bf16.gmra.mrb[0].mxu0 %v1051
        %v2454 = vpop.f32.mrb[0].mxu0
        %v2455 = vadd.f32 %v2262, %v2454
        %v2456 = vpop.f32.mrb[0].mxu0
        %v2457 = vadd.f32 %v2264, %v2456
        %v2458 = vpop.f32.mrb[0].mxu0
        %v2459 = vadd.f32 %v2266, %v2458
        %v2460 = vpop.f32.mrb[0].mxu0
        %v2461 = vadd.f32 %v2268, %v2460
        %2462 = vmatprep.mubr.bf16.mxu0 0
        %2463 = vmatmul.mubr.bf16.gmra.mrb[0].mxu0 %v1058
        %v2464 = vpop.f32.mrb[0].mxu0
        %v2465 = vadd.f32 %v2272, %v2464
        %v2466 = vpop.f32.mrb[0].mxu0
        %v2467 = vadd.f32 %v2274, %v2466
        %v2468 = vpop.f32.mrb[0].mxu0
        %v2469 = vadd.f32 %v2276, %v2468
        %v2470 = vpop.f32.mrb[0].mxu0
        %v2471 = vadd.f32 %v2278, %v2470
        %2472 = vmatprep.mubr.bf16.mxu0 0
        %2473 = vmatmul.mubr.bf16.gmra.mrb[0].mxu0 %v1065
        %v2474 = vpop.f32.mrb[0].mxu0
        %v2475 = vadd.f32 %v2282, %v2474
        %v2476 = vpop.f32.mrb[0].mxu0
        %v2477 = vadd.f32 %v2284, %v2476
        %v2478 = vpop.f32.mrb[0].mxu0
        %v2479 = vadd.f32 %v2286, %v2478
        %v2480 = vpop.f32.mrb[0].mxu0
        %v2481 = vadd.f32 %v2288, %v2480
        %2482 = vmatprep.mubr.bf16.mxu0 0
        %2483 = vmatmul.mubr.bf16.gmra.mrb[0].mxu0 %v1072
        %v2484 = vpop.f32.mrb[0].mxu0
        %v2485 = vadd.f32 %v2292, %v2484
        %v2486 = vpop.f32.mrb[0].mxu0
        %v2487 = vadd.f32 %v2294, %v2486
        %v2488 = vpop.f32.mrb[0].mxu0
        %v2489 = vadd.f32 %v2296, %v2488
        %v2490 = vpop.f32.mrb[0].mxu0
        %v2491 = vadd.f32 %v2298, %v2490
        %2492 = vmatprep.mubr.bf16.mxu0 0
        %2493 = vmatmul.mubr.bf16.gmra.mrb[0].mxu0 %v1079
        %v2494 = vpop.f32.mrb[0].mxu0
        %v2495 = vadd.f32 %v2302, %v2494
        %v2496 = vpop.f32.mrb[0].mxu0
        %v2497 = vadd.f32 %v2304, %v2496
        %v2498 = vpop.f32.mrb[0].mxu0
        %v2499 = vadd.f32 %v2306, %v2498
        %v2500 = vpop.f32.mrb[0].mxu0
        %v2501 = vadd.f32 %v2308, %v2500
        %2502 = vmatprep.mubr.bf16.mxu0 0
        %2503 = vmatmul.mubr.bf16.gmra.mrb[0].mxu0 %v1086
        %v2504 = vpop.f32.mrb[0].mxu0
        %v2505 = vadd.f32 %v2312, %v2504
        %v2506 = vpop.f32.mrb[0].mxu0
        %v2507 = vadd.f32 %v2314, %v2506
        %v2508 = vpop.f32.mrb[0].mxu0
        %v2509 = vadd.f32 %v2316, %v2508
        %v2510 = vpop.f32.mrb[0].mxu0
        %v2511 = vadd.f32 %v2318, %v2510
        %2512 = vmatprep.mubr.bf16.mxu0 0
        %2513 = vmatmul.mubr.bf16.gmra.mrb[0].mxu0 %v1093
        %v2514 = vpop.f32.mrb[0].mxu0
        %v2515 = vadd.f32 %v2322, %v2514
        %v2516 = vpop.f32.mrb[0].mxu0
        %v2517 = vadd.f32 %v2324, %v2516
        %v2518 = vpop.f32.mrb[0].mxu0
        %v2519 = vadd.f32 %v2326, %v2518
        %v2520 = vpop.f32.mrb[0].mxu0
        %v2521 = vadd.f32 %v2328, %v2520
        %2522 = vmatprep.mubr.bf16.mxu0 0
        %2523 = vmatmul.mubr.bf16.gmra.mrb[0].mxu0 %v1100
        %v2524 = vpop.f32.mrb[0].mxu0
        %v2525 = vadd.f32 %v2332, %v2524
        %v2526 = vpop.f32.mrb[0].mxu0
        %v2527 = vadd.f32 %v2334, %v2526
        %v2528 = vpop.f32.mrb[0].mxu0
        %v2529 = vadd.f32 %v2336, %v2528
        %v2530 = vpop.f32.mrb[0].mxu0
        %v2531 = vadd.f32 %v2338, %v2530
        %2532 = vmatprep.mubr.bf16.mxu0 0
        %2533 = vmatmul.mubr.bf16.gmra.mrb[0].mxu0 %v1107
        %v2534 = vpop.f32.mrb[0].mxu0
        %v2535 = vadd.f32 %v2342, %v2534
        %v2536 = vpop.f32.mrb[0].mxu0
        %v2537 = vadd.f32 %v2344, %v2536
        %v2538 = vpop.f32.mrb[0].mxu0
        %v2539 = vadd.f32 %v2346, %v2538
        %v2540 = vpop.f32.mrb[0].mxu0
        %v2541 = vadd.f32 %v2348, %v2540
        %2542 = vmatprep.mubr.bf16.mxu0 0
        %2543 = vmatmul.mubr.bf16.gmra.mrb[0].mxu0 %v1114
        %v2544 = vpop.f32.mrb[0].mxu0
        %v2545 = vadd.f32 %v2352, %v2544
        %v2546 = vpop.f32.mrb[0].mxu0
        %v2547 = vadd.f32 %v2354, %v2546
        %v2548 = vpop.f32.mrb[0].mxu0
        %v2549 = vadd.f32 %v2356, %v2548
        %v2550 = vpop.f32.mrb[0].mxu0
        %v2551 = vadd.f32 %v2358, %v2550
        %2552 = vmatprep.mubr.bf16.mxu0 0
        %2553 = vmatmul.mubr.bf16.gmra.mrb[0].mxu0 %v1121
        %v2554 = vpop.f32.mrb[0].mxu0
        %v2555 = vadd.f32 %v2362, %v2554
        %v2556 = vpop.f32.mrb[0].mxu0
        %v2557 = vadd.f32 %v2364, %v2556
        %v2558 = vpop.f32.mrb[0].mxu0
        %v2559 = vadd.f32 %v2366, %v2558
        %v2560 = vpop.f32.mrb[0].mxu0
        %v2561 = vadd.f32 %v2368, %v2560
        %2562 = vmatprep.mubr.bf16.mxu0 0
        %2563 = vmatmul.mubr.bf16.gmra.mrb[0].mxu0 %v1128
        %v2564 = vpop.f32.mrb[0].mxu0
        %v2565 = vadd.f32 %v2372, %v2564
        %v2566 = vpop.f32.mrb[0].mxu0
        %v2567 = vadd.f32 %v2374, %v2566
        %v2568 = vpop.f32.mrb[0].mxu0
        %v2569 = vadd.f32 %v2376, %v2568
        %v2570 = vpop.f32.mrb[0].mxu0
        %v2571 = vadd.f32 %v2378, %v2570
        %2572 = vdwg.mxu0
        %v2573 = vmax.f32 %v2415, 0.0
        %v2574 = vmax.f32 %v2417, 0.0
        %v2575 = vmax.f32 %v2419, 0.0
        %v2576 = vmax.f32 %v2421, 0.0
        %v2577 = vmax.f32 %v2425, 0.0
        %v2578 = vmax.f32 %v2427, 0.0
        %v2579 = vmax.f32 %v2429, 0.0
        %v2580 = vmax.f32 %v2431, 0.0
        %v2581 = vmax.f32 %v2435, 0.0
        %v2582 = vmax.f32 %v2437, 0.0
        %v2583 = vmax.f32 %v2439, 0.0
        %v2584 = vmax.f32 %v2441, 0.0
        %v2585 = vmax.f32 %v2445, 0.0
        %v2586 = vmax.f32 %v2447, 0.0
        %v2587 = vmax.f32 %v2449, 0.0
        %v2588 = vmax.f32 %v2451, 0.0
        %v2589 = vmax.f32 %v2455, 0.0
        %v2590 = vmax.f32 %v2457, 0.0
        %v2591 = vmax.f32 %v2459, 0.0
        %v2592 = vmax.f32 %v2461, 0.0
        %v2593 = vmax.f32 %v2465, 0.0
        %v2594 = vmax.f32 %v2467, 0.0
        %v2595 = vmax.f32 %v2469, 0.0
        %v2596 = vmax.f32 %v2471, 0.0
        %v2597 = vmax.f32 %v2475, 0.0
        %v2598 = vmax.f32 %v2477, 0.0
        %v2599 = vmax.f32 %v2479, 0.0
        %v2600 = vmax.f32 %v2481, 0.0
        %v2601 = vmax.f32 %v2485, 0.0
        %v2602 = vmax.f32 %v2487, 0.0
        %v2603 = vmax.f32 %v2489, 0.0
        %v2604 = vmax.f32 %v2491, 0.0
        %v2605 = vmax.f32 %v2495, 0.0
        %v2606 = vmax.f32 %v2497, 0.0
        %v2607 = vmax.f32 %v2499, 0.0
        %v2608 = vmax.f32 %v2501, 0.0
        %v2609 = vmax.f32 %v2505, 0.0
        %v2610 = vmax.f32 %v2507, 0.0
        %v2611 = vmax.f32 %v2509, 0.0
        %v2612 = vmax.f32 %v2511, 0.0
        %v2613 = vmax.f32 %v2515, 0.0
        %v2614 = vmax.f32 %v2517, 0.0
        %v2615 = vmax.f32 %v2519, 0.0
        %v2616 = vmax.f32 %v2521, 0.0
        %v2617 = vmax.f32 %v2525, 0.0
        %v2618 = vmax.f32 %v2527, 0.0
        %v2619 = vmax.f32 %v2529, 0.0
        %v2620 = vmax.f32 %v2531, 0.0
        %v2621 = vmax.f32 %v2535, 0.0
        %v2622 = vmax.f32 %v2537, 0.0
        %v2623 = vmax.f32 %v2539, 0.0
        %v2624 = vmax.f32 %v2541, 0.0
        %v2625 = vmax.f32 %v2545, 0.0
        %v2626 = vmax.f32 %v2547, 0.0
        %v2627 = vmax.f32 %v2549, 0.0
        %v2628 = vmax.f32 %v2551, 0.0
        %v2629 = vmax.f32 %v2555, 0.0
        %v2630 = vmax.f32 %v2557, 0.0
        %v2631 = vmax.f32 %v2559, 0.0
        %v2632 = vmax.f32 %v2561, 0.0
        %v2633 = vmax.f32 %v2565, 0.0
        %v2634 = vmax.f32 %v2567, 0.0
        %v2635 = vmax.f32 %v2569, 0.0
        %v2636 = vmax.f32 %v2571, 0.0
        %v2637 = vpack.c.bf16 %v2575, %v2573
        %v2638 = vpack.c.bf16 %v2576, %v2574
        %v2639 = vpack.c.bf16 %v2579, %v2577
        %v2640 = vpack.c.bf16 %v2580, %v2578
        %v2641 = vpack.c.bf16 %v2583, %v2581
        %v2642 = vpack.c.bf16 %v2584, %v2582
        %v2643 = vpack.c.bf16 %v2587, %v2585
        %v2644 = vpack.c.bf16 %v2588, %v2586
        %v2645 = vpack.c.bf16 %v2591, %v2589
        %v2646 = vpack.c.bf16 %v2592, %v2590
        %v2647 = vpack.c.bf16 %v2595, %v2593
        %v2648 = vpack.c.bf16 %v2596, %v2594
        %v2649 = vpack.c.bf16 %v2599, %v2597
        %v2650 = vpack.c.bf16 %v2600, %v2598
        %v2651 = vpack.c.bf16 %v2603, %v2601
        %v2652 = vpack.c.bf16 %v2604, %v2602
        %v2653 = vpack.c.bf16 %v2607, %v2605
        %v2654 = vpack.c.bf16 %v2608, %v2606
        %v2655 = vpack.c.bf16 %v2611, %v2609
        %v2656 = vpack.c.bf16 %v2612, %v2610
        %v2657 = vpack.c.bf16 %v2615, %v2613
        %v2658 = vpack.c.bf16 %v2616, %v2614
        %v2659 = vpack.c.bf16 %v2619, %v2617
        %v2660 = vpack.c.bf16 %v2620, %v2618
        %v2661 = vpack.c.bf16 %v2623, %v2621
        %v2662 = vpack.c.bf16 %v2624, %v2622
        %v2663 = vpack.c.bf16 %v2627, %v2625
        %v2664 = vpack.c.bf16 %v2628, %v2626
        %v2665 = vpack.c.bf16 %v2631, %v2629
        %v2666 = vpack.c.bf16 %v2632, %v2630
        %v2667 = vpack.c.bf16 %v2635, %v2633
        %v2668 = vpack.c.bf16 %v2636, %v2634
        %v2669 = vld [vmem:[#allocation7] sm:$0xff]
        %v2670 = vld [vmem:[#allocation7 + $0x8] sm:$0xff]
        %v2671 = vld [vmem:[#allocation7 + $0x10] sm:$0xff]
        %v2672 = vld [vmem:[#allocation7 + $0x18] sm:$0xff]
        %v2673 = vld [vmem:[#allocation7 + $0x20] sm:$0xff]
        %v2674 = vld [vmem:[#allocation7 + $0x28] sm:$0xff]
        %v2675 = vld [vmem:[#allocation7 + $0x30] sm:$0xff]
        %v2676 = vld [vmem:[#allocation7 + $0x38] sm:$0xff]
        %v2677 = vld [vmem:[#allocation7 + $0x40] sm:$0xff]
        %v2678 = vld [vmem:[#allocation7 + $0x48] sm:$0xff]
        %v2679 = vld [vmem:[#allocation7 + $0x50] sm:$0xff]
        %v2680 = vld [vmem:[#allocation7 + $0x58] sm:$0xff]
        %v2681 = vld [vmem:[#allocation7 + $0x60] sm:$0xff]
        %v2682 = vld [vmem:[#allocation7 + $0x68] sm:$0xff]
        %v2683 = vld [vmem:[#allocation7 + $0x70] sm:$0xff]
        %v2684 = vld [vmem:[#allocation7 + $0x78] sm:$0xff]
        %v2685 = vld [vmem:[#allocation7 + $0x80] sm:$0xff]
        %v2686 = vld [vmem:[#allocation7 + $0x88] sm:$0xff]
        %v2687 = vld [vmem:[#allocation7 + $0x90] sm:$0xff]
        %v2688 = vld [vmem:[#allocation7 + $0x98] sm:$0xff]
        %v2689 = vld [vmem:[#allocation7 + $0xa0] sm:$0xff]
        %v2690 = vld [vmem:[#allocation7 + $0xa8] sm:$0xff]
        %v2691 = vld [vmem:[#allocation7 + $0xb0] sm:$0xff]
        %v2692 = vld [vmem:[#allocation7 + $0xb8] sm:$0xff]
        %v2693 = vld [vmem:[#allocation7 + $0xc0] sm:$0xff]
        %v2694 = vld [vmem:[#allocation7 + $0xc8] sm:$0xff]
        %v2695 = vld [vmem:[#allocation7 + $0xd0] sm:$0xff]
        %v2696 = vld [vmem:[#allocation7 + $0xd8] sm:$0xff]
        %v2697 = vld [vmem:[#allocation7 + $0xe0] sm:$0xff]
        %v2698 = vld [vmem:[#allocation7 + $0xe8] sm:$0xff]
        %v2699 = vld [vmem:[#allocation7 + $0xf0] sm:$0xff]
        %v2700 = vld [vmem:[#allocation7 + $0xf8] sm:$0xff]
        %v2701 = vld [vmem:[%s4] sm:$0x3]
        %v2703 = vlaneseq
        %v2704 = vshrl.u32 %v2703, 7
        %v2705 = vsub.s32 0, %v2704
        %v2706 = vrot.slane %v2701, %v2705
        %v2707 = vlaneseq
        %v2708 = vshrl.u32 %v2707, 7
        %v2709 = vsub.s32 1, %v2708
        %v2710 = vrot.slane %v2701, %v2709
        %v2745 = vunpack.c.l.b16 %v2669
        %v2746 = vunpack.c.h.b16 %v2669
        %v2747 = vunpack.c.l.b16 %v2670
        %v2748 = vunpack.c.h.b16 %v2670
        %v2749 = vunpack.c.l.b16 %v2671
        %v2750 = vunpack.c.h.b16 %v2671
        %v2751 = vunpack.c.l.b16 %v2672
        %v2752 = vunpack.c.h.b16 %v2672
        %v2753 = vunpack.c.l.b16 %v2673
        %v2754 = vunpack.c.h.b16 %v2673
        %v2755 = vunpack.c.l.b16 %v2674
        %v2756 = vunpack.c.h.b16 %v2674
        %v2757 = vunpack.c.l.b16 %v2675
        %v2758 = vunpack.c.h.b16 %v2675
        %v2759 = vunpack.c.l.b16 %v2676
        %v2760 = vunpack.c.h.b16 %v2676
        %v2761 = vunpack.c.l.b16 %v2677
        %v2762 = vunpack.c.h.b16 %v2677
        %v2763 = vunpack.c.l.b16 %v2678
        %v2764 = vunpack.c.h.b16 %v2678
        %v2765 = vunpack.c.l.b16 %v2679
        %v2766 = vunpack.c.h.b16 %v2679
        %v2767 = vunpack.c.l.b16 %v2680
        %v2768 = vunpack.c.h.b16 %v2680
        %v2769 = vunpack.c.l.b16 %v2681
        %v2770 = vunpack.c.h.b16 %v2681
        %v2771 = vunpack.c.l.b16 %v2682
        %v2772 = vunpack.c.h.b16 %v2682
        %v2773 = vunpack.c.l.b16 %v2683
        %v2774 = vunpack.c.h.b16 %v2683
        %v2775 = vunpack.c.l.b16 %v2684
        %v2776 = vunpack.c.h.b16 %v2684
        %v2777 = vunpack.c.l.b16 %v2685
        %v2778 = vunpack.c.h.b16 %v2685
        %v2779 = vunpack.c.l.b16 %v2686
        %v2780 = vunpack.c.h.b16 %v2686
        %v2781 = vunpack.c.l.b16 %v2687
        %v2782 = vunpack.c.h.b16 %v2687
        %v2783 = vunpack.c.l.b16 %v2688
        %v2784 = vunpack.c.h.b16 %v2688
        %v2785 = vunpack.c.l.b16 %v2689
        %v2786 = vunpack.c.h.b16 %v2689
        %v2787 = vunpack.c.l.b16 %v2690
        %v2788 = vunpack.c.h.b16 %v2690
        %v2789 = vunpack.c.l.b16 %v2691
        %v2790 = vunpack.c.h.b16 %v2691
        %v2791 = vunpack.c.l.b16 %v2692
        %v2792 = vunpack.c.h.b16 %v2692
        %v2793 = vunpack.c.l.b16 %v2693
        %v2794 = vunpack.c.h.b16 %v2693
        %v2795 = vunpack.c.l.b16 %v2694
        %v2796 = vunpack.c.h.b16 %v2694
        %v2797 = vunpack.c.l.b16 %v2695
        %v2798 = vunpack.c.h.b16 %v2695
        %v2799 = vunpack.c.l.b16 %v2696
        %v2800 = vunpack.c.h.b16 %v2696
        %v2801 = vunpack.c.l.b16 %v2697
        %v2802 = vunpack.c.h.b16 %v2697
        %v2803 = vunpack.c.l.b16 %v2698
        %v2804 = vunpack.c.h.b16 %v2698
        %v2805 = vunpack.c.l.b16 %v2699
        %v2806 = vunpack.c.h.b16 %v2699
        %v2807 = vunpack.c.l.b16 %v2700
        %v2808 = vunpack.c.h.b16 %v2700
        %v2809 = vpack.c.b16 %v2747, %v2745
        %v2810 = vpack.c.b16 %v2748, %v2746
        %v2811 = vpack.c.b16 %v2751, %v2749
        %v2812 = vpack.c.b16 %v2752, %v2750
        %v2813 = vpack.c.b16 %v2755, %v2753
        %v2814 = vpack.c.b16 %v2756, %v2754
        %v2815 = vpack.c.b16 %v2759, %v2757
        %v2816 = vpack.c.b16 %v2760, %v2758
        %v2817 = vpack.c.b16 %v2763, %v2761
        %v2818 = vpack.c.b16 %v2764, %v2762
        %v2819 = vpack.c.b16 %v2767, %v2765
        %v2820 = vpack.c.b16 %v2768, %v2766
        %v2821 = vpack.c.b16 %v2771, %v2769
        %v2822 = vpack.c.b16 %v2772, %v2770
        %v2823 = vpack.c.b16 %v2775, %v2773
        %v2824 = vpack.c.b16 %v2776, %v2774
        %v2825 = vpack.c.b16 %v2779, %v2777
        %v2826 = vpack.c.b16 %v2780, %v2778
        %v2827 = vpack.c.b16 %v2783, %v2781
        %v2828 = vpack.c.b16 %v2784, %v2782
        %v2829 = vpack.c.b16 %v2787, %v2785
        %v2830 = vpack.c.b16 %v2788, %v2786
        %v2831 = vpack.c.b16 %v2791, %v2789
        %v2832 = vpack.c.b16 %v2792, %v2790
        %v2833 = vpack.c.b16 %v2795, %v2793
        %v2834 = vpack.c.b16 %v2796, %v2794
        %v2835 = vpack.c.b16 %v2799, %v2797
        %v2836 = vpack.c.b16 %v2800, %v2798
        %v2837 = vpack.c.b16 %v2803, %v2801
        %v2838 = vpack.c.b16 %v2804, %v2802
        %v2839 = vpack.c.b16 %v2807, %v2805
        %v2840 = vpack.c.b16 %v2808, %v2806
        %2873 = vmatprep.subr.bf16.mxu0 %v2810
        %2874 = vmatpush1.bf16.msra.mxu0 %v2809
        %2875 = vmatprep.subr.bf16.mxu0 %v2812
        %2876 = vmatpush1.bf16.msra.mxu0 %v2811
        %2877 = vmatprep.subr.bf16.mxu0 %v2814
        %2878 = vmatpush1.bf16.msra.mxu0 %v2813
        %2879 = vmatprep.subr.bf16.mxu0 %v2816
        %2880 = vmatpush1.bf16.msra.mxu0 %v2815
        %2881 = vmatprep.subr.bf16.mxu0 %v2818
        %2882 = vmatpush1.bf16.msra.mxu0 %v2817
        %2883 = vmatprep.subr.bf16.mxu0 %v2820
        %2884 = vmatpush1.bf16.msra.mxu0 %v2819
        %2885 = vmatprep.subr.bf16.mxu0 %v2822
        %2886 = vmatpush1.bf16.msra.mxu0 %v2821
        %2887 = vmatprep.subr.bf16.mxu0 %v2824
        %2888 = vmatpush1.bf16.msra.mxu0 %v2823
        %2889 = vmatprep.subr.bf16.mxu0 %v2826
        %2890 = vmatpush1.bf16.msra.mxu0 %v2825
        %2891 = vmatprep.subr.bf16.mxu0 %v2828
        %2892 = vmatpush1.bf16.msra.mxu0 %v2827
        %2893 = vmatprep.subr.bf16.mxu0 %v2830
        %2894 = vmatpush1.bf16.msra.mxu0 %v2829
        %2895 = vmatprep.subr.bf16.mxu0 %v2832
        %2896 = vmatpush1.bf16.msra.mxu0 %v2831
        %2897 = vmatprep.subr.bf16.mxu0 %v2834
        %2898 = vmatpush1.bf16.msra.mxu0 %v2833
        %2899 = vmatprep.subr.bf16.mxu0 %v2836
        %2900 = vmatpush1.bf16.msra.mxu0 %v2835
        %2901 = vmatprep.subr.bf16.mxu0 %v2838
        %2902 = vmatpush1.bf16.msra.mxu0 %v2837
        %2903 = vmatprep.subr.bf16.mxu0 %v2840
        %2904 = vmatpush1.bf16.msra.mxu0 %v2839
        %2905 = vmatprep.mubr.bf16.mxu0 %v2638
        %2906 = vmatmul.mubr.bf16.gmra.mrb[0].mxu0 %v2637
        %v2907 = vpop.f32.mrb[0].mxu0
        %v2908 = vadd.f32 %v2706, %v2907
        %v2909 = vpop.f32.mrb[0].mxu0
        %v2910 = vadd.f32 %v2710, %v2909
        %v2911 = vpop.f32.mrb[0].mxu0
        %v2912 = vadd.f32 %v2706, %v2911
        %v2913 = vpop.f32.mrb[0].mxu0
        %v2914 = vadd.f32 %v2710, %v2913
        %2915 = vmatprep.mubr.bf16.mxu0 %v2640
        %2916 = vmatmul.mubr.bf16.gmra.mrb[0].mxu0 %v2639
        %v2917 = vpop.f32.mrb[0].mxu0
        %v2918 = vadd.f32 %v2706, %v2917
        %v2919 = vpop.f32.mrb[0].mxu0
        %v2920 = vadd.f32 %v2710, %v2919
        %v2921 = vpop.f32.mrb[0].mxu0
        %v2922 = vadd.f32 %v2706, %v2921
        %v2923 = vpop.f32.mrb[0].mxu0
        %v2924 = vadd.f32 %v2710, %v2923
        %2925 = vmatprep.mubr.bf16.mxu0 %v2642
        %2926 = vmatmul.mubr.bf16.gmra.mrb[0].mxu0 %v2641
        %v2927 = vpop.f32.mrb[0].mxu0
        %v2928 = vadd.f32 %v2706, %v2927
        %v2929 = vpop.f32.mrb[0].mxu0
        %v2930 = vadd.f32 %v2710, %v2929
        %v2931 = vpop.f32.mrb[0].mxu0
        %v2932 = vadd.f32 %v2706, %v2931
        %v2933 = vpop.f32.mrb[0].mxu0
        %v2934 = vadd.f32 %v2710, %v2933
        %2935 = vmatprep.mubr.bf16.mxu0 %v2644
        %2936 = vmatmul.mubr.bf16.gmra.mrb[0].mxu0 %v2643
        %v2937 = vpop.f32.mrb[0].mxu0
        %v2938 = vadd.f32 %v2706, %v2937
        %v2939 = vpop.f32.mrb[0].mxu0
        %v2940 = vadd.f32 %v2710, %v2939
        %v2941 = vpop.f32.mrb[0].mxu0
        %v2942 = vadd.f32 %v2706, %v2941
        %v2943 = vpop.f32.mrb[0].mxu0
        %v2944 = vadd.f32 %v2710, %v2943
        %2945 = vmatprep.mubr.bf16.mxu0 %v2646
        %2946 = vmatmul.mubr.bf16.gmra.mrb[0].mxu0 %v2645
        %v2947 = vpop.f32.mrb[0].mxu0
        %v2948 = vadd.f32 %v2706, %v2947
        %v2949 = vpop.f32.mrb[0].mxu0
        %v2950 = vadd.f32 %v2710, %v2949
        %v2951 = vpop.f32.mrb[0].mxu0
        %v2952 = vadd.f32 %v2706, %v2951
        %v2953 = vpop.f32.mrb[0].mxu0
        %v2954 = vadd.f32 %v2710, %v2953
        %2955 = vmatprep.mubr.bf16.mxu0 %v2648
        %2956 = vmatmul.mubr.bf16.gmra.mrb[0].mxu0 %v2647
        %v2957 = vpop.f32.mrb[0].mxu0
        %v2958 = vadd.f32 %v2706, %v2957
        %v2959 = vpop.f32.mrb[0].mxu0
        %v2960 = vadd.f32 %v2710, %v2959
        %v2961 = vpop.f32.mrb[0].mxu0
        %v2962 = vadd.f32 %v2706, %v2961
        %v2963 = vpop.f32.mrb[0].mxu0
        %v2964 = vadd.f32 %v2710, %v2963
        %2965 = vmatprep.mubr.bf16.mxu0 %v2650
        %2966 = vmatmul.mubr.bf16.gmra.mrb[0].mxu0 %v2649
        %v2967 = vpop.f32.mrb[0].mxu0
        %v2968 = vadd.f32 %v2706, %v2967
        %v2969 = vpop.f32.mrb[0].mxu0
        %v2970 = vadd.f32 %v2710, %v2969
        %v2971 = vpop.f32.mrb[0].mxu0
        %v2972 = vadd.f32 %v2706, %v2971
        %v2973 = vpop.f32.mrb[0].mxu0
        %v2974 = vadd.f32 %v2710, %v2973
        %2975 = vmatprep.mubr.bf16.mxu0 %v2652
        %2976 = vmatmul.mubr.bf16.gmra.mrb[0].mxu0 %v2651
        %v2977 = vpop.f32.mrb[0].mxu0
        %v2978 = vadd.f32 %v2706, %v2977
        %v2979 = vpop.f32.mrb[0].mxu0
        %v2980 = vadd.f32 %v2710, %v2979
        %v2981 = vpop.f32.mrb[0].mxu0
        %v2982 = vadd.f32 %v2706, %v2981
        %v2983 = vpop.f32.mrb[0].mxu0
        %v2984 = vadd.f32 %v2710, %v2983
        %2985 = vmatprep.mubr.bf16.mxu0 %v2654
        %2986 = vmatmul.mubr.bf16.gmra.mrb[0].mxu0 %v2653
        %v2987 = vpop.f32.mrb[0].mxu0
        %v2988 = vadd.f32 %v2706, %v2987
        %v2989 = vpop.f32.mrb[0].mxu0
        %v2990 = vadd.f32 %v2710, %v2989
        %v2991 = vpop.f32.mrb[0].mxu0
        %v2992 = vadd.f32 %v2706, %v2991
        %v2993 = vpop.f32.mrb[0].mxu0
        %v2994 = vadd.f32 %v2710, %v2993
        %2995 = vmatprep.mubr.bf16.mxu0 %v2656
        %2996 = vmatmul.mubr.bf16.gmra.mrb[0].mxu0 %v2655
        %v2997 = vpop.f32.mrb[0].mxu0
        %v2998 = vadd.f32 %v2706, %v2997
        %v2999 = vpop.f32.mrb[0].mxu0
        %v3000 = vadd.f32 %v2710, %v2999
        %v3001 = vpop.f32.mrb[0].mxu0
        %v3002 = vadd.f32 %v2706, %v3001
        %v3003 = vpop.f32.mrb[0].mxu0
        %v3004 = vadd.f32 %v2710, %v3003
        %3005 = vmatprep.mubr.bf16.mxu0 %v2658
        %3006 = vmatmul.mubr.bf16.gmra.mrb[0].mxu0 %v2657
        %v3007 = vpop.f32.mrb[0].mxu0
        %v3008 = vadd.f32 %v2706, %v3007
        %v3009 = vpop.f32.mrb[0].mxu0
        %v3010 = vadd.f32 %v2710, %v3009
        %v3011 = vpop.f32.mrb[0].mxu0
        %v3012 = vadd.f32 %v2706, %v3011
        %v3013 = vpop.f32.mrb[0].mxu0
        %v3014 = vadd.f32 %v2710, %v3013
        %3015 = vmatprep.mubr.bf16.mxu0 %v2660
        %3016 = vmatmul.mubr.bf16.gmra.mrb[0].mxu0 %v2659
        %v3017 = vpop.f32.mrb[0].mxu0
        %v3018 = vadd.f32 %v2706, %v3017
        %v3019 = vpop.f32.mrb[0].mxu0
        %v3020 = vadd.f32 %v2710, %v3019
        %v3021 = vpop.f32.mrb[0].mxu0
        %v3022 = vadd.f32 %v2706, %v3021
        %v3023 = vpop.f32.mrb[0].mxu0
        %v3024 = vadd.f32 %v2710, %v3023
        %3025 = vmatprep.mubr.bf16.mxu0 %v2662
        %3026 = vmatmul.mubr.bf16.gmra.mrb[0].mxu0 %v2661
        %v3027 = vpop.f32.mrb[0].mxu0
        %v3028 = vadd.f32 %v2706, %v3027
        %v3029 = vpop.f32.mrb[0].mxu0
        %v3030 = vadd.f32 %v2710, %v3029
        %v3031 = vpop.f32.mrb[0].mxu0
        %v3032 = vadd.f32 %v2706, %v3031
        %v3033 = vpop.f32.mrb[0].mxu0
        %v3034 = vadd.f32 %v2710, %v3033
        %3035 = vmatprep.mubr.bf16.mxu0 %v2664
        %3036 = vmatmul.mubr.bf16.gmra.mrb[0].mxu0 %v2663
        %v3037 = vpop.f32.mrb[0].mxu0
        %v3038 = vadd.f32 %v2706, %v3037
        %v3039 = vpop.f32.mrb[0].mxu0
        %v3040 = vadd.f32 %v2710, %v3039
        %v3041 = vpop.f32.mrb[0].mxu0
        %v3042 = vadd.f32 %v2706, %v3041
        %v3043 = vpop.f32.mrb[0].mxu0
        %v3044 = vadd.f32 %v2710, %v3043
        %3045 = vmatprep.mubr.bf16.mxu0 %v2666
        %3046 = vmatmul.mubr.bf16.gmra.mrb[0].mxu0 %v2665
        %v3047 = vpop.f32.mrb[0].mxu0
        %v3048 = vadd.f32 %v2706, %v3047
        %v3049 = vpop.f32.mrb[0].mxu0
        %v3050 = vadd.f32 %v2710, %v3049
        %v3051 = vpop.f32.mrb[0].mxu0
        %v3052 = vadd.f32 %v2706, %v3051
        %v3053 = vpop.f32.mrb[0].mxu0
        %v3054 = vadd.f32 %v2710, %v3053
        %3055 = vmatprep.mubr.bf16.mxu0 %v2668
        %3056 = vmatmul.mubr.bf16.gmra.mrb[0].mxu0 %v2667
        %v3057 = vpop.f32.mrb[0].mxu0
        %v3058 = vadd.f32 %v2706, %v3057
        %v3059 = vpop.f32.mrb[0].mxu0
        %v3060 = vadd.f32 %v2710, %v3059
        %v3061 = vpop.f32.mrb[0].mxu0
        %v3062 = vadd.f32 %v2706, %v3061
        %v3063 = vpop.f32.mrb[0].mxu0
        %v3064 = vadd.f32 %v2710, %v3063
        %3065 = vdwg.mxu0
        %v3066 = vmax.f32 %v2908, 0.0
        %v3067 = vmax.f32 %v2910, 0.0
        %v3068 = vmax.f32 %v2912, 0.0
        %v3069 = vmax.f32 %v2914, 0.0
        %v3070 = vmax.f32 %v2918, 0.0
        %v3071 = vmax.f32 %v2920, 0.0
        %v3072 = vmax.f32 %v2922, 0.0
        %v3073 = vmax.f32 %v2924, 0.0
        %v3074 = vmax.f32 %v2928, 0.0
        %v3075 = vmax.f32 %v2930, 0.0
        %v3076 = vmax.f32 %v2932, 0.0
        %v3077 = vmax.f32 %v2934, 0.0
        %v3078 = vmax.f32 %v2938, 0.0
        %v3079 = vmax.f32 %v2940, 0.0
        %v3080 = vmax.f32 %v2942, 0.0
        %v3081 = vmax.f32 %v2944, 0.0
        %v3082 = vmax.f32 %v2948, 0.0
        %v3083 = vmax.f32 %v2950, 0.0
        %v3084 = vmax.f32 %v2952, 0.0
        %v3085 = vmax.f32 %v2954, 0.0
        %v3086 = vmax.f32 %v2958, 0.0
        %v3087 = vmax.f32 %v2960, 0.0
        %v3088 = vmax.f32 %v2962, 0.0
        %v3089 = vmax.f32 %v2964, 0.0
        %v3090 = vmax.f32 %v2968, 0.0
        %v3091 = vmax.f32 %v2970, 0.0
        %v3092 = vmax.f32 %v2972, 0.0
        %v3093 = vmax.f32 %v2974, 0.0
        %v3094 = vmax.f32 %v2978, 0.0
        %v3095 = vmax.f32 %v2980, 0.0
        %v3096 = vmax.f32 %v2982, 0.0
        %v3097 = vmax.f32 %v2984, 0.0
        %v3098 = vmax.f32 %v2988, 0.0
        %v3099 = vmax.f32 %v2990, 0.0
        %v3100 = vmax.f32 %v2992, 0.0
        %v3101 = vmax.f32 %v2994, 0.0
        %v3102 = vmax.f32 %v2998, 0.0
        %v3103 = vmax.f32 %v3000, 0.0
        %v3104 = vmax.f32 %v3002, 0.0
        %v3105 = vmax.f32 %v3004, 0.0
        %v3106 = vmax.f32 %v3008, 0.0
        %v3107 = vmax.f32 %v3010, 0.0
        %v3108 = vmax.f32 %v3012, 0.0
        %v3109 = vmax.f32 %v3014, 0.0
        %v3110 = vmax.f32 %v3018, 0.0
        %v3111 = vmax.f32 %v3020, 0.0
        %v3112 = vmax.f32 %v3022, 0.0
        %v3113 = vmax.f32 %v3024, 0.0
        %v3114 = vmax.f32 %v3028, 0.0
        %v3115 = vmax.f32 %v3030, 0.0
        %v3116 = vmax.f32 %v3032, 0.0
        %v3117 = vmax.f32 %v3034, 0.0
        %v3118 = vmax.f32 %v3038, 0.0
        %v3119 = vmax.f32 %v3040, 0.0
        %v3120 = vmax.f32 %v3042, 0.0
        %v3121 = vmax.f32 %v3044, 0.0
        %v3122 = vmax.f32 %v3048, 0.0
        %v3123 = vmax.f32 %v3050, 0.0
        %v3124 = vmax.f32 %v3052, 0.0
        %v3125 = vmax.f32 %v3054, 0.0
        %v3126 = vmax.f32 %v3058, 0.0
        %v3127 = vmax.f32 %v3060, 0.0
        %v3128 = vmax.f32 %v3062, 0.0
        %v3129 = vmax.f32 %v3064, 0.0
        %v3130 = vpack.c.bf16 %v3068, %v3066
        %v3131 = vpack.c.bf16 %v3069, %v3067
        %v3132 = vpack.c.bf16 %v3072, %v3070
        %v3133 = vpack.c.bf16 %v3073, %v3071
        %v3134 = vpack.c.bf16 %v3076, %v3074
        %v3135 = vpack.c.bf16 %v3077, %v3075
        %v3136 = vpack.c.bf16 %v3080, %v3078
        %v3137 = vpack.c.bf16 %v3081, %v3079
        %v3138 = vpack.c.bf16 %v3084, %v3082
        %v3139 = vpack.c.bf16 %v3085, %v3083
        %v3140 = vpack.c.bf16 %v3088, %v3086
        %v3141 = vpack.c.bf16 %v3089, %v3087
        %v3142 = vpack.c.bf16 %v3092, %v3090
        %v3143 = vpack.c.bf16 %v3093, %v3091
        %v3144 = vpack.c.bf16 %v3096, %v3094
        %v3145 = vpack.c.bf16 %v3097, %v3095
        %v3146 = vpack.c.bf16 %v3100, %v3098
        %v3147 = vpack.c.bf16 %v3101, %v3099
        %v3148 = vpack.c.bf16 %v3104, %v3102
        %v3149 = vpack.c.bf16 %v3105, %v3103
        %v3150 = vpack.c.bf16 %v3108, %v3106
        %v3151 = vpack.c.bf16 %v3109, %v3107
        %v3152 = vpack.c.bf16 %v3112, %v3110
        %v3153 = vpack.c.bf16 %v3113, %v3111
        %v3154 = vpack.c.bf16 %v3116, %v3114
        %v3155 = vpack.c.bf16 %v3117, %v3115
        %v3156 = vpack.c.bf16 %v3120, %v3118
        %v3157 = vpack.c.bf16 %v3121, %v3119
        %v3158 = vpack.c.bf16 %v3124, %v3122
        %v3159 = vpack.c.bf16 %v3125, %v3123
        %v3160 = vpack.c.bf16 %v3128, %v3126
        %v3161 = vpack.c.bf16 %v3129, %v3127
        %v3162 = vld [vmem:[#allocation8] sm:$0xff]
        %v3163 = vld [vmem:[#allocation8 + $0x8] sm:$0xff]
        %v3164 = vld [vmem:[#allocation8 + $0x10] sm:$0xff]
        %v3165 = vld [vmem:[#allocation8 + $0x18] sm:$0xff]
        %v3166 = vld [vmem:[#allocation8 + $0x20] sm:$0xff]
        %v3167 = vld [vmem:[#allocation8 + $0x28] sm:$0xff]
        %v3168 = vld [vmem:[#allocation8 + $0x30] sm:$0xff]
        %v3169 = vld [vmem:[#allocation8 + $0x38] sm:$0xff]
        %v3170 = vld [vmem:[#allocation8 + $0x40] sm:$0xff]
        %v3171 = vld [vmem:[#allocation8 + $0x48] sm:$0xff]
        %v3172 = vld [vmem:[#allocation8 + $0x50] sm:$0xff]
        %v3173 = vld [vmem:[#allocation8 + $0x58] sm:$0xff]
        %v3174 = vld [vmem:[#allocation8 + $0x60] sm:$0xff]
        %v3175 = vld [vmem:[#allocation8 + $0x68] sm:$0xff]
        %v3176 = vld [vmem:[#allocation8 + $0x70] sm:$0xff]
        %v3177 = vld [vmem:[#allocation8 + $0x78] sm:$0xff]
        %v3178 = vld [vmem:[#allocation8 + $0x80] sm:$0xff]
        %v3179 = vld [vmem:[#allocation8 + $0x88] sm:$0xff]
        %v3180 = vld [vmem:[#allocation8 + $0x90] sm:$0xff]
        %v3181 = vld [vmem:[#allocation8 + $0x98] sm:$0xff]
        %v3182 = vld [vmem:[#allocation8 + $0xa0] sm:$0xff]
        %v3183 = vld [vmem:[#allocation8 + $0xa8] sm:$0xff]
        %v3184 = vld [vmem:[#allocation8 + $0xb0] sm:$0xff]
        %v3185 = vld [vmem:[#allocation8 + $0xb8] sm:$0xff]
        %v3186 = vld [vmem:[#allocation8 + $0xc0] sm:$0xff]
        %v3187 = vld [vmem:[#allocation8 + $0xc8] sm:$0xff]
        %v3188 = vld [vmem:[#allocation8 + $0xd0] sm:$0xff]
        %v3189 = vld [vmem:[#allocation8 + $0xd8] sm:$0xff]
        %v3190 = vld [vmem:[#allocation8 + $0xe0] sm:$0xff]
        %v3191 = vld [vmem:[#allocation8 + $0xe8] sm:$0xff]
        %v3192 = vld [vmem:[#allocation8 + $0xf0] sm:$0xff]
        %v3193 = vld [vmem:[#allocation8 + $0xf8] sm:$0xff]
        %v3194 = vld [vmem:[%s6] sm:$0x3]
        %v3196 = vlaneseq
        %v3197 = vshrl.u32 %v3196, 7
        %v3198 = vsub.s32 0, %v3197
        %v3199 = vrot.slane %v3194, %v3198
        %v3200 = vlaneseq
        %v3201 = vshrl.u32 %v3200, 7
        %v3202 = vsub.s32 1, %v3201
        %v3203 = vrot.slane %v3194, %v3202
        %v3238 = vunpack.c.l.b16 %v3162
        %v3239 = vunpack.c.h.b16 %v3162
        %v3240 = vunpack.c.l.b16 %v3163
        %v3241 = vunpack.c.h.b16 %v3163
        %v3242 = vunpack.c.l.b16 %v3164
        %v3243 = vunpack.c.h.b16 %v3164
        %v3244 = vunpack.c.l.b16 %v3165
        %v3245 = vunpack.c.h.b16 %v3165
        %v3246 = vunpack.c.l.b16 %v3166
        %v3247 = vunpack.c.h.b16 %v3166
        %v3248 = vunpack.c.l.b16 %v3167
        %v3249 = vunpack.c.h.b16 %v3167
        %v3250 = vunpack.c.l.b16 %v3168
        %v3251 = vunpack.c.h.b16 %v3168
        %v3252 = vunpack.c.l.b16 %v3169
        %v3253 = vunpack.c.h.b16 %v3169
        %v3254 = vunpack.c.l.b16 %v3170
        %v3255 = vunpack.c.h.b16 %v3170
        %v3256 = vunpack.c.l.b16 %v3171
        %v3257 = vunpack.c.h.b16 %v3171
        %v3258 = vunpack.c.l.b16 %v3172
        %v3259 = vunpack.c.h.b16 %v3172
        %v3260 = vunpack.c.l.b16 %v3173
        %v3261 = vunpack.c.h.b16 %v3173
        %v3262 = vunpack.c.l.b16 %v3174
        %v3263 = vunpack.c.h.b16 %v3174
        %v3264 = vunpack.c.l.b16 %v3175
        %v3265 = vunpack.c.h.b16 %v3175
        %v3266 = vunpack.c.l.b16 %v3176
        %v3267 = vunpack.c.h.b16 %v3176
        %v3268 = vunpack.c.l.b16 %v3177
        %v3269 = vunpack.c.h.b16 %v3177
        %v3270 = vunpack.c.l.b16 %v3178
        %v3271 = vunpack.c.h.b16 %v3178
        %v3272 = vunpack.c.l.b16 %v3179
        %v3273 = vunpack.c.h.b16 %v3179
        %v3274 = vunpack.c.l.b16 %v3180
        %v3275 = vunpack.c.h.b16 %v3180
        %v3276 = vunpack.c.l.b16 %v3181
        %v3277 = vunpack.c.h.b16 %v3181
        %v3278 = vunpack.c.l.b16 %v3182
        %v3279 = vunpack.c.h.b16 %v3182
        %v3280 = vunpack.c.l.b16 %v3183
        %v3281 = vunpack.c.h.b16 %v3183
        %v3282 = vunpack.c.l.b16 %v3184
        %v3283 = vunpack.c.h.b16 %v3184
        %v3284 = vunpack.c.l.b16 %v3185
        %v3285 = vunpack.c.h.b16 %v3185
        %v3286 = vunpack.c.l.b16 %v3186
        %v3287 = vunpack.c.h.b16 %v3186
        %v3288 = vunpack.c.l.b16 %v3187
        %v3289 = vunpack.c.h.b16 %v3187
        %v3290 = vunpack.c.l.b16 %v3188
        %v3291 = vunpack.c.h.b16 %v3188
        %v3292 = vunpack.c.l.b16 %v3189
        %v3293 = vunpack.c.h.b16 %v3189
        %v3294 = vunpack.c.l.b16 %v3190
        %v3295 = vunpack.c.h.b16 %v3190
        %v3296 = vunpack.c.l.b16 %v3191
        %v3297 = vunpack.c.h.b16 %v3191
        %v3298 = vunpack.c.l.b16 %v3192
        %v3299 = vunpack.c.h.b16 %v3192
        %v3300 = vunpack.c.l.b16 %v3193
        %v3301 = vunpack.c.h.b16 %v3193
        %v3302 = vpack.c.b16 %v3240, %v3238
        %v3303 = vpack.c.b16 %v3241, %v3239
        %v3304 = vpack.c.b16 %v3244, %v3242
        %v3305 = vpack.c.b16 %v3245, %v3243
        %v3306 = vpack.c.b16 %v3248, %v3246
        %v3307 = vpack.c.b16 %v3249, %v3247
        %v3308 = vpack.c.b16 %v3252, %v3250
        %v3309 = vpack.c.b16 %v3253, %v3251
        %v3310 = vpack.c.b16 %v3256, %v3254
        %v3311 = vpack.c.b16 %v3257, %v3255
        %v3312 = vpack.c.b16 %v3260, %v3258
        %v3313 = vpack.c.b16 %v3261, %v3259
        %v3314 = vpack.c.b16 %v3264, %v3262
        %v3315 = vpack.c.b16 %v3265, %v3263
        %v3316 = vpack.c.b16 %v3268, %v3266
        %v3317 = vpack.c.b16 %v3269, %v3267
        %v3318 = vpack.c.b16 %v3272, %v3270
        %v3319 = vpack.c.b16 %v3273, %v3271
        %v3320 = vpack.c.b16 %v3276, %v3274
        %v3321 = vpack.c.b16 %v3277, %v3275
        %v3322 = vpack.c.b16 %v3280, %v3278
        %v3323 = vpack.c.b16 %v3281, %v3279
        %v3324 = vpack.c.b16 %v3284, %v3282
        %v3325 = vpack.c.b16 %v3285, %v3283
        %v3326 = vpack.c.b16 %v3288, %v3286
        %v3327 = vpack.c.b16 %v3289, %v3287
        %v3328 = vpack.c.b16 %v3292, %v3290
        %v3329 = vpack.c.b16 %v3293, %v3291
        %v3330 = vpack.c.b16 %v3296, %v3294
        %v3331 = vpack.c.b16 %v3297, %v3295
        %v3332 = vpack.c.b16 %v3300, %v3298
        %v3333 = vpack.c.b16 %v3301, %v3299
        %3366 = vmatprep.subr.bf16.mxu0 %v3303
        %3367 = vmatpush1.bf16.msra.mxu0 %v3302
        %3368 = vmatprep.subr.bf16.mxu0 %v3305
        %3369 = vmatpush1.bf16.msra.mxu0 %v3304
        %3370 = vmatprep.subr.bf16.mxu0 %v3307
        %3371 = vmatpush1.bf16.msra.mxu0 %v3306
        %3372 = vmatprep.subr.bf16.mxu0 %v3309
        %3373 = vmatpush1.bf16.msra.mxu0 %v3308
        %3374 = vmatprep.subr.bf16.mxu0 %v3311
        %3375 = vmatpush1.bf16.msra.mxu0 %v3310
        %3376 = vmatprep.subr.bf16.mxu0 %v3313
        %3377 = vmatpush1.bf16.msra.mxu0 %v3312
        %3378 = vmatprep.subr.bf16.mxu0 %v3315
        %3379 = vmatpush1.bf16.msra.mxu0 %v3314
        %3380 = vmatprep.subr.bf16.mxu0 %v3317
        %3381 = vmatpush1.bf16.msra.mxu0 %v3316
        %3382 = vmatprep.subr.bf16.mxu0 %v3319
        %3383 = vmatpush1.bf16.msra.mxu0 %v3318
        %3384 = vmatprep.subr.bf16.mxu0 %v3321
        %3385 = vmatpush1.bf16.msra.mxu0 %v3320
        %3386 = vmatprep.subr.bf16.mxu0 %v3323
        %3387 = vmatpush1.bf16.msra.mxu0 %v3322
        %3388 = vmatprep.subr.bf16.mxu0 %v3325
        %3389 = vmatpush1.bf16.msra.mxu0 %v3324
        %3390 = vmatprep.subr.bf16.mxu0 %v3327
        %3391 = vmatpush1.bf16.msra.mxu0 %v3326
        %3392 = vmatprep.subr.bf16.mxu0 %v3329
        %3393 = vmatpush1.bf16.msra.mxu0 %v3328
        %3394 = vmatprep.subr.bf16.mxu0 %v3331
        %3395 = vmatpush1.bf16.msra.mxu0 %v3330
        %3396 = vmatprep.subr.bf16.mxu0 %v3333
        %3397 = vmatpush1.bf16.msra.mxu0 %v3332
        %3398 = vmatprep.mubr.bf16.mxu0 %v3131
        %3399 = vmatmul.mubr.bf16.gmra.mrb[0].mxu0 %v3130
        %v3400 = vpop.f32.mrb[0].mxu0
        %v3401 = vadd.f32 %v3199, %v3400
        %v3402 = vpop.f32.mrb[0].mxu0
        %v3403 = vadd.f32 %v3203, %v3402
        %v3404 = vpop.f32.mrb[0].mxu0
        %v3405 = vadd.f32 %v3199, %v3404
        %v3406 = vpop.f32.mrb[0].mxu0
        %v3407 = vadd.f32 %v3203, %v3406
        %3408 = vmatprep.mubr.bf16.mxu0 %v3133
        %3409 = vmatmul.mubr.bf16.gmra.mrb[0].mxu0 %v3132
        %v3410 = vpop.f32.mrb[0].mxu0
        %v3411 = vadd.f32 %v3199, %v3410
        %v3412 = vpop.f32.mrb[0].mxu0
        %v3413 = vadd.f32 %v3203, %v3412
        %v3414 = vpop.f32.mrb[0].mxu0
        %v3415 = vadd.f32 %v3199, %v3414
        %v3416 = vpop.f32.mrb[0].mxu0
        %v3417 = vadd.f32 %v3203, %v3416
        %3418 = vmatprep.mubr.bf16.mxu0 %v3135
        %3419 = vmatmul.mubr.bf16.gmra.mrb[0].mxu0 %v3134
        %v3420 = vpop.f32.mrb[0].mxu0
        %v3421 = vadd.f32 %v3199, %v3420
        %v3422 = vpop.f32.mrb[0].mxu0
        %v3423 = vadd.f32 %v3203, %v3422
        %v3424 = vpop.f32.mrb[0].mxu0
        %v3425 = vadd.f32 %v3199, %v3424
        %v3426 = vpop.f32.mrb[0].mxu0
        %v3427 = vadd.f32 %v3203, %v3426
        %3428 = vmatprep.mubr.bf16.mxu0 %v3137
        %3429 = vmatmul.mubr.bf16.gmra.mrb[0].mxu0 %v3136
        %v3430 = vpop.f32.mrb[0].mxu0
        %v3431 = vadd.f32 %v3199, %v3430
        %v3432 = vpop.f32.mrb[0].mxu0
        %v3433 = vadd.f32 %v3203, %v3432
        %v3434 = vpop.f32.mrb[0].mxu0
        %v3435 = vadd.f32 %v3199, %v3434
        %v3436 = vpop.f32.mrb[0].mxu0
        %v3437 = vadd.f32 %v3203, %v3436
        %3438 = vmatprep.mubr.bf16.mxu0 %v3139
        %3439 = vmatmul.mubr.bf16.gmra.mrb[0].mxu0 %v3138
        %v3440 = vpop.f32.mrb[0].mxu0
        %v3441 = vadd.f32 %v3199, %v3440
        %v3442 = vpop.f32.mrb[0].mxu0
        %v3443 = vadd.f32 %v3203, %v3442
        %v3444 = vpop.f32.mrb[0].mxu0
        %v3445 = vadd.f32 %v3199, %v3444
        %v3446 = vpop.f32.mrb[0].mxu0
        %v3447 = vadd.f32 %v3203, %v3446
        %3448 = vmatprep.mubr.bf16.mxu0 %v3141
        %3449 = vmatmul.mubr.bf16.gmra.mrb[0].mxu0 %v3140
        %v3450 = vpop.f32.mrb[0].mxu0
        %v3451 = vadd.f32 %v3199, %v3450
        %v3452 = vpop.f32.mrb[0].mxu0
        %v3453 = vadd.f32 %v3203, %v3452
        %v3454 = vpop.f32.mrb[0].mxu0
        %v3455 = vadd.f32 %v3199, %v3454
        %v3456 = vpop.f32.mrb[0].mxu0
        %v3457 = vadd.f32 %v3203, %v3456
        %3458 = vmatprep.mubr.bf16.mxu0 %v3143
        %3459 = vmatmul.mubr.bf16.gmra.mrb[0].mxu0 %v3142
        %v3460 = vpop.f32.mrb[0].mxu0
        %v3461 = vadd.f32 %v3199, %v3460
        %v3462 = vpop.f32.mrb[0].mxu0
        %v3463 = vadd.f32 %v3203, %v3462
        %v3464 = vpop.f32.mrb[0].mxu0
        %v3465 = vadd.f32 %v3199, %v3464
        %v3466 = vpop.f32.mrb[0].mxu0
        %v3467 = vadd.f32 %v3203, %v3466
        %3468 = vmatprep.mubr.bf16.mxu0 %v3145
        %3469 = vmatmul.mubr.bf16.gmra.mrb[0].mxu0 %v3144
        %v3470 = vpop.f32.mrb[0].mxu0
        %v3471 = vadd.f32 %v3199, %v3470
        %v3472 = vpop.f32.mrb[0].mxu0
        %v3473 = vadd.f32 %v3203, %v3472
        %v3474 = vpop.f32.mrb[0].mxu0
        %v3475 = vadd.f32 %v3199, %v3474
        %v3476 = vpop.f32.mrb[0].mxu0
        %v3477 = vadd.f32 %v3203, %v3476
        %3478 = vmatprep.mubr.bf16.mxu0 %v3147
        %3479 = vmatmul.mubr.bf16.gmra.mrb[0].mxu0 %v3146
        %v3480 = vpop.f32.mrb[0].mxu0
        %v3481 = vadd.f32 %v3199, %v3480
        %v3482 = vpop.f32.mrb[0].mxu0
        %v3483 = vadd.f32 %v3203, %v3482
        %v3484 = vpop.f32.mrb[0].mxu0
        %v3485 = vadd.f32 %v3199, %v3484
        %v3486 = vpop.f32.mrb[0].mxu0
        %v3487 = vadd.f32 %v3203, %v3486
        %3488 = vmatprep.mubr.bf16.mxu0 %v3149
        %3489 = vmatmul.mubr.bf16.gmra.mrb[0].mxu0 %v3148
        %v3490 = vpop.f32.mrb[0].mxu0
        %v3491 = vadd.f32 %v3199, %v3490
        %v3492 = vpop.f32.mrb[0].mxu0
        %v3493 = vadd.f32 %v3203, %v3492
        %v3494 = vpop.f32.mrb[0].mxu0
        %v3495 = vadd.f32 %v3199, %v3494
        %v3496 = vpop.f32.mrb[0].mxu0
        %v3497 = vadd.f32 %v3203, %v3496
        %3498 = vmatprep.mubr.bf16.mxu0 %v3151
        %3499 = vmatmul.mubr.bf16.gmra.mrb[0].mxu0 %v3150
        %v3500 = vpop.f32.mrb[0].mxu0
        %v3501 = vadd.f32 %v3199, %v3500
        %v3502 = vpop.f32.mrb[0].mxu0
        %v3503 = vadd.f32 %v3203, %v3502
        %v3504 = vpop.f32.mrb[0].mxu0
        %v3505 = vadd.f32 %v3199, %v3504
        %v3506 = vpop.f32.mrb[0].mxu0
        %v3507 = vadd.f32 %v3203, %v3506
        %3508 = vmatprep.mubr.bf16.mxu0 %v3153
        %3509 = vmatmul.mubr.bf16.gmra.mrb[0].mxu0 %v3152
        %v3510 = vpop.f32.mrb[0].mxu0
        %v3511 = vadd.f32 %v3199, %v3510
        %v3512 = vpop.f32.mrb[0].mxu0
        %v3513 = vadd.f32 %v3203, %v3512
        %v3514 = vpop.f32.mrb[0].mxu0
        %v3515 = vadd.f32 %v3199, %v3514
        %v3516 = vpop.f32.mrb[0].mxu0
        %v3517 = vadd.f32 %v3203, %v3516
        %3518 = vmatprep.mubr.bf16.mxu0 %v3155
        %3519 = vmatmul.mubr.bf16.gmra.mrb[0].mxu0 %v3154
        %v3520 = vpop.f32.mrb[0].mxu0
        %v3521 = vadd.f32 %v3199, %v3520
        %v3522 = vpop.f32.mrb[0].mxu0
        %v3523 = vadd.f32 %v3203, %v3522
        %v3524 = vpop.f32.mrb[0].mxu0
        %v3525 = vadd.f32 %v3199, %v3524
        %v3526 = vpop.f32.mrb[0].mxu0
        %v3527 = vadd.f32 %v3203, %v3526
        %3528 = vmatprep.mubr.bf16.mxu0 %v3157
        %3529 = vmatmul.mubr.bf16.gmra.mrb[0].mxu0 %v3156
        %v3530 = vpop.f32.mrb[0].mxu0
        %v3531 = vadd.f32 %v3199, %v3530
        %v3532 = vpop.f32.mrb[0].mxu0
        %v3533 = vadd.f32 %v3203, %v3532
        %v3534 = vpop.f32.mrb[0].mxu0
        %v3535 = vadd.f32 %v3199, %v3534
        %v3536 = vpop.f32.mrb[0].mxu0
        %v3537 = vadd.f32 %v3203, %v3536
        %3538 = vmatprep.mubr.bf16.mxu0 %v3159
        %3539 = vmatmul.mubr.bf16.gmra.mrb[0].mxu0 %v3158
        %v3540 = vpop.f32.mrb[0].mxu0
        %v3541 = vadd.f32 %v3199, %v3540
        %v3542 = vpop.f32.mrb[0].mxu0
        %v3543 = vadd.f32 %v3203, %v3542
        %v3544 = vpop.f32.mrb[0].mxu0
        %v3545 = vadd.f32 %v3199, %v3544
        %v3546 = vpop.f32.mrb[0].mxu0
        %v3547 = vadd.f32 %v3203, %v3546
        %3548 = vmatprep.mubr.bf16.mxu0 %v3161
        %3549 = vmatmul.mubr.bf16.gmra.mrb[0].mxu0 %v3160
        %v3550 = vpop.f32.mrb[0].mxu0
        %v3551 = vadd.f32 %v3199, %v3550
        %v3552 = vpop.f32.mrb[0].mxu0
        %v3553 = vadd.f32 %v3203, %v3552
        %v3554 = vpop.f32.mrb[0].mxu0
        %v3555 = vadd.f32 %v3199, %v3554
        %v3556 = vpop.f32.mrb[0].mxu0
        %v3557 = vadd.f32 %v3203, %v3556
        %3558 = vdwg.mxu0
        %v3559 = vmax.f32 %v3401, 0.0
        %v3560 = vmax.f32 %v3403, 0.0
        %v3561 = vmax.f32 %v3405, 0.0
        %v3562 = vmax.f32 %v3407, 0.0
        %v3563 = vmax.f32 %v3411, 0.0
        %v3564 = vmax.f32 %v3413, 0.0
        %v3565 = vmax.f32 %v3415, 0.0
        %v3566 = vmax.f32 %v3417, 0.0
        %v3567 = vmax.f32 %v3421, 0.0
        %v3568 = vmax.f32 %v3423, 0.0
        %v3569 = vmax.f32 %v3425, 0.0
        %v3570 = vmax.f32 %v3427, 0.0
        %v3571 = vmax.f32 %v3431, 0.0
        %v3572 = vmax.f32 %v3433, 0.0
        %v3573 = vmax.f32 %v3435, 0.0
        %v3574 = vmax.f32 %v3437, 0.0
        %v3575 = vmax.f32 %v3441, 0.0
        %v3576 = vmax.f32 %v3443, 0.0
        %v3577 = vmax.f32 %v3445, 0.0
        %v3578 = vmax.f32 %v3447, 0.0
        %v3579 = vmax.f32 %v3451, 0.0
        %v3580 = vmax.f32 %v3453, 0.0
        %v3581 = vmax.f32 %v3455, 0.0
        %v3582 = vmax.f32 %v3457, 0.0
        %v3583 = vmax.f32 %v3461, 0.0
        %v3584 = vmax.f32 %v3463, 0.0
        %v3585 = vmax.f32 %v3465, 0.0
        %v3586 = vmax.f32 %v3467, 0.0
        %v3587 = vmax.f32 %v3471, 0.0
        %v3588 = vmax.f32 %v3473, 0.0
        %v3589 = vmax.f32 %v3475, 0.0
        %v3590 = vmax.f32 %v3477, 0.0
        %v3591 = vmax.f32 %v3481, 0.0
        %v3592 = vmax.f32 %v3483, 0.0
        %v3593 = vmax.f32 %v3485, 0.0
        %v3594 = vmax.f32 %v3487, 0.0
        %v3595 = vmax.f32 %v3491, 0.0
        %v3596 = vmax.f32 %v3493, 0.0
        %v3597 = vmax.f32 %v3495, 0.0
        %v3598 = vmax.f32 %v3497, 0.0
        %v3599 = vmax.f32 %v3501, 0.0
        %v3600 = vmax.f32 %v3503, 0.0
        %v3601 = vmax.f32 %v3505, 0.0
        %v3602 = vmax.f32 %v3507, 0.0
        %v3603 = vmax.f32 %v3511, 0.0
        %v3604 = vmax.f32 %v3513, 0.0
        %v3605 = vmax.f32 %v3515, 0.0
        %v3606 = vmax.f32 %v3517, 0.0
        %v3607 = vmax.f32 %v3521, 0.0
        %v3608 = vmax.f32 %v3523, 0.0
        %v3609 = vmax.f32 %v3525, 0.0
        %v3610 = vmax.f32 %v3527, 0.0
        %v3611 = vmax.f32 %v3531, 0.0
        %v3612 = vmax.f32 %v3533, 0.0
        %v3613 = vmax.f32 %v3535, 0.0
        %v3614 = vmax.f32 %v3537, 0.0
        %v3615 = vmax.f32 %v3541, 0.0
        %v3616 = vmax.f32 %v3543, 0.0
        %v3617 = vmax.f32 %v3545, 0.0
        %v3618 = vmax.f32 %v3547, 0.0
        %v3619 = vmax.f32 %v3551, 0.0
        %v3620 = vmax.f32 %v3553, 0.0
        %v3621 = vmax.f32 %v3555, 0.0
        %v3622 = vmax.f32 %v3557, 0.0
        %v3623 = vpack.c.bf16 %v3561, %v3559
        %v3624 = vpack.c.bf16 %v3562, %v3560
        %v3625 = vpack.c.bf16 %v3565, %v3563
        %v3626 = vpack.c.bf16 %v3566, %v3564
        %v3627 = vpack.c.bf16 %v3569, %v3567
        %v3628 = vpack.c.bf16 %v3570, %v3568
        %v3629 = vpack.c.bf16 %v3573, %v3571
        %v3630 = vpack.c.bf16 %v3574, %v3572
        %v3631 = vpack.c.bf16 %v3577, %v3575
        %v3632 = vpack.c.bf16 %v3578, %v3576
        %v3633 = vpack.c.bf16 %v3581, %v3579
        %v3634 = vpack.c.bf16 %v3582, %v3580
        %v3635 = vpack.c.bf16 %v3585, %v3583
        %v3636 = vpack.c.bf16 %v3586, %v3584
        %v3637 = vpack.c.bf16 %v3589, %v3587
        %v3638 = vpack.c.bf16 %v3590, %v3588
        %v3639 = vpack.c.bf16 %v3593, %v3591
        %v3640 = vpack.c.bf16 %v3594, %v3592
        %v3641 = vpack.c.bf16 %v3597, %v3595
        %v3642 = vpack.c.bf16 %v3598, %v3596
        %v3643 = vpack.c.bf16 %v3601, %v3599
        %v3644 = vpack.c.bf16 %v3602, %v3600
        %v3645 = vpack.c.bf16 %v3605, %v3603
        %v3646 = vpack.c.bf16 %v3606, %v3604
        %v3647 = vpack.c.bf16 %v3609, %v3607
        %v3648 = vpack.c.bf16 %v3610, %v3608
        %v3649 = vpack.c.bf16 %v3613, %v3611
        %v3650 = vpack.c.bf16 %v3614, %v3612
        %v3651 = vpack.c.bf16 %v3617, %v3615
        %v3652 = vpack.c.bf16 %v3618, %v3616
        %v3653 = vpack.c.bf16 %v3621, %v3619
        %v3654 = vpack.c.bf16 %v3622, %v3620
        %v3655 = vld [vmem:[#allocation10] sm:$0xf]
        %v3656 = vld [vmem:[#allocation10 + $0x4] sm:$0xf]
        %v3657 = vld [vmem:[#allocation10 + $0x8] sm:$0xf]
        %v3658 = vld [vmem:[#allocation10 + $0xc] sm:$0xf]
        %v3659 = vld [vmem:[#allocation10 + $0x10] sm:$0xf]
        %v3660 = vld [vmem:[#allocation10 + $0x14] sm:$0xf]
        %v3661 = vld [vmem:[#allocation10 + $0x18] sm:$0xf]
        %v3662 = vld [vmem:[#allocation10 + $0x1c] sm:$0xf]
        %v3663 = vld [vmem:[#allocation10 + $0x20] sm:$0xf]
        %v3664 = vld [vmem:[#allocation10 + $0x24] sm:$0xf]
        %v3665 = vld [vmem:[#allocation10 + $0x28] sm:$0xf]
        %v3666 = vld [vmem:[#allocation10 + $0x2c] sm:$0xf]
        %v3667 = vld [vmem:[#allocation10 + $0x30] sm:$0xf]
        %v3668 = vld [vmem:[#allocation10 + $0x34] sm:$0xf]
        %v3669 = vld [vmem:[#allocation10 + $0x38] sm:$0xf]
        %v3670 = vld [vmem:[#allocation10 + $0x3c] sm:$0xf]
        %v3671 = vld [vmem:[#allocation10 + $0x40] sm:$0xf]
        %v3672 = vld [vmem:[#allocation10 + $0x44] sm:$0xf]
        %v3673 = vld [vmem:[#allocation10 + $0x48] sm:$0xf]
        %v3674 = vld [vmem:[#allocation10 + $0x4c] sm:$0xf]
        %v3675 = vld [vmem:[#allocation10 + $0x50] sm:$0xf]
        %v3676 = vld [vmem:[#allocation10 + $0x54] sm:$0xf]
        %v3677 = vld [vmem:[#allocation10 + $0x58] sm:$0xf]
        %v3678 = vld [vmem:[#allocation10 + $0x5c] sm:$0xf]
        %v3679 = vld [vmem:[#allocation10 + $0x60] sm:$0xf]
        %v3680 = vld [vmem:[#allocation10 + $0x64] sm:$0xf]
        %v3681 = vld [vmem:[#allocation10 + $0x68] sm:$0xf]
        %v3682 = vld [vmem:[#allocation10 + $0x6c] sm:$0xf]
        %v3683 = vld [vmem:[#allocation10 + $0x70] sm:$0xf]
        %v3684 = vld [vmem:[#allocation10 + $0x74] sm:$0xf]
        %v3685 = vld [vmem:[#allocation10 + $0x78] sm:$0xf]
        %v3686 = vld [vmem:[#allocation10 + $0x7c] sm:$0xf]
        %v3687 = vld [vmem:[%s8] sm:$0x1]
        %v3689 = vlaneseq
        %v3690 = vshrl.u32 %v3689, 7
        %v3691 = vsub.s32 0, %v3690
        %v3692 = vrot.slane %v3687, %v3691
        %v3726 = vunpack.c.l.b16 %v3655
        %v3727 = vunpack.c.l.b16 %v3656
        %v3728 = vunpack.c.l.b16 %v3657
        %v3729 = vunpack.c.l.b16 %v3658
        %v3730 = vunpack.c.l.b16 %v3659
        %v3731 = vunpack.c.l.b16 %v3660
        %v3732 = vunpack.c.l.b16 %v3661
        %v3733 = vunpack.c.l.b16 %v3662
        %v3734 = vunpack.c.l.b16 %v3663
        %v3735 = vunpack.c.l.b16 %v3664
        %v3736 = vunpack.c.l.b16 %v3665
        %v3737 = vunpack.c.l.b16 %v3666
        %v3738 = vunpack.c.l.b16 %v3667
        %v3739 = vunpack.c.l.b16 %v3668
        %v3740 = vunpack.c.l.b16 %v3669
        %v3741 = vunpack.c.l.b16 %v3670
        %v3742 = vunpack.c.l.b16 %v3671
        %v3743 = vunpack.c.l.b16 %v3672
        %v3744 = vunpack.c.l.b16 %v3673
        %v3745 = vunpack.c.l.b16 %v3674
        %v3746 = vunpack.c.l.b16 %v3675
        %v3747 = vunpack.c.l.b16 %v3676
        %v3748 = vunpack.c.l.b16 %v3677
        %v3749 = vunpack.c.l.b16 %v3678
        %v3750 = vunpack.c.l.b16 %v3679
        %v3751 = vunpack.c.l.b16 %v3680
        %v3752 = vunpack.c.l.b16 %v3681
        %v3753 = vunpack.c.l.b16 %v3682
        %v3754 = vunpack.c.l.b16 %v3683
        %v3755 = vunpack.c.l.b16 %v3684
        %v3756 = vunpack.c.l.b16 %v3685
        %v3757 = vunpack.c.l.b16 %v3686
        %v3758 = vpack.c.b16 %v3727, %v3726
        %v3759 = vpack.c.b16 %v3729, %v3728
        %v3760 = vpack.c.b16 %v3731, %v3730
        %v3761 = vpack.c.b16 %v3733, %v3732
        %v3762 = vpack.c.b16 %v3735, %v3734
        %v3763 = vpack.c.b16 %v3737, %v3736
        %v3764 = vpack.c.b16 %v3739, %v3738
        %v3765 = vpack.c.b16 %v3741, %v3740
        %v3766 = vpack.c.b16 %v3743, %v3742
        %v3767 = vpack.c.b16 %v3745, %v3744
        %v3768 = vpack.c.b16 %v3747, %v3746
        %v3769 = vpack.c.b16 %v3749, %v3748
        %v3770 = vpack.c.b16 %v3751, %v3750
        %v3771 = vpack.c.b16 %v3753, %v3752
        %v3772 = vpack.c.b16 %v3755, %v3754
        %v3773 = vpack.c.b16 %v3757, %v3756
        %3790 = vmatprep.subr.bf16.mxu0 0
        %3791 = vmatpush1.bf16.msra.mxu0 %v3758
        %3792 = vmatprep.subr.bf16.mxu0 0
        %3793 = vmatpush1.bf16.msra.mxu0 %v3759
        %3794 = vmatprep.subr.bf16.mxu0 0
        %3795 = vmatpush1.bf16.msra.mxu0 %v3760
        %3796 = vmatprep.subr.bf16.mxu0 0
        %3797 = vmatpush1.bf16.msra.mxu0 %v3761
        %3798 = vmatprep.subr.bf16.mxu0 0
        %3799 = vmatpush1.bf16.msra.mxu0 %v3762
        %3800 = vmatprep.subr.bf16.mxu0 0
        %3801 = vmatpush1.bf16.msra.mxu0 %v3763
        %3802 = vmatprep.subr.bf16.mxu0 0
        %3803 = vmatpush1.bf16.msra.mxu0 %v3764
        %3804 = vmatprep.subr.bf16.mxu0 0
        %3805 = vmatpush1.bf16.msra.mxu0 %v3765
        %3806 = vmatprep.subr.bf16.mxu0 0
        %3807 = vmatpush1.bf16.msra.mxu0 %v3766
        %3808 = vmatprep.subr.bf16.mxu0 0
        %3809 = vmatpush1.bf16.msra.mxu0 %v3767
        %3810 = vmatprep.subr.bf16.mxu0 0
        %3811 = vmatpush1.bf16.msra.mxu0 %v3768
        %3812 = vmatprep.subr.bf16.mxu0 0
        %3813 = vmatpush1.bf16.msra.mxu0 %v3769
        %3814 = vmatprep.subr.bf16.mxu0 0
        %3815 = vmatpush1.bf16.msra.mxu0 %v3770
        %3816 = vmatprep.subr.bf16.mxu0 0
        %3817 = vmatpush1.bf16.msra.mxu0 %v3771
        %3818 = vmatprep.subr.bf16.mxu0 0
        %3819 = vmatpush1.bf16.msra.mxu0 %v3772
        %3820 = vmatprep.subr.bf16.mxu0 0
        %3821 = vmatpush1.bf16.msra.mxu0 %v3773
        %3822 = vmatprep.mubr.bf16.mxu0 %v3624
        %3823 = vmatmul.mubr.bf16.gmra.mrb[0].mxu0 %v3623
        %v3824 = vpop.f32.mrb[0].mxu0
        %v3825 = vadd.f32 %v3692, %v3824
        %v3826 = vpop.f32.mrb[0].mxu0
        %v3827 = vpop.f32.mrb[0].mxu0
        %v3828 = vadd.f32 %v3692, %v3827
        %v3829 = vpop.f32.mrb[0].mxu0
        %3830 = vmatprep.mubr.bf16.mxu0 %v3626
        %3831 = vmatmul.mubr.bf16.gmra.mrb[0].mxu0 %v3625
        %v3832 = vpop.f32.mrb[0].mxu0
        %v3833 = vadd.f32 %v3692, %v3832
        %v3834 = vpop.f32.mrb[0].mxu0
        %v3835 = vpop.f32.mrb[0].mxu0
        %v3836 = vadd.f32 %v3692, %v3835
        %v3837 = vpop.f32.mrb[0].mxu0
        %3838 = vmatprep.mubr.bf16.mxu0 %v3628
        %3839 = vmatmul.mubr.bf16.gmra.mrb[0].mxu0 %v3627
        %v3840 = vpop.f32.mrb[0].mxu0
        %v3841 = vadd.f32 %v3692, %v3840
        %v3842 = vpop.f32.mrb[0].mxu0
        %v3843 = vpop.f32.mrb[0].mxu0
        %v3844 = vadd.f32 %v3692, %v3843
        %v3845 = vpop.f32.mrb[0].mxu0
        %3846 = vmatprep.mubr.bf16.mxu0 %v3630
        %3847 = vmatmul.mubr.bf16.gmra.mrb[0].mxu0 %v3629
        %v3848 = vpop.f32.mrb[0].mxu0
        %v3849 = vadd.f32 %v3692, %v3848
        %v3850 = vpop.f32.mrb[0].mxu0
        %v3851 = vpop.f32.mrb[0].mxu0
        %v3852 = vadd.f32 %v3692, %v3851
        %v3853 = vpop.f32.mrb[0].mxu0
        %3854 = vmatprep.mubr.bf16.mxu0 %v3632
        %3855 = vmatmul.mubr.bf16.gmra.mrb[0].mxu0 %v3631
        %v3856 = vpop.f32.mrb[0].mxu0
        %v3857 = vadd.f32 %v3692, %v3856
        %v3858 = vpop.f32.mrb[0].mxu0
        %v3859 = vpop.f32.mrb[0].mxu0
        %v3860 = vadd.f32 %v3692, %v3859
        %v3861 = vpop.f32.mrb[0].mxu0
        %3862 = vmatprep.mubr.bf16.mxu0 %v3634
        %3863 = vmatmul.mubr.bf16.gmra.mrb[0].mxu0 %v3633
        %v3864 = vpop.f32.mrb[0].mxu0
        %v3865 = vadd.f32 %v3692, %v3864
        %v3866 = vpop.f32.mrb[0].mxu0
        %v3867 = vpop.f32.mrb[0].mxu0
        %v3868 = vadd.f32 %v3692, %v3867
        %v3869 = vpop.f32.mrb[0].mxu0
        %3870 = vmatprep.mubr.bf16.mxu0 %v3636
        %3871 = vmatmul.mubr.bf16.gmra.mrb[0].mxu0 %v3635
        %v3872 = vpop.f32.mrb[0].mxu0
        %v3873 = vadd.f32 %v3692, %v3872
        %v3874 = vpop.f32.mrb[0].mxu0
        %v3875 = vpop.f32.mrb[0].mxu0
        %v3876 = vadd.f32 %v3692, %v3875
        %v3877 = vpop.f32.mrb[0].mxu0
        %3878 = vmatprep.mubr.bf16.mxu0 %v3638
        %3879 = vmatmul.mubr.bf16.gmra.mrb[0].mxu0 %v3637
        %v3880 = vpop.f32.mrb[0].mxu0
        %v3881 = vadd.f32 %v3692, %v3880
        %v3882 = vpop.f32.mrb[0].mxu0
        %v3883 = vpop.f32.mrb[0].mxu0
        %v3884 = vadd.f32 %v3692, %v3883
        %v3885 = vpop.f32.mrb[0].mxu0
        %3886 = vmatprep.mubr.bf16.mxu0 %v3640
        %3887 = vmatmul.mubr.bf16.gmra.mrb[0].mxu0 %v3639
        %v3888 = vpop.f32.mrb[0].mxu0
        %v3889 = vadd.f32 %v3692, %v3888
        %v3890 = vpop.f32.mrb[0].mxu0
        %v3891 = vpop.f32.mrb[0].mxu0
        %v3892 = vadd.f32 %v3692, %v3891
        %v3893 = vpop.f32.mrb[0].mxu0
        %3894 = vmatprep.mubr.bf16.mxu0 %v3642
        %3895 = vmatmul.mubr.bf16.gmra.mrb[0].mxu0 %v3641
        %v3896 = vpop.f32.mrb[0].mxu0
        %v3897 = vadd.f32 %v3692, %v3896
        %v3898 = vpop.f32.mrb[0].mxu0
        %v3899 = vpop.f32.mrb[0].mxu0
        %v3900 = vadd.f32 %v3692, %v3899
        %v3901 = vpop.f32.mrb[0].mxu0
        %3902 = vmatprep.mubr.bf16.mxu0 %v3644
        %3903 = vmatmul.mubr.bf16.gmra.mrb[0].mxu0 %v3643
        %v3904 = vpop.f32.mrb[0].mxu0
        %v3905 = vadd.f32 %v3692, %v3904
        %v3906 = vpop.f32.mrb[0].mxu0
        %v3907 = vpop.f32.mrb[0].mxu0
        %v3908 = vadd.f32 %v3692, %v3907
        %v3909 = vpop.f32.mrb[0].mxu0
        %3910 = vmatprep.mubr.bf16.mxu0 %v3646
        %3911 = vmatmul.mubr.bf16.gmra.mrb[0].mxu0 %v3645
        %v3912 = vpop.f32.mrb[0].mxu0
        %v3913 = vadd.f32 %v3692, %v3912
        %v3914 = vpop.f32.mrb[0].mxu0
        %v3915 = vpop.f32.mrb[0].mxu0
        %v3916 = vadd.f32 %v3692, %v3915
        %v3917 = vpop.f32.mrb[0].mxu0
        %3918 = vmatprep.mubr.bf16.mxu0 %v3648
        %3919 = vmatmul.mubr.bf16.gmra.mrb[0].mxu0 %v3647
        %v3920 = vpop.f32.mrb[0].mxu0
        %v3921 = vadd.f32 %v3692, %v3920
        %v3922 = vpop.f32.mrb[0].mxu0
        %v3923 = vpop.f32.mrb[0].mxu0
        %v3924 = vadd.f32 %v3692, %v3923
        %v3925 = vpop.f32.mrb[0].mxu0
        %3926 = vmatprep.mubr.bf16.mxu0 %v3650
        %3927 = vmatmul.mubr.bf16.gmra.mrb[0].mxu0 %v3649
        %v3928 = vpop.f32.mrb[0].mxu0
        %v3929 = vadd.f32 %v3692, %v3928
        %v3930 = vpop.f32.mrb[0].mxu0
        %v3931 = vpop.f32.mrb[0].mxu0
        %v3932 = vadd.f32 %v3692, %v3931
        %v3933 = vpop.f32.mrb[0].mxu0
        %3934 = vmatprep.mubr.bf16.mxu0 %v3652
        %3935 = vmatmul.mubr.bf16.gmra.mrb[0].mxu0 %v3651
        %v3936 = vpop.f32.mrb[0].mxu0
        %v3937 = vadd.f32 %v3692, %v3936
        %v3938 = vpop.f32.mrb[0].mxu0
        %v3939 = vpop.f32.mrb[0].mxu0
        %v3940 = vadd.f32 %v3692, %v3939
        %v3941 = vpop.f32.mrb[0].mxu0
        %3942 = vmatprep.mubr.bf16.mxu0 %v3654
        %3943 = vmatmul.mubr.bf16.gmra.mrb[0].mxu0 %v3653
        %v3944 = vpop.f32.mrb[0].mxu0
        %v3945 = vadd.f32 %v3692, %v3944
        %v3946 = vpop.f32.mrb[0].mxu0
        %v3947 = vpop.f32.mrb[0].mxu0
        %v3948 = vadd.f32 %v3692, %v3947
        %v3949 = vpop.f32.mrb[0].mxu0
        %3950 = vdwg.mxu0
        %3951 = vst [vmem:[%s409] sm:$0xff] %v3825
        %3952 = vst [vmem:[%s409 + $0x8] sm:$0xff] %v3828
        %3953 = vst [vmem:[%s409 + $0x10] sm:$0xff] %v3833
        %3954 = vst [vmem:[%s409 + $0x18] sm:$0xff] %v3836
        %3955 = vst [vmem:[%s409 + $0x20] sm:$0xff] %v3841
        %3956 = vst [vmem:[%s409 + $0x28] sm:$0xff] %v3844
        %3957 = vst [vmem:[%s409 + $0x30] sm:$0xff] %v3849
        %3958 = vst [vmem:[%s409 + $0x38] sm:$0xff] %v3852
        %3959 = vst [vmem:[%s409 + $0x40] sm:$0xff] %v3857
        %3960 = vst [vmem:[%s409 + $0x48] sm:$0xff] %v3860
        %3961 = vst [vmem:[%s409 + $0x50] sm:$0xff] %v3865
        %3962 = vst [vmem:[%s409 + $0x58] sm:$0xff] %v3868
        %3963 = vst [vmem:[%s409 + $0x60] sm:$0xff] %v3873
        %3964 = vst [vmem:[%s409 + $0x68] sm:$0xff] %v3876
        %3965 = vst [vmem:[%s409 + $0x70] sm:$0xff] %v3881
        %3966 = vst [vmem:[%s409 + $0x78] sm:$0xff] %v3884
        %3967 = vst [vmem:[%s409 + $0x80] sm:$0xff] %v3889
        %3968 = vst [vmem:[%s409 + $0x88] sm:$0xff] %v3892
        %3969 = vst [vmem:[%s409 + $0x90] sm:$0xff] %v3897
        %3970 = vst [vmem:[%s409 + $0x98] sm:$0xff] %v3900
        %3971 = vst [vmem:[%s409 + $0xa0] sm:$0xff] %v3905
        %3972 = vst [vmem:[%s409 + $0xa8] sm:$0xff] %v3908
        %3973 = vst [vmem:[%s409 + $0xb0] sm:$0xff] %v3913
        %3974 = vst [vmem:[%s409 + $0xb8] sm:$0xff] %v3916
        %3975 = vst [vmem:[%s409 + $0xc0] sm:$0xff] %v3921
        %3976 = vst [vmem:[%s409 + $0xc8] sm:$0xff] %v3924
        %3977 = vst [vmem:[%s409 + $0xd0] sm:$0xff] %v3929
        %3978 = vst [vmem:[%s409 + $0xd8] sm:$0xff] %v3932
        %3979 = vst [vmem:[%s409 + $0xe0] sm:$0xff] %v3937
        %3980 = vst [vmem:[%s409 + $0xe8] sm:$0xff] %v3940
        %3981 = vst [vmem:[%s409 + $0xf0] sm:$0xff] %v3945
        %3982 = vst [vmem:[%s409 + $0xf8] sm:$0xff] %v3948
        %s3983 = sand.u32 %s230, 1
        %s3984 = scalar_lea.sflag [#allocation4], %s3983
        %s3985 = sand.u32 %s230, 1
        %s3986 = smul.addr %s3985, 256
        %s3987 = scalar_lea.vmem [#allocation11], %s3986
        // Predicated region
        $region77: #{tpu_custom_call.1} parent=55 // pred_check
          %p3988 = pneg %p240
        $region78: #{tpu_custom_call.1} parent=55 // pred_check_branch
          %3990 = sbr.rel (%p3988) target = $region80
        $region79: #{tpu_custom_call.1} parent=55 // pred_region
          %s3991 = smul.u32 32, %s28
          %s3993 = ssub.s32 4096, 4096
          %3994 = vsyncadd %s3984, %s3993
          %s3995 = smul.addr %s3991, 128
          %s3996 = scalar_lea.hbm %s9, %s3995
          %s3997 = sshll.u32 %s3987, 4
          %s3998 = int_to_ptr.vmem [resolvable:$true] %s3997
          %4003 = dma.vmem_to_hbm [thread:$0]  %s3998, 4096, %s3996, %s3984, 128, 128, 8
        $region80: #{tpu_custom_call.1} parent=55 // pred_fallthru
          _
      $region56: #{tpu_custom_call.1} parent=5 // pred_fallthru
        _
      %p4004 = scmp.le.s32.totalorder 2, %s23
      // Predicated region
      $region81: #{tpu_custom_call.1} parent=5 // pred_check
        %p4005 = pneg %p4004
      $region82: #{tpu_custom_call.1} parent=5 // pred_check_branch
        %4007 = sbr.rel (%p4005) target = $region84
      $region83: #{tpu_custom_call.1} parent=5 // pred_region
        %s4008 = ssub.s32 %s23, 2
        // Predicated region
        $region85: #{tpu_custom_call.1} parent=83 // pred_check
          %p4009 = pneg %p246
        $region86: #{tpu_custom_call.1} parent=83 // pred_check_branch
          %4011 = sbr.rel (%p4009) target = $region88
        $region87: #{tpu_custom_call.1} parent=83 // pred_region
          %s4012 = sand.u32 %s231, 1
          %s4013 = scalar_lea.sflag [#allocation4], %s4012
          %s4014 = sand.u32 %s231, 1
          %s4015 = smul.addr %s4014, 256
          %s4016 = scalar_lea.vmem [#allocation11], %s4015
          %4017 = dma.done %s4013, 4096
        $region88: #{tpu_custom_call.1} parent=83 // pred_fallthru
          _
      $region84: #{tpu_custom_call.1} parent=5 // pred_fallthru
        _
    $region6: #{tpu_custom_call.1} parent=1 // loop_footer
      %s27 = sadd.s32 1, %s23
    $region7: #{tpu_custom_call.1} parent=1 // loop_footer_branch
      %22 = sbr.rel target = $region3
    $region8: #{tpu_custom_call.1} parent=1 // loop_exit
      _
    %4018 = vsyncpa [#allocation3], 1
    %s4019 = scalar_lea.sflag [#allocation3], 1
    %4020 = vsyncpa %s4019, 1
    %4021 = vsyncpa [#allocation6], 1
    %4022 = vsyncpa [#allocation9], 1
    %4023 = vsyncpa [#allocation4], 1
    %s4024 = scalar_lea.sflag [#allocation4], 1
    %4025 = vsyncpa %s4024, 1

</llo_original>
